<compile_context>
chip_gen: v5e
topology: v5e:2x2
jax: 0.10.0
libtpu: 0.0.40
codegen_flags: <defaults>
</compile_context>

<pallas_src>
import math

import jax
import jax.numpy as jnp
from jax import lax
from jax.experimental import pallas as pl
from jax.experimental.pallas import tpu as pltpu


# ----------------------------------------------------------------------------
# One fused bidirectional LSTM layer (single pallas_call, both directions)
# ----------------------------------------------------------------------------
def _bilstm_layer(x2d, wih_cat, whh_bd, b_cat, wp, bp, *, T, B, H,
                  emit_hidden, emit_price):
    """Fused bidirectional LSTM layer.

    Args:
      x2d:     (T*B, F_in) layer input, time-major flattened (row = t*B + b).
      wih_cat: (F_in, 8H)  [Wih_fwd^T | Wih_bwd^T], g-gate columns pre-scaled x2.
      whh_bd:  (2H, 8H)    block-diagonal [Whh_fwd^T ; Whh_bwd^T], g pre-scaled.
      b_cat:   (1, 8H)     [b_fwd | b_bwd] (b_ih + b_hh), g pre-scaled.
      wp:      (1, 2H)     final Linear weight (only used if emit_price).
      bp:      (1, 1)      final Linear bias   (only used if emit_price).
    Returns (tuple):
      [hid (T*B, 2H) if emit_hidden] and/or [price (T*B, 1) if emit_price].
    """
    TB = T * B
    F_in = x2d.shape[1]
    H4 = 4 * H
    G = 8 * H                      # fused gate width: 2 directions x 4 gates

    def kernel(*refs):
        it = iter(refs)
        x_ref = next(it)
        wih_ref = next(it)
        whh_ref = next(it)
        b_ref = next(it)
        wp_ref = next(it) if emit_price else None
        bp_ref = next(it) if emit_price else None
        hid_ref = next(it) if emit_hidden else None
        price_ref = next(it) if emit_price else None
        xw_sc = next(it)

        # One full-width MXU pass: input projections (+ bias) for every
        # timestep and BOTH directions (fwd gates in cols [0,4H), bwd in
        # [4H,8H)).  Off the serial recurrence path.
        xw_sc[...] = (
            jnp.dot(x_ref[...], wih_ref[...],
                    preferred_element_type=jnp.float32)
            + b_ref[...]
        )                                                        # (T*B, 8H)
        whh = whh_ref[...]                                       # (2H, 8H)

        if emit_price:
            wp_f = wp_ref[:, 0:H]                                # (1, H)
            wp_b = wp_ref[:, H:2 * H]
            # Price accumulator lives directly in the output VMEM block.
            price_ref[...] = jnp.zeros((TB, 1), jnp.float32) + bp_ref[...]

        def step(t, carry):
            h, c_f, c_b = carry          # h: (B, 2H) = [fwd | bwd]; c: (B, H)
            row_f = pl.multiple_of(t * B, B)             # forward -> time t
            row_b = pl.multiple_of((T - 1 - t) * B, B)   # backward -> T-1-t

            # Single MXU op for both directions' recurrent projection.
            hh = jnp.dot(h, whh, preferred_element_type=jnp.float32)  # (B,8H)
            gate_f = xw_sc[pl.ds(row_f, B), 0:H4] + hh[:, 0:H4]
            gate_b = xw_sc[pl.ds(row_b, B), H4:G] + hh[:, H4:G]

            # One full-vreg sigmoid per direction; g gate pre-activations were
            # pre-scaled by 2 so tanh(x) = 2*sigmoid(2x) - 1 needs no extra
            # EUP pass.  PyTorch gate order per direction: [i, f, g, o].
            s_f = jax.nn.sigmoid(gate_f)                 # (B, 4H) full vreg
            s_b = jax.nn.sigmoid(gate_b)
            c_f = (s_f[:, H:2 * H] * c_f
                   + s_f[:, 0:H] * (2.0 * s_f[:, 2 * H:3 * H] - 1.0))
            c_b = (s_b[:, H:2 * H] * c_b
                   + s_b[:, 0:H] * (2.0 * s_b[:, 2 * H:3 * H] - 1.0))
            h_f = s_f[:, 3 * H:H4] * jnp.tanh(c_f)
            h_b = s_b[:, 3 * H:H4] * jnp.tanh(c_b)

            if emit_hidden:
                hid_ref[pl.ds(row_f, B), 0:H] = h_f
                hid_ref[pl.ds(row_b, B), H:2 * H] = h_b
            if emit_price:
                # Fused Linear(2*nfeat, 1): accumulate each direction's
                # contribution at the row it belongs to.
                p_f = jnp.sum(h_f * wp_f, axis=-1, keepdims=True)   # (B, 1)
                p_b = jnp.sum(h_b * wp_b, axis=-1, keepdims=True)
                price_ref[pl.ds(row_f, B), :] = (
                    price_ref[pl.ds(row_f, B), :] + p_f)
                price_ref[pl.ds(row_b, B), :] = (
                    price_ref[pl.ds(row_b, B), :] + p_b)

            h = jnp.concatenate([h_f, h_b], axis=-1)     # (B, 2H) carry
            return h, c_f, c_b

        h0 = jnp.zeros((B, 2 * H), jnp.float32)
        c0 = jnp.zeros((B, H), jnp.float32)
        lax.fori_loop(0, T, step, (h0, c0, c0), unroll=True)

    # ---- specs -------------------------------------------------------------
    in_specs = [
        pl.BlockSpec((TB, F_in), lambda i: (0, 0)),      # x (whole block)
        pl.BlockSpec((F_in, G), lambda i: (0, 0)),       # Wih (fused)
        pl.BlockSpec((2 * H, G), lambda i: (0, 0)),      # Whh (block-diag)
        pl.BlockSpec((1, G), lambda i: (0, 0)),          # bias
    ]
    args = [x2d, wih_cat, whh_bd, b_cat]
    if emit_price:
        in_specs += [pl.BlockSpec((1, 2 * H), lambda i: (0, 0)),   # w_price
                     pl.BlockSpec((1, 1), lambda i: (0, 0))]       # b_price
        args += [wp, bp]

    out_shapes, out_specs = [], []
    if emit_hidden:
        out_shapes.append(jax.ShapeDtypeStruct((TB, 2 * H), jnp.float32))
        out_specs.append(pl.BlockSpec((TB, 2 * H), lambda i: (0, 0)))
    if emit_price:
        out_shapes.append(jax.ShapeDtypeStruct((TB, 1), jnp.float32))
        out_specs.append(pl.BlockSpec((TB, 1), lambda i: (0, 0)))

    return pl.pallas_call(
        kernel,
        out_shape=tuple(out_shapes),
        grid_spec=pltpu.PrefetchScalarGridSpec(
            num_scalar_prefetch=0,
            grid=(1,),
            in_specs=in_specs,
            out_specs=out_specs,
            scratch_shapes=[
                pltpu.VMEM((TB, G), jnp.float32),   # precomputed x@W_ih + b
            ],
        ),
        compiler_params=pltpu.CompilerParams(
            dimension_semantics=("arbitrary",)),
    )(*args)


# ----------------------------------------------------------------------------
# Host-side weight packing (transpose, fuse directions, tanh-via-sigmoid scale)
# ----------------------------------------------------------------------------
def _pack_direction(w_ih, w_hh, b_ih, b_hh, H):
    # Pre-scale the g-gate rows by 2 so tanh(x) == 2*sigmoid(2x) - 1 in-kernel.
    scale = jnp.concatenate([jnp.ones((2 * H,), jnp.float32),
                             jnp.full((H,), 2.0, jnp.float32),
                             jnp.ones((H,), jnp.float32)])
    w_ih = w_ih * scale[:, None]
    w_hh = w_hh * scale[:, None]
    b = (b_ih + b_hh) * scale
    return w_ih.T, w_hh.T, b                       # (F_in,4H), (H,4H), (4H,)


def _pack_layer(dirs, H):
    (wih_f, whh_f, bif, bhf), (wih_b, whh_b, bib, bhb) = dirs
    wihT_f, whhT_f, b_f = _pack_direction(wih_f, whh_f, bif, bhf, H)
    wihT_b, whhT_b, b_b = _pack_direction(wih_b, whh_b, bib, bhb, H)
    wih_cat = jnp.concatenate([wihT_f, wihT_b], axis=1)          # (F_in, 8H)
    whh_bd = jnp.zeros((2 * H, 8 * H), jnp.float32)
    whh_bd = whh_bd.at[0:H, 0:4 * H].set(whhT_f)
    whh_bd = whh_bd.at[H:2 * H, 4 * H:8 * H].set(whhT_b)         # (2H, 8H)
    b_cat = jnp.concatenate([b_f, b_b]).reshape(1, 8 * H)        # (1, 8H)
    return wih_cat, whh_bd, b_cat


# ----------------------------------------------------------------------------
# Parameters (deterministic init, PyTorch-default uniform(-1/sqrt(H), 1/sqrt(H)))
# ----------------------------------------------------------------------------
def init_params(key, nfeat, num_layers, bidirectional=True):
    H = nfeat
    D = 2 if bidirectional else 1
    bound = 1.0 / math.sqrt(H)
    lstm_layers = []
    for layer in range(num_layers):
        in_size = nfeat if layer == 0 else D * H
        dirs = []
        for _d in range(D):
            key, k1, k2, k3, k4 = jax.random.split(key, 5)
            w_ih = jax.random.uniform(k1, (4 * H, in_size), jnp.float32, -bound, bound)
            w_hh = jax.random.uniform(k2, (4 * H, H), jnp.float32, -bound, bound)
            b_ih = jax.random.uniform(k3, (4 * H,), jnp.float32, -bound, bound)
            b_hh = jax.random.uniform(k4, (4 * H,), jnp.float32, -bound, bound)
            dirs.append((w_ih, w_hh, b_ih, b_hh))
        lstm_layers.append(dirs)
    key, k1, k2 = jax.random.split(key, 3)
    lbound = 1.0 / math.sqrt(2 * nfeat)
    w_price = jax.random.uniform(k1, (1, 2 * nfeat), jnp.float32, -lbound, lbound)
    b_price = jax.random.uniform(k2, (1,), jnp.float32, -lbound, lbound)
    return {"lstm": lstm_layers, "w_price": w_price, "b_price": b_price}


# ----------------------------------------------------------------------------
# Forward pass (mirrors LSTM_static.forward)
# ----------------------------------------------------------------------------
def lstm_static_forward(params, x, house_size, nfeat):
    # TODO(synk): torch's out.view(shape, self.nfeat) is shape-inconsistent
    # with Linear(2*nfeat, 1) for a bidirectional LSTM; we keep (N, 2*nfeat) so
    # linear_price applies as intended.  LeakyReLU/dropout are defined but
    # unused in the torch forward, so they are omitted here too.
    N, _F = x.shape
    B = house_size
    T = N // B
    H = nfeat
    n_layers = len(params["lstm"])
    wp = params["w_price"]                                        # (1, 2H)
    bp = params["b_price"].reshape(1, 1)                          # (1, 1)

    layer_in = x                  # (N, F): row t*B+b == torch stacked sequence
    price = None
    for li, dirs in enumerate(params["lstm"]):
        wih_cat, whh_bd, b_cat = _pack_layer(dirs, H)
        if li == n_layers - 1:
            # Final layer: fused price head, no dead hid writeback.
            (price,) = _bilstm_layer(layer_in, wih_cat, whh_bd, b_cat, wp, bp,
                                     T=T, B=B, H=H,
                                     emit_hidden=False, emit_price=True)
        else:
            # Intermediate layer: lane-dense (N, 2H) hid only, no price work.
            (layer_in,) = _bilstm_layer(layer_in, wih_cat, whh_bd, b_cat, wp,
                                        bp, T=T, B=B, H=H,
                                        emit_hidden=True, emit_price=False)
    return price


# ----------------------------------------------------------------------------
# Pure-JAX reference (for a numerical sanity check)
# ----------------------------------------------------------------------------
def _ref_forward(params, x, house_size, nfeat):
    N, _F = x.shape
    B = house_size
    T = N // B
    seq = x.reshape(T, B, _F)

    def run_dir(s, w_ih, w_hh, b_ih, b_hh, reverse):
        if reverse:
            s = s[::-1]
        H = w_hh.shape[1]

        def step(carry, x_t):
            h, c = carry
            gates = x_t @ w_ih.T + h @ w_hh.T + b_ih + b_hh
            i = jax.nn.sigmoid(gates[:, :H])
            f = jax.nn.sigmoid(gates[:, H:2 * H])
            g = jnp.tanh(gates[:, 2 * H:3 * H])
            o = jax.nn.sigmoid(gates[:, 3 * H:])
            c = f * c + i * g
            h = o * jnp.tanh(c)
            return (h, c), h

        h0 = jnp.zeros((s.shape[1], H), jnp.float32)
        c0 = jnp.zeros((s.shape[1], H), jnp.float32)
        _, hs = jax.lax.scan(step, (h0, c0), s)
        if reverse:
            hs = hs[::-1]
        return hs

    layer_in = seq
    for dirs in params["lstm"]:
        outs = [run_dir(layer_in, *p, reverse=(d == 1)) for d, p in enumerate(dirs)]
        layer_in = jnp.concatenate(outs, axis=-1)
    out = layer_in.reshape(N, 2 * nfeat)
    return out @ params["w_price"].T + params["b_price"]


if __name__ == "__main__":
    house_size = 8      # "batch" per timestep
    seq_len = 10
    nfeat = 32          # hidden == input feature size (so 4H = 128 lanes)
    num_layers = 2      # exercises both the hid-only and the price kernels
    N = house_size * seq_len

    key = jax.random.PRNGKey(0)
    kx, kp = jax.random.split(key)
    x = jax.random.normal(kx, (N, nfeat), jnp.float32)
    params = init_params(kp, nfeat, num_layers, bidirectional=True)

    fwd = jax.jit(lambda p, xx: lstm_static_forward(p, xx, house_size, nfeat))
    price = jax.block_until_ready(fwd(params, x))

    ref = _ref_forward(params, x, house_size, nfeat)
    assert price.shape == (N, 1)
    assert jnp.allclose(price, ref, atol=1e-4, rtol=1e-4), "mismatch vs reference"

    print("KERNEL_OK")
</pallas_src>

<mosaic_0001>
module attributes {stable_mosaic.version = 11 : i64} {
  func.func @kernel(%arg0: i32, %arg1: memref<80x64xf32, #tpu.memory_space<vmem>>, %arg2: memref<64x256xf32, #tpu.memory_space<vmem>>, %arg3: memref<64x256xf32, #tpu.memory_space<vmem>>, %arg4: memref<1x256xf32, #tpu.memory_space<vmem>>, %arg5: memref<1x64xf32, #tpu.memory_space<vmem>>, %arg6: memref<1x1xf32, #tpu.memory_space<vmem>>, %arg7: memref<80x1xf32, #tpu.memory_space<vmem>>, %arg8: memref<80x256xf32, #tpu.memory_space<vmem>>) attributes {dimension_semantics = [#tpu.dimension_semantics<arbitrary>], iteration_bounds = array<i64: 1>, scalar_prefetch = 0 : i64, scratch_operands = 1 : i64, tpu.core_type = #tpu.core_type<tc>, window_params = [{pipeline_mode = #tpu.pipeline_mode<synchronous>, transform_indices = @transform_0, window_bounds = array<i64: 80, 64>}, {pipeline_mode = #tpu.pipeline_mode<synchronous>, transform_indices = @transform_1, window_bounds = array<i64: 64, 256>}, {pipeline_mode = #tpu.pipeline_mode<synchronous>, transform_indices = @transform_2, window_bounds = array<i64: 64, 256>}, {pipeline_mode = #tpu.pipeline_mode<synchronous>, transform_indices = @transform_3, window_bounds = array<i64: 1, 256>}, {pipeline_mode = #tpu.pipeline_mode<synchronous>, transform_indices = @transform_4, window_bounds = array<i64: 1, 64>}, {pipeline_mode = #tpu.pipeline_mode<synchronous>, transform_indices = @transform_5, window_bounds = array<i64: 1, 1>}, {pipeline_mode = #tpu.pipeline_mode<synchronous>, transform_indices = @transform_6, window_bounds = array<i64: 80, 1>}]} {
    %c0 = arith.constant 0 : index
    %c0_0 = arith.constant 0 : index
    %0 = vector.load %arg1[%c0, %c0_0] : memref<80x64xf32, #tpu.memory_space<vmem>>, vector<80x64xf32>
    %c0_1 = arith.constant 0 : index
    %c0_2 = arith.constant 0 : index
    %1 = vector.load %arg2[%c0_1, %c0_2] : memref<64x256xf32, #tpu.memory_space<vmem>>, vector<64x256xf32>
    %cst = arith.constant dense<0.000000e+00> : vector<80x256xf32>
    %2 = tpu.matmul %0, %1, %cst {dimension_numbers = #tpu.dot_dimension_numbers<[1], [0], [0], [1], [0, 0, 1, 1], [], []>} : vector<80x64xf32>, vector<64x256xf32>, vector<80x256xf32> -> vector<80x256xf32>
    %c0_3 = arith.constant 0 : index
    %c0_4 = arith.constant 0 : index
    %3 = vector.load %arg4[%c0_3, %c0_4] : memref<1x256xf32, #tpu.memory_space<vmem>>, vector<1x256xf32>
    %4 = vector.broadcast %3 : vector<1x256xf32> to vector<80x256xf32>
    %5 = arith.addf %2, %4 : vector<80x256xf32>
    %c0_5 = arith.constant 0 : index
    %c0_6 = arith.constant 0 : index
    %6 = vector.load %arg8[%c0_5, %c0_6] : memref<80x256xf32, #tpu.memory_space<vmem>>, vector<80x256xf32>
    tpu.vector_store %arg8[%c0_5, %c0_6], %5 {strides = array<i32>} : memref<80x256xf32, #tpu.memory_space<vmem>>, vector<80x256xf32>,
    %c0_7 = arith.constant 0 : index
    %c0_8 = arith.constant 0 : index
    %7 = vector.load %arg3[%c0_7, %c0_8] : memref<64x256xf32, #tpu.memory_space<vmem>>, vector<64x256xf32>
    %c0_9 = arith.constant 0 : index
    %c0_10 = arith.constant 0 : index
    %8 = vector.load %arg5[%c0_9, %c0_10] : memref<1x64xf32, #tpu.memory_space<vmem>>, vector<1x32xf32>
    %c0_11 = arith.constant 0 : index
    %c32 = arith.constant 32 : index
    %9 = vector.load %arg5[%c0_11, %c32] : memref<1x64xf32, #tpu.memory_space<vmem>>, vector<1x32xf32>
    %cst_12 = arith.constant 0.000000e+00 : f32
    %10 = vector.broadcast %cst_12 : f32 to vector<80x1xf32>
    %c0_13 = arith.constant 0 : index
    %c0_14 = arith.constant 0 : index
    %11 = vector.load %arg6[%c0_13, %c0_14] : memref<1x1xf32, #tpu.memory_space<vmem>>, vector<1x1xf32>
    %12 = vector.broadcast %11 : vector<1x1xf32> to vector<80x1xf32>
    %13 = arith.addf %10, %12 : vector<80x1xf32>
    %c0_15 = arith.constant 0 : index
    %c0_16 = arith.constant 0 : index
    %14 = vector.load %arg7[%c0_15, %c0_16] : memref<80x1xf32, #tpu.memory_space<vmem>>, vector<80x1xf32>
    tpu.vector_store %arg7[%c0_15, %c0_16], %13 {strides = array<i32>} : memref<80x1xf32, #tpu.memory_space<vmem>>, vector<80x1xf32>,
    %cst_17 = arith.constant 0.000000e+00 : f32
    %15 = vector.broadcast %cst_17 : f32 to vector<8x64xf32>
    %cst_18 = arith.constant 0.000000e+00 : f32
    %16 = vector.broadcast %cst_18 : f32 to vector<8x32xf32>
    %c0_i32 = arith.constant 0 : i32
    %c8_i32 = arith.constant 8 : i32
    %17 = arith.muli %c0_i32, %c8_i32 : i32
    %18 = tpu.assume_multiple %17, 8 : i32
    %c9_i32 = arith.constant 9 : i32
    %19 = arith.subi %c9_i32, %c0_i32 : i32
    %c8_i32_19 = arith.constant 8 : i32
    %20 = arith.muli %19, %c8_i32_19 : i32
    %21 = tpu.assume_multiple %20, 8 : i32
    %cst_20 = arith.constant dense<0.000000e+00> : vector<8x256xf32>
    %22 = tpu.matmul %15, %7, %cst_20 {dimension_numbers = #tpu.dot_dimension_numbers<[1], [0], [0], [1], [0, 0, 1, 1], [], []>} : vector<8x64xf32>, vector<64x256xf32>, vector<8x256xf32> -> vector<8x256xf32>
    %23 = arith.index_cast %18 : i32 to index
    %c0_21 = arith.constant 0 : index
    %24 = vector.load %arg8[%23, %c0_21] : memref<80x256xf32, #tpu.memory_space<vmem>>, vector<8x128xf32>
    %25 = vector.extract_strided_slice %22 {offsets = [0, 0], sizes = [8, 128], strides = [1, 1]} : vector<8x256xf32> to vector<8x128xf32>
    %26 = arith.addf %24, %25 : vector<8x128xf32>
    %27 = arith.index_cast %21 : i32 to index
    %c128 = arith.constant 128 : index
    %28 = vector.load %arg8[%27, %c128] : memref<80x256xf32, #tpu.memory_space<vmem>>, vector<8x128xf32>
    %29 = vector.extract_strided_slice %22 {offsets = [0, 128], sizes = [8, 128], strides = [1, 1]} : vector<8x256xf32> to vector<8x128xf32>
    %30 = arith.addf %28, %29 : vector<8x128xf32>
    %31 = arith.negf %26 : vector<8x128xf32>
    %32 = math.exp %31 : vector<8x128xf32>
    %cst_22 = arith.constant 1.000000e+00 : f32
    %33 = vector.broadcast %cst_22 : f32 to vector<8x128xf32>
    %34 = arith.addf %33, %32 : vector<8x128xf32>
    %35 = arith.divf %33, %34 : vector<8x128xf32>
    %36 = arith.negf %30 : vector<8x128xf32>
    %37 = math.exp %36 : vector<8x128xf32>
    %cst_23 = arith.constant 1.000000e+00 : f32
    %38 = vector.broadcast %cst_23 : f32 to vector<8x128xf32>
    %39 = arith.addf %38, %37 : vector<8x128xf32>
    %40 = arith.divf %38, %39 : vector<8x128xf32>
    %41 = vector.extract_strided_slice %35 {offsets = [0, 32], sizes = [8, 32], strides = [1, 1]} : vector<8x128xf32> to vector<8x32xf32>
    %42 = arith.mulf %41, %16 : vector<8x32xf32>
    %43 = vector.extract_strided_slice %35 {offsets = [0, 0], sizes = [8, 32], strides = [1, 1]} : vector<8x128xf32> to vector<8x32xf32>
    %44 = vector.extract_strided_slice %35 {offsets = [0, 64], sizes = [8, 32], strides = [1, 1]} : vector<8x128xf32> to vector<8x32xf32>
    %cst_24 = arith.constant 2.000000e+00 : f32
    %45 = vector.broadcast %cst_24 : f32 to vector<8x32xf32>
    %46 = arith.mulf %45, %44 : vector<8x32xf32>
    %cst_25 = arith.constant 1.000000e+00 : f32
    %47 = vector.broadcast %cst_25 : f32 to vector<8x32xf32>
    %48 = arith.subf %46, %47 : vector<8x32xf32>
    %49 = arith.mulf %43, %48 : vector<8x32xf32>
    %50 = arith.addf %42, %49 : vector<8x32xf32>
    %51 = vector.extract_strided_slice %40 {offsets = [0, 32], sizes = [8, 32], strides = [1, 1]} : vector<8x128xf32> to vector<8x32xf32>
    %52 = arith.mulf %51, %16 : vector<8x32xf32>
    %53 = vector.extract_strided_slice %40 {offsets = [0, 0], sizes = [8, 32], strides = [1, 1]} : vector<8x128xf32> to vector<8x32xf32>
    %54 = vector.extract_strided_slice %40 {offsets = [0, 64], sizes = [8, 32], strides = [1, 1]} : vector<8x128xf32> to vector<8x32xf32>
    %cst_26 = arith.constant 2.000000e+00 : f32
    %55 = vector.broadcast %cst_26 : f32 to vector<8x32xf32>
    %56 = arith.mulf %55, %54 : vector<8x32xf32>
    %cst_27 = arith.constant 1.000000e+00 : f32
    %57 = vector.broadcast %cst_27 : f32 to vector<8x32xf32>
    %58 = arith.subf %56, %57 : vector<8x32xf32>
    %59 = arith.mulf %53, %58 : vector<8x32xf32>
    %60 = arith.addf %52, %59 : vector<8x32xf32>
    %61 = vector.extract_strided_slice %35 {offsets = [0, 96], sizes = [8, 32], strides = [1, 1]} : vector<8x128xf32> to vector<8x32xf32>
    %62 = math.tanh %50 : vector<8x32xf32>
    %63 = arith.mulf %61, %62 : vector<8x32xf32>
    %64 = vector.extract_strided_slice %40 {offsets = [0, 96], sizes = [8, 32], strides = [1, 1]} : vector<8x128xf32> to vector<8x32xf32>
    %65 = math.tanh %60 : vector<8x32xf32>
    %66 = arith.mulf %64, %65 : vector<8x32xf32>
    %67 = vector.broadcast %8 : vector<1x32xf32> to vector<8x32xf32>
    %68 = arith.mulf %63, %67 : vector<8x32xf32>
    %cst_28 = arith.constant dense<0.000000e+00> : vector<8xf32>
    %69 = vector.multi_reduction <add>, %68, %cst_28 [1] : vector<8x32xf32> to vector<8xf32>
    %70 = vector.shape_cast %69 : vector<8xf32> to vector<8x1xf32>
    %71 = vector.broadcast %9 : vector<1x32xf32> to vector<8x32xf32>
    %72 = arith.mulf %66, %71 : vector<8x32xf32>
    %cst_29 = arith.constant dense<0.000000e+00> : vector<8xf32>
    %73 = vector.multi_reduction <add>, %72, %cst_29 [1] : vector<8x32xf32> to vector<8xf32>
    %74 = vector.shape_cast %73 : vector<8xf32> to vector<8x1xf32>
    %75 = arith.index_cast %18 : i32 to index
    %c0_30 = arith.constant 0 : index
    %76 = vector.load %arg7[%75, %c0_30] : memref<80x1xf32, #tpu.memory_space<vmem>>, vector<8x1xf32>
    %77 = arith.addf %76, %70 : vector<8x1xf32>
    %78 = arith.index_cast %18 : i32 to index
    %c0_31 = arith.constant 0 : index
    %79 = vector.load %arg7[%78, %c0_31] : memref<80x1xf32, #tpu.memory_space<vmem>>, vector<8x1xf32>
    tpu.vector_store %arg7[%78, %c0_31], %77 {strides = array<i32>} : memref<80x1xf32, #tpu.memory_space<vmem>>, vector<8x1xf32>,
    %80 = arith.index_cast %21 : i32 to index
    %c0_32 = arith.constant 0 : index
    %81 = vector.load %arg7[%80, %c0_32] : memref<80x1xf32, #tpu.memory_space<vmem>>, vector<8x1xf32>
    %82 = arith.addf %81, %74 : vector<8x1xf32>
    %83 = arith.index_cast %21 : i32 to index
    %c0_33 = arith.constant 0 : index
    %84 = vector.load %arg7[%83, %c0_33] : memref<80x1xf32, #tpu.memory_space<vmem>>, vector<8x1xf32>
    tpu.vector_store %arg7[%83, %c0_33], %82 {strides = array<i32>} : memref<80x1xf32, #tpu.memory_space<vmem>>, vector<8x1xf32>,
    %85 = tpu.concatenate %63, %66 in 1 : vector<8x32xf32>, vector<8x32xf32> -> vector<8x64xf32>
    %c1_i32 = arith.constant 1 : i32
    %c8_i32_34 = arith.constant 8 : i32
    %86 = arith.muli %c1_i32, %c8_i32_34 : i32
    %87 = tpu.assume_multiple %86, 8 : i32
    %c9_i32_35 = arith.constant 9 : i32
    %88 = arith.subi %c9_i32_35, %c1_i32 : i32
    %c8_i32_36 = arith.constant 8 : i32
    %89 = arith.muli %88, %c8_i32_36 : i32
    %90 = tpu.assume_multiple %89, 8 : i32
    %cst_37 = arith.constant dense<0.000000e+00> : vector<8x256xf32>
    %91 = tpu.matmul %85, %7, %cst_37 {dimension_numbers = #tpu.dot_dimension_numbers<[1], [0], [0], [1], [0, 0, 1, 1], [], []>} : vector<8x64xf32>, vector<64x256xf32>, vector<8x256xf32> -> vector<8x256xf32>
    %92 = arith.index_cast %87 : i32 to index
    %c0_38 = arith.constant 0 : index
    %93 = vector.load %arg8[%92, %c0_38] : memref<80x256xf32, #tpu.memory_space<vmem>>, vector<8x128xf32>
    %94 = vector.extract_strided_slice %91 {offsets = [0, 0], sizes = [8, 128], strides = [1, 1]} : vector<8x256xf32> to vector<8x128xf32>
    %95 = arith.addf %93, %94 : vector<8x128xf32>
    %96 = arith.index_cast %90 : i32 to index
    %c128_39 = arith.constant 128 : index
    %97 = vector.load %arg8[%96, %c128_39] : memref<80x256xf32, #tpu.memory_space<vmem>>, vector<8x128xf32>
    %98 = vector.extract_strided_slice %91 {offsets = [0, 128], sizes = [8, 128], strides = [1, 1]} : vector<8x256xf32> to vector<8x128xf32>
    %99 = arith.addf %97, %98 : vector<8x128xf32>
    %100 = arith.negf %95 : vector<8x128xf32>
    %101 = math.exp %100 : vector<8x128xf32>
    %cst_40 = arith.constant 1.000000e+00 : f32
    %102 = vector.broadcast %cst_40 : f32 to vector<8x128xf32>
    %103 = arith.addf %102, %101 : vector<8x128xf32>
    %104 = arith.divf %102, %103 : vector<8x128xf32>
    %105 = arith.negf %99 : vector<8x128xf32>
    %106 = math.exp %105 : vector<8x128xf32>
    %cst_41 = arith.constant 1.000000e+00 : f32
    %107 = vector.broadcast %cst_41 : f32 to vector<8x128xf32>
    %108 = arith.addf %107, %106 : vector<8x128xf32>
    %109 = arith.divf %107, %108 : vector<8x128xf32>
    %110 = vector.extract_strided_slice %104 {offsets = [0, 32], sizes = [8, 32], strides = [1, 1]} : vector<8x128xf32> to vector<8x32xf32>
    %111 = arith.mulf %110, %50 : vector<8x32xf32>
    %112 = vector.extract_strided_slice %104 {offsets = [0, 0], sizes = [8, 32], strides = [1, 1]} : vector<8x128xf32> to vector<8x32xf32>
    %113 = vector.extract_strided_slice %104 {offsets = [0, 64], sizes = [8, 32], strides = [1, 1]} : vector<8x128xf32> to vector<8x32xf32>
    %cst_42 = arith.constant 2.000000e+00 : f32
    %114 = vector.broadcast %cst_42 : f32 to vector<8x32xf32>
    %115 = arith.mulf %114, %113 : vector<8x32xf32>
    %cst_43 = arith.constant 1.000000e+00 : f32
    %116 = vector.broadcast %cst_43 : f32 to vector<8x32xf32>
    %117 = arith.subf %115, %116 : vector<8x32xf32>
    %118 = arith.mulf %112, %117 : vector<8x32xf32>
    %119 = arith.addf %111, %118 : vector<8x32xf32>
    %120 = vector.extract_strided_slice %109 {offsets = [0, 32], sizes = [8, 32], strides = [1, 1]} : vector<8x128xf32> to vector<8x32xf32>
    %121 = arith.mulf %120, %60 : vector<8x32xf32>
    %122 = vector.extract_strided_slice %109 {offsets = [0, 0], sizes = [8, 32], strides = [1, 1]} : vector<8x128xf32> to vector<8x32xf32>
    %123 = vector.extract_strided_slice %109 {offsets = [0, 64], sizes = [8, 32], strides = [1, 1]} : vector<8x128xf32> to vector<8x32xf32>
    %cst_44 = arith.constant 2.000000e+00 : f32
    %124 = vector.broadcast %cst_44 : f32 to vector<8x32xf32>
    %125 = arith.mulf %124, %123 : vector<8x32xf32>
    %cst_45 = arith.constant 1.000000e+00 : f32
    %126 = vector.broadcast %cst_45 : f32 to vector<8x32xf32>
    %127 = arith.subf %125, %126 : vector<8x32xf32>
    %128 = arith.mulf %122, %127 : vector<8x32xf32>
    %129 = arith.addf %121, %128 : vector<8x32xf32>
    %130 = vector.extract_strided_slice %104 {offsets = [0, 96], sizes = [8, 32], strides = [1, 1]} : vector<8x128xf32> to vector<8x32xf32>
    %131 = math.tanh %119 : vector<8x32xf32>
    %132 = arith.mulf %130, %131 : vector<8x32xf32>
    %133 = vector.extract_strided_slice %109 {offsets = [0, 96], sizes = [8, 32], strides = [1, 1]} : vector<8x128xf32> to vector<8x32xf32>
    %134 = math.tanh %129 : vector<8x32xf32>
    %135 = arith.mulf %133, %134 : vector<8x32xf32>
    %136 = vector.broadcast %8 : vector<1x32xf32> to vector<8x32xf32>
    %137 = arith.mulf %132, %136 : vector<8x32xf32>
    %cst_46 = arith.constant dense<0.000000e+00> : vector<8xf32>
    %138 = vector.multi_reduction <add>, %137, %cst_46 [1] : vector<8x32xf32> to vector<8xf32>
    %139 = vector.shape_cast %138 : vector<8xf32> to vector<8x1xf32>
    %140 = vector.broadcast %9 : vector<1x32xf32> to vector<8x32xf32>
    %141 = arith.mulf %135, %140 : vector<8x32xf32>
    %cst_47 = arith.constant dense<0.000000e+00> : vector<8xf32>
    %142 = vector.multi_reduction <add>, %141, %cst_47 [1] : vector<8x32xf32> to vector<8xf32>
    %143 = vector.shape_cast %142 : vector<8xf32> to vector<8x1xf32>
    %144 = arith.index_cast %87 : i32 to index
    %c0_48 = arith.constant 0 : index
    %145 = vector.load %arg7[%144, %c0_48] : memref<80x1xf32, #tpu.memory_space<vmem>>, vector<8x1xf32>
    %146 = arith.addf %145, %139 : vector<8x1xf32>
    %147 = arith.index_cast %87 : i32 to index
    %c0_49 = arith.constant 0 : index
    %148 = vector.load %arg7[%147, %c0_49] : memref<80x1xf32, #tpu.memory_space<vmem>>, vector<8x1xf32>
    tpu.vector_store %arg7[%147, %c0_49], %146 {strides = array<i32>} : memref<80x1xf32, #tpu.memory_space<vmem>>, vector<8x1xf32>,
    %149 = arith.index_cast %90 : i32 to index
    %c0_50 = arith.constant 0 : index
    %150 = vector.load %arg7[%149, %c0_50] : memref<80x1xf32, #tpu.memory_space<vmem>>, vector<8x1xf32>
    %151 = arith.addf %150, %143 : vector<8x1xf32>
    %152 = arith.index_cast %90 : i32 to index
    %c0_51 = arith.constant 0 : index
    %153 = vector.load %arg7[%152, %c0_51] : memref<80x1xf32, #tpu.memory_space<vmem>>, vector<8x1xf32>
    tpu.vector_store %arg7[%152, %c0_51], %151 {strides = array<i32>} : memref<80x1xf32, #tpu.memory_space<vmem>>, vector<8x1xf32>,
    %154 = tpu.concatenate %132, %135 in 1 : vector<8x32xf32>, vector<8x32xf32> -> vector<8x64xf32>
    %c2_i32 = arith.constant 2 : i32
    %c8_i32_52 = arith.constant 8 : i32
    %155 = arith.muli %c2_i32, %c8_i32_52 : i32
    %156 = tpu.assume_multiple %155, 8 : i32
    %c9_i32_53 = arith.constant 9 : i32
    %157 = arith.subi %c9_i32_53, %c2_i32 : i32
    %c8_i32_54 = arith.constant 8 : i32
    %158 = arith.muli %157, %c8_i32_54 : i32
    %159 = tpu.assume_multiple %158, 8 : i32
    %cst_55 = arith.constant dense<0.000000e+00> : vector<8x256xf32>
    %160 = tpu.matmul %154, %7, %cst_55 {dimension_numbers = #tpu.dot_dimension_numbers<[1], [0], [0], [1], [0, 0, 1, 1], [], []>} : vector<8x64xf32>, vector<64x256xf32>, vector<8x256xf32> -> vector<8x256xf32>
    %161 = arith.index_cast %156 : i32 to index
    %c0_56 = arith.constant 0 : index
    %162 = vector.load %arg8[%161, %c0_56] : memref<80x256xf32, #tpu.memory_space<vmem>>, vector<8x128xf32>
    %163 = vector.extract_strided_slice %160 {offsets = [0, 0], sizes = [8, 128], strides = [1, 1]} : vector<8x256xf32> to vector<8x128xf32>
    %164 = arith.addf %162, %163 : vector<8x128xf32>
    %165 = arith.index_cast %159 : i32 to index
    %c128_57 = arith.constant 128 : index
    %166 = vector.load %arg8[%165, %c128_57] : memref<80x256xf32, #tpu.memory_space<vmem>>, vector<8x128xf32>
    %167 = vector.extract_strided_slice %160 {offsets = [0, 128], sizes = [8, 128], strides = [1, 1]} : vector<8x256xf32> to vector<8x128xf32>
    %168 = arith.addf %166, %167 : vector<8x128xf32>
    %169 = arith.negf %164 : vector<8x128xf32>
    %170 = math.exp %169 : vector<8x128xf32>
    %cst_58 = arith.constant 1.000000e+00 : f32
    %171 = vector.broadcast %cst_58 : f32 to vector<8x128xf32>
    %172 = arith.addf %171, %170 : vector<8x128xf32>
    %173 = arith.divf %171, %172 : vector<8x128xf32>
    %174 = arith.negf %168 : vector<8x128xf32>
    %175 = math.exp %174 : vector<8x128xf32>
    %cst_59 = arith.constant 1.000000e+00 : f32
    %176 = vector.broadcast %cst_59 : f32 to vector<8x128xf32>
    %177 = arith.addf %176, %175 : vector<8x128xf32>
    %178 = arith.divf %176, %177 : vector<8x128xf32>
    %179 = vector.extract_strided_slice %173 {offsets = [0, 32], sizes = [8, 32], strides = [1, 1]} : vector<8x128xf32> to vector<8x32xf32>
    %180 = arith.mulf %179, %119 : vector<8x32xf32>
    %181 = vector.extract_strided_slice %173 {offsets = [0, 0], sizes = [8, 32], strides = [1, 1]} : vector<8x128xf32> to vector<8x32xf32>
    %182 = vector.extract_strided_slice %173 {offsets = [0, 64], sizes = [8, 32], strides = [1, 1]} : vector<8x128xf32> to vector<8x32xf32>
    %cst_60 = arith.constant 2.000000e+00 : f32
    %183 = vector.broadcast %cst_60 : f32 to vector<8x32xf32>
    %184 = arith.mulf %183, %182 : vector<8x32xf32>
    %cst_61 = arith.constant 1.000000e+00 : f32
    %185 = vector.broadcast %cst_61 : f32 to vector<8x32xf32>
    %186 = arith.subf %184, %185 : vector<8x32xf32>
    %187 = arith.mulf %181, %186 : vector<8x32xf32>
    %188 = arith.addf %180, %187 : vector<8x32xf32>
    %189 = vector.extract_strided_slice %178 {offsets = [0, 32], sizes = [8, 32], strides = [1, 1]} : vector<8x128xf32> to vector<8x32xf32>
    %190 = arith.mulf %189, %129 : vector<8x32xf32>
    %191 = vector.extract_strided_slice %178 {offsets = [0, 0], sizes = [8, 32], strides = [1, 1]} : vector<8x128xf32> to vector<8x32xf32>
    %192 = vector.extract_strided_slice %178 {offsets = [0, 64], sizes = [8, 32], strides = [1, 1]} : vector<8x128xf32> to vector<8x32xf32>
    %cst_62 = arith.constant 2.000000e+00 : f32
    %193 = vector.broadcast %cst_62 : f32 to vector<8x32xf32>
    %194 = arith.mulf %193, %192 : vector<8x32xf32>
    %cst_63 = arith.constant 1.000000e+00 : f32
    %195 = vector.broadcast %cst_63 : f32 to vector<8x32xf32>
    %196 = arith.subf %194, %195 : vector<8x32xf32>
    %197 = arith.mulf %191, %196 : vector<8x32xf32>
    %198 = arith.addf %190, %197 : vector<8x32xf32>
    %199 = vector.extract_strided_slice %173 {offsets = [0, 96], sizes = [8, 32], strides = [1, 1]} : vector<8x128xf32> to vector<8x32xf32>
    %200 = math.tanh %188 : vector<8x32xf32>
    %201 = arith.mulf %199, %200 : vector<8x32xf32>
    %202 = vector.extract_strided_slice %178 {offsets = [0, 96], sizes = [8, 32], strides = [1, 1]} : vector<8x128xf32> to vector<8x32xf32>
    %203 = math.tanh %198 : vector<8x32xf32>
    %204 = arith.mulf %202, %203 : vector<8x32xf32>
    %205 = vector.broadcast %8 : vector<1x32xf32> to vector<8x32xf32>
    %206 = arith.mulf %201, %205 : vector<8x32xf32>
    %cst_64 = arith.constant dense<0.000000e+00> : vector<8xf32>
    %207 = vector.multi_reduction <add>, %206, %cst_64 [1] : vector<8x32xf32> to vector<8xf32>
    %208 = vector.shape_cast %207 : vector<8xf32> to vector<8x1xf32>
    %209 = vector.broadcast %9 : vector<1x32xf32> to vector<8x32xf32>
    %210 = arith.mulf %204, %209 : vector<8x32xf32>
    %cst_65 = arith.constant dense<0.000000e+00> : vector<8xf32>
    %211 = vector.multi_reduction <add>, %210, %cst_65 [1] : vector<8x32xf32> to vector<8xf32>
    %212 = vector.shape_cast %211 : vector<8xf32> to vector<8x1xf32>
    %213 = arith.index_cast %156 : i32 to index
    %c0_66 = arith.constant 0 : index
    %214 = vector.load %arg7[%213, %c0_66] : memref<80x1xf32, #tpu.memory_space<vmem>>, vector<8x1xf32>
    %215 = arith.addf %214, %208 : vector<8x1xf32>
    %216 = arith.index_cast %156 : i32 to index
    %c0_67 = arith.constant 0 : index
    %217 = vector.load %arg7[%216, %c0_67] : memref<80x1xf32, #tpu.memory_space<vmem>>, vector<8x1xf32>
    tpu.vector_store %arg7[%216, %c0_67], %215 {strides = array<i32>} : memref<80x1xf32, #tpu.memory_space<vmem>>, vector<8x1xf32>,
    %218 = arith.index_cast %159 : i32 to index
    %c0_68 = arith.constant 0 : index
    %219 = vector.load %arg7[%218, %c0_68] : memref<80x1xf32, #tpu.memory_space<vmem>>, vector<8x1xf32>
    %220 = arith.addf %219, %212 : vector<8x1xf32>
    %221 = arith.index_cast %159 : i32 to index
    %c0_69 = arith.constant 0 : index
    %222 = vector.load %arg7[%221, %c0_69] : memref<80x1xf32, #tpu.memory_space<vmem>>, vector<8x1xf32>
    tpu.vector_store %arg7[%221, %c0_69], %220 {strides = array<i32>} : memref<80x1xf32, #tpu.memory_space<vmem>>, vector<8x1xf32>,
    %223 = tpu.concatenate %201, %204 in 1 : vector<8x32xf32>, vector<8x32xf32> -> vector<8x64xf32>
    %c3_i32 = arith.constant 3 : i32
    %c8_i32_70 = arith.constant 8 : i32
    %224 = arith.muli %c3_i32, %c8_i32_70 : i32
    %225 = tpu.assume_multiple %224, 8 : i32
    %c9_i32_71 = arith.constant 9 : i32
    %226 = arith.subi %c9_i32_71, %c3_i32 : i32
    %c8_i32_72 = arith.constant 8 : i32
    %227 = arith.muli %226, %c8_i32_72 : i32
    %228 = tpu.assume_multiple %227, 8 : i32
    %cst_73 = arith.constant dense<0.000000e+00> : vector<8x256xf32>
    %229 = tpu.matmul %223, %7, %cst_73 {dimension_numbers = #tpu.dot_dimension_numbers<[1], [0], [0], [1], [0, 0, 1, 1], [], []>} : vector<8x64xf32>, vector<64x256xf32>, vector<8x256xf32> -> vector<8x256xf32>
    %230 = arith.index_cast %225 : i32 to index
    %c0_74 = arith.constant 0 : index
    %231 = vector.load %arg8[%230, %c0_74] : memref<80x256xf32, #tpu.memory_space<vmem>>, vector<8x128xf32>
    %232 = vector.extract_strided_slice %229 {offsets = [0, 0], sizes = [8, 128], strides = [1, 1]} : vector<8x256xf32> to vector<8x128xf32>
    %233 = arith.addf %231, %232 : vector<8x128xf32>
    %234 = arith.index_cast %228 : i32 to index
    %c128_75 = arith.constant 128 : index
    %235 = vector.load %arg8[%234, %c128_75] : memref<80x256xf32, #tpu.memory_space<vmem>>, vector<8x128xf32>
    %236 = vector.extract_strided_slice %229 {offsets = [0, 128], sizes = [8, 128], strides = [1, 1]} : vector<8x256xf32> to vector<8x128xf32>
    %237 = arith.addf %235, %236 : vector<8x128xf32>
    %238 = arith.negf %233 : vector<8x128xf32>
    %239 = math.exp %238 : vector<8x128xf32>
    %cst_76 = arith.constant 1.000000e+00 : f32
    %240 = vector.broadcast %cst_76 : f32 to vector<8x128xf32>
    %241 = arith.addf %240, %239 : vector<8x128xf32>
    %242 = arith.divf %240, %241 : vector<8x128xf32>
    %243 = arith.negf %237 : vector<8x128xf32>
    %244 = math.exp %243 : vector<8x128xf32>
    %cst_77 = arith.constant 1.000000e+00 : f32
    %245 = vector.broadcast %cst_77 : f32 to vector<8x128xf32>
    %246 = arith.addf %245, %244 : vector<8x128xf32>
    %247 = arith.divf %245, %246 : vector<8x128xf32>
    %248 = vector.extract_strided_slice %242 {offsets = [0, 32], sizes = [8, 32], strides = [1, 1]} : vector<8x128xf32> to vector<8x32xf32>
    %249 = arith.mulf %248, %188 : vector<8x32xf32>
    %250 = vector.extract_strided_slice %242 {offsets = [0, 0], sizes = [8, 32], strides = [1, 1]} : vector<8x128xf32> to vector<8x32xf32>
    %251 = vector.extract_strided_slice %242 {offsets = [0, 64], sizes = [8, 32], strides = [1, 1]} : vector<8x128xf32> to vector<8x32xf32>
    %cst_78 = arith.constant 2.000000e+00 : f32
    %252 = vector.broadcast %cst_78 : f32 to vector<8x32xf32>
    %253 = arith.mulf %252, %251 : vector<8x32xf32>
    %cst_79 = arith.constant 1.000000e+00 : f32
    %254 = vector.broadcast %cst_79 : f32 to vector<8x32xf32>
    %255 = arith.subf %253, %254 : vector<8x32xf32>
    %256 = arith.mulf %250, %255 : vector<8x32xf32>
    %257 = arith.addf %249, %256 : vector<8x32xf32>
    %258 = vector.extract_strided_slice %247 {offsets = [0, 32], sizes = [8, 32], strides = [1, 1]} : vector<8x128xf32> to vector<8x32xf32>
    %259 = arith.mulf %258, %198 : vector<8x32xf32>
    %260 = vector.extract_strided_slice %247 {offsets = [0, 0], sizes = [8, 32], strides = [1, 1]} : vector<8x128xf32> to vector<8x32xf32>
    %261 = vector.extract_strided_slice %247 {offsets = [0, 64], sizes = [8, 32], strides = [1, 1]} : vector<8x128xf32> to vector<8x32xf32>
    %cst_80 = arith.constant 2.000000e+00 : f32
    %262 = vector.broadcast %cst_80 : f32 to vector<8x32xf32>
    %263 = arith.mulf %262, %261 : vector<8x32xf32>
    %cst_81 = arith.constant 1.000000e+00 : f32
    %264 = vector.broadcast %cst_81 : f32 to vector<8x32xf32>
    %265 = arith.subf %263, %264 : vector<8x32xf32>
    %266 = arith.mulf %260, %265 : vector<8x32xf32>
    %267 = arith.addf %259, %266 : vector<8x32xf32>
    %268 = vector.extract_strided_slice %242 {offsets = [0, 96], sizes = [8, 32], strides = [1, 1]} : vector<8x128xf32> to vector<8x32xf32>
    %269 = math.tanh %257 : vector<8x32xf32>
    %270 = arith.mulf %268, %269 : vector<8x32xf32>
    %271 = vector.extract_strided_slice %247 {offsets = [0, 96], sizes = [8, 32], strides = [1, 1]} : vector<8x128xf32> to vector<8x32xf32>
    %272 = math.tanh %267 : vector<8x32xf32>
    %273 = arith.mulf %271, %272 : vector<8x32xf32>
    %274 = vector.broadcast %8 : vector<1x32xf32> to vector<8x32xf32>
    %275 = arith.mulf %270, %274 : vector<8x32xf32>
    %cst_82 = arith.constant dense<0.000000e+00> : vector<8xf32>
    %276 = vector.multi_reduction <add>, %275, %cst_82 [1] : vector<8x32xf32> to vector<8xf32>
    %277 = vector.shape_cast %276 : vector<8xf32> to vector<8x1xf32>
    %278 = vector.broadcast %9 : vector<1x32xf32> to vector<8x32xf32>
    %279 = arith.mulf %273, %278 : vector<8x32xf32>
    %cst_83 = arith.constant dense<0.000000e+00> : vector<8xf32>
    %280 = vector.multi_reduction <add>, %279, %cst_83 [1] : vector<8x32xf32> to vector<8xf32>
    %281 = vector.shape_cast %280 : vector<8xf32> to vector<8x1xf32>
    %282 = arith.index_cast %225 : i32 to index
    %c0_84 = arith.constant 0 : index
    %283 = vector.load %arg7[%282, %c0_84] : memref<80x1xf32, #tpu.memory_space<vmem>>, vector<8x1xf32>
    %284 = arith.addf %283, %277 : vector<8x1xf32>
    %285 = arith.index_cast %225 : i32 to index
    %c0_85 = arith.constant 0 : index
    %286 = vector.load %arg7[%285, %c0_85] : memref<80x1xf32, #tpu.memory_space<vmem>>, vector<8x1xf32>
    tpu.vector_store %arg7[%285, %c0_85], %284 {strides = array<i32>} : memref<80x1xf32, #tpu.memory_space<vmem>>, vector<8x1xf32>,
    %287 = arith.index_cast %228 : i32 to index
    %c0_86 = arith.constant 0 : index
    %288 = vector.load %arg7[%287, %c0_86] : memref<80x1xf32, #tpu.memory_space<vmem>>, vector<8x1xf32>
    %289 = arith.addf %288, %281 : vector<8x1xf32>
    %290 = arith.index_cast %228 : i32 to index
    %c0_87 = arith.constant 0 : index
    %291 = vector.load %arg7[%290, %c0_87] : memref<80x1xf32, #tpu.memory_space<vmem>>, vector<8x1xf32>
    tpu.vector_store %arg7[%290, %c0_87], %289 {strides = array<i32>} : memref<80x1xf32, #tpu.memory_space<vmem>>, vector<8x1xf32>,
    %292 = tpu.concatenate %270, %273 in 1 : vector<8x32xf32>, vector<8x32xf32> -> vector<8x64xf32>
    %c4_i32 = arith.constant 4 : i32
    %c8_i32_88 = arith.constant 8 : i32
    %293 = arith.muli %c4_i32, %c8_i32_88 : i32
    %294 = tpu.assume_multiple %293, 8 : i32
    %c9_i32_89 = arith.constant 9 : i32
    %295 = arith.subi %c9_i32_89, %c4_i32 : i32
    %c8_i32_90 = arith.constant 8 : i32
    %296 = arith.muli %295, %c8_i32_90 : i32
    %297 = tpu.assume_multiple %296, 8 : i32
    %cst_91 = arith.constant dense<0.000000e+00> : vector<8x256xf32>
    %298 = tpu.matmul %292, %7, %cst_91 {dimension_numbers = #tpu.dot_dimension_numbers<[1], [0], [0], [1], [0, 0, 1, 1], [], []>} : vector<8x64xf32>, vector<64x256xf32>, vector<8x256xf32> -> vector<8x256xf32>
    %299 = arith.index_cast %294 : i32 to index
    %c0_92 = arith.constant 0 : index
    %300 = vector.load %arg8[%299, %c0_92] : memref<80x256xf32, #tpu.memory_space<vmem>>, vector<8x128xf32>
    %301 = vector.extract_strided_slice %298 {offsets = [0, 0], sizes = [8, 128], strides = [1, 1]} : vector<8x256xf32> to vector<8x128xf32>
    %302 = arith.addf %300, %301 : vector<8x128xf32>
    %303 = arith.index_cast %297 : i32 to index
    %c128_93 = arith.constant 128 : index
    %304 = vector.load %arg8[%303, %c128_93] : memref<80x256xf32, #tpu.memory_space<vmem>>, vector<8x128xf32>
    %305 = vector.extract_strided_slice %298 {offsets = [0, 128], sizes = [8, 128], strides = [1, 1]} : vector<8x256xf32> to vector<8x128xf32>
    %306 = arith.addf %304, %305 : vector<8x128xf32>
    %307 = arith.negf %302 : vector<8x128xf32>
    %308 = math.exp %307 : vector<8x128xf32>
    %cst_94 = arith.constant 1.000000e+00 : f32
    %309 = vector.broadcast %cst_94 : f32 to vector<8x128xf32>
    %310 = arith.addf %309, %308 : vector<8x128xf32>
    %311 = arith.divf %309, %310 : vector<8x128xf32>
    %312 = arith.negf %306 : vector<8x128xf32>
    %313 = math.exp %312 : vector<8x128xf32>
    %cst_95 = arith.constant 1.000000e+00 : f32
    %314 = vector.broadcast %cst_95 : f32 to vector<8x128xf32>
    %315 = arith.addf %314, %313 : vector<8x128xf32>
    %316 = arith.divf %314, %315 : vector<8x128xf32>
    %317 = vector.extract_strided_slice %311 {offsets = [0, 32], sizes = [8, 32], strides = [1, 1]} : vector<8x128xf32> to vector<8x32xf32>
    %318 = arith.mulf %317, %257 : vector<8x32xf32>
    %319 = vector.extract_strided_slice %311 {offsets = [0, 0], sizes = [8, 32], strides = [1, 1]} : vector<8x128xf32> to vector<8x32xf32>
    %320 = vector.extract_strided_slice %311 {offsets = [0, 64], sizes = [8, 32], strides = [1, 1]} : vector<8x128xf32> to vector<8x32xf32>
    %cst_96 = arith.constant 2.000000e+00 : f32
    %321 = vector.broadcast %cst_96 : f32 to vector<8x32xf32>
    %322 = arith.mulf %321, %320 : vector<8x32xf32>
    %cst_97 = arith.constant 1.000000e+00 : f32
    %323 = vector.broadcast %cst_97 : f32 to vector<8x32xf32>
    %324 = arith.subf %322, %323 : vector<8x32xf32>
    %325 = arith.mulf %319, %324 : vector<8x32xf32>
    %326 = arith.addf %318, %325 : vector<8x32xf32>
    %327 = vector.extract_strided_slice %316 {offsets = [0, 32], sizes = [8, 32], strides = [1, 1]} : vector<8x128xf32> to vector<8x32xf32>
    %328 = arith.mulf %327, %267 : vector<8x32xf32>
    %329 = vector.extract_strided_slice %316 {offsets = [0, 0], sizes = [8, 32], strides = [1, 1]} : vector<8x128xf32> to vector<8x32xf32>
    %330 = vector.extract_strided_slice %316 {offsets = [0, 64], sizes = [8, 32], strides = [1, 1]} : vector<8x128xf32> to vector<8x32xf32>
    %cst_98 = arith.constant 2.000000e+00 : f32
    %331 = vector.broadcast %cst_98 : f32 to vector<8x32xf32>
    %332 = arith.mulf %331, %330 : vector<8x32xf32>
    %cst_99 = arith.constant 1.000000e+00 : f32
    %333 = vector.broadcast %cst_99 : f32 to vector<8x32xf32>
    %334 = arith.subf %332, %333 : vector<8x32xf32>
    %335 = arith.mulf %329, %334 : vector<8x32xf32>
    %336 = arith.addf %328, %335 : vector<8x32xf32>
    %337 = vector.extract_strided_slice %311 {offsets = [0, 96], sizes = [8, 32], strides = [1, 1]} : vector<8x128xf32> to vector<8x32xf32>
    %338 = math.tanh %326 : vector<8x32xf32>
    %339 = arith.mulf %337, %338 : vector<8x32xf32>
    %340 = vector.extract_strided_slice %316 {offsets = [0, 96], sizes = [8, 32], strides = [1, 1]} : vector<8x128xf32> to vector<8x32xf32>
    %341 = math.tanh %336 : vector<8x32xf32>
    %342 = arith.mulf %340, %341 : vector<8x32xf32>
    %343 = vector.broadcast %8 : vector<1x32xf32> to vector<8x32xf32>
    %344 = arith.mulf %339, %343 : vector<8x32xf32>
    %cst_100 = arith.constant dense<0.000000e+00> : vector<8xf32>
    %345 = vector.multi_reduction <add>, %344, %cst_100 [1] : vector<8x32xf32> to vector<8xf32>
    %346 = vector.shape_cast %345 : vector<8xf32> to vector<8x1xf32>
    %347 = vector.broadcast %9 : vector<1x32xf32> to vector<8x32xf32>
    %348 = arith.mulf %342, %347 : vector<8x32xf32>
    %cst_101 = arith.constant dense<0.000000e+00> : vector<8xf32>
    %349 = vector.multi_reduction <add>, %348, %cst_101 [1] : vector<8x32xf32> to vector<8xf32>
    %350 = vector.shape_cast %349 : vector<8xf32> to vector<8x1xf32>
    %351 = arith.index_cast %294 : i32 to index
    %c0_102 = arith.constant 0 : index
    %352 = vector.load %arg7[%351, %c0_102] : memref<80x1xf32, #tpu.memory_space<vmem>>, vector<8x1xf32>
    %353 = arith.addf %352, %346 : vector<8x1xf32>
    %354 = arith.index_cast %294 : i32 to index
    %c0_103 = arith.constant 0 : index
    %355 = vector.load %arg7[%354, %c0_103] : memref<80x1xf32, #tpu.memory_space<vmem>>, vector<8x1xf32>
    tpu.vector_store %arg7[%354, %c0_103], %353 {strides = array<i32>} : memref<80x1xf32, #tpu.memory_space<vmem>>, vector<8x1xf32>,
    %356 = arith.index_cast %297 : i32 to index
    %c0_104 = arith.constant 0 : index
    %357 = vector.load %arg7[%356, %c0_104] : memref<80x1xf32, #tpu.memory_space<vmem>>, vector<8x1xf32>
    %358 = arith.addf %357, %350 : vector<8x1xf32>
    %359 = arith.index_cast %297 : i32 to index
    %c0_105 = arith.constant 0 : index
    %360 = vector.load %arg7[%359, %c0_105] : memref<80x1xf32, #tpu.memory_space<vmem>>, vector<8x1xf32>
    tpu.vector_store %arg7[%359, %c0_105], %358 {strides = array<i32>} : memref<80x1xf32, #tpu.memory_space<vmem>>, vector<8x1xf32>,
    %361 = tpu.concatenate %339, %342 in 1 : vector<8x32xf32>, vector<8x32xf32> -> vector<8x64xf32>
    %c5_i32 = arith.constant 5 : i32
    %c8_i32_106 = arith.constant 8 : i32
    %362 = arith.muli %c5_i32, %c8_i32_106 : i32
    %363 = tpu.assume_multiple %362, 8 : i32
    %c9_i32_107 = arith.constant 9 : i32
    %364 = arith.subi %c9_i32_107, %c5_i32 : i32
    %c8_i32_108 = arith.constant 8 : i32
    %365 = arith.muli %364, %c8_i32_108 : i32
    %366 = tpu.assume_multiple %365, 8 : i32
    %cst_109 = arith.constant dense<0.000000e+00> : vector<8x256xf32>
    %367 = tpu.matmul %361, %7, %cst_109 {dimension_numbers = #tpu.dot_dimension_numbers<[1], [0], [0], [1], [0, 0, 1, 1], [], []>} : vector<8x64xf32>, vector<64x256xf32>, vector<8x256xf32> -> vector<8x256xf32>
    %368 = arith.index_cast %363 : i32 to index
    %c0_110 = arith.constant 0 : index
    %369 = vector.load %arg8[%368, %c0_110] : memref<80x256xf32, #tpu.memory_space<vmem>>, vector<8x128xf32>
    %370 = vector.extract_strided_slice %367 {offsets = [0, 0], sizes = [8, 128], strides = [1, 1]} : vector<8x256xf32> to vector<8x128xf32>
    %371 = arith.addf %369, %370 : vector<8x128xf32>
    %372 = arith.index_cast %366 : i32 to index
    %c128_111 = arith.constant 128 : index
    %373 = vector.load %arg8[%372, %c128_111] : memref<80x256xf32, #tpu.memory_space<vmem>>, vector<8x128xf32>
    %374 = vector.extract_strided_slice %367 {offsets = [0, 128], sizes = [8, 128], strides = [1, 1]} : vector<8x256xf32> to vector<8x128xf32>
    %375 = arith.addf %373, %374 : vector<8x128xf32>
    %376 = arith.negf %371 : vector<8x128xf32>
    %377 = math.exp %376 : vector<8x128xf32>
    %cst_112 = arith.constant 1.000000e+00 : f32
    %378 = vector.broadcast %cst_112 : f32 to vector<8x128xf32>
    %379 = arith.addf %378, %377 : vector<8x128xf32>
    %380 = arith.divf %378, %379 : vector<8x128xf32>
    %381 = arith.negf %375 : vector<8x128xf32>
    %382 = math.exp %381 : vector<8x128xf32>
    %cst_113 = arith.constant 1.000000e+00 : f32
    %383 = vector.broadcast %cst_113 : f32 to vector<8x128xf32>
    %384 = arith.addf %383, %382 : vector<8x128xf32>
    %385 = arith.divf %383, %384 : vector<8x128xf32>
    %386 = vector.extract_strided_slice %380 {offsets = [0, 32], sizes = [8, 32], strides = [1, 1]} : vector<8x128xf32> to vector<8x32xf32>
    %387 = arith.mulf %386, %326 : vector<8x32xf32>
    %388 = vector.extract_strided_slice %380 {offsets = [0, 0], sizes = [8, 32], strides = [1, 1]} : vector<8x128xf32> to vector<8x32xf32>
    %389 = vector.extract_strided_slice %380 {offsets = [0, 64], sizes = [8, 32], strides = [1, 1]} : vector<8x128xf32> to vector<8x32xf32>
    %cst_114 = arith.constant 2.000000e+00 : f32
    %390 = vector.broadcast %cst_114 : f32 to vector<8x32xf32>
    %391 = arith.mulf %390, %389 : vector<8x32xf32>
    %cst_115 = arith.constant 1.000000e+00 : f32
    %392 = vector.broadcast %cst_115 : f32 to vector<8x32xf32>
    %393 = arith.subf %391, %392 : vector<8x32xf32>
    %394 = arith.mulf %388, %393 : vector<8x32xf32>
    %395 = arith.addf %387, %394 : vector<8x32xf32>
    %396 = vector.extract_strided_slice %385 {offsets = [0, 32], sizes = [8, 32], strides = [1, 1]} : vector<8x128xf32> to vector<8x32xf32>
    %397 = arith.mulf %396, %336 : vector<8x32xf32>
    %398 = vector.extract_strided_slice %385 {offsets = [0, 0], sizes = [8, 32], strides = [1, 1]} : vector<8x128xf32> to vector<8x32xf32>
    %399 = vector.extract_strided_slice %385 {offsets = [0, 64], sizes = [8, 32], strides = [1, 1]} : vector<8x128xf32> to vector<8x32xf32>
    %cst_116 = arith.constant 2.000000e+00 : f32
    %400 = vector.broadcast %cst_116 : f32 to vector<8x32xf32>
    %401 = arith.mulf %400, %399 : vector<8x32xf32>
    %cst_117 = arith.constant 1.000000e+00 : f32
    %402 = vector.broadcast %cst_117 : f32 to vector<8x32xf32>
    %403 = arith.subf %401, %402 : vector<8x32xf32>
    %404 = arith.mulf %398, %403 : vector<8x32xf32>
    %405 = arith.addf %397, %404 : vector<8x32xf32>
    %406 = vector.extract_strided_slice %380 {offsets = [0, 96], sizes = [8, 32], strides = [1, 1]} : vector<8x128xf32> to vector<8x32xf32>
    %407 = math.tanh %395 : vector<8x32xf32>
    %408 = arith.mulf %406, %407 : vector<8x32xf32>
    %409 = vector.extract_strided_slice %385 {offsets = [0, 96], sizes = [8, 32], strides = [1, 1]} : vector<8x128xf32> to vector<8x32xf32>
    %410 = math.tanh %405 : vector<8x32xf32>
    %411 = arith.mulf %409, %410 : vector<8x32xf32>
    %412 = vector.broadcast %8 : vector<1x32xf32> to vector<8x32xf32>
    %413 = arith.mulf %408, %412 : vector<8x32xf32>
    %cst_118 = arith.constant dense<0.000000e+00> : vector<8xf32>
    %414 = vector.multi_reduction <add>, %413, %cst_118 [1] : vector<8x32xf32> to vector<8xf32>
    %415 = vector.shape_cast %414 : vector<8xf32> to vector<8x1xf32>
    %416 = vector.broadcast %9 : vector<1x32xf32> to vector<8x32xf32>
    %417 = arith.mulf %411, %416 : vector<8x32xf32>
    %cst_119 = arith.constant dense<0.000000e+00> : vector<8xf32>
    %418 = vector.multi_reduction <add>, %417, %cst_119 [1] : vector<8x32xf32> to vector<8xf32>
    %419 = vector.shape_cast %418 : vector<8xf32> to vector<8x1xf32>
    %420 = arith.index_cast %363 : i32 to index
    %c0_120 = arith.constant 0 : index
    %421 = vector.load %arg7[%420, %c0_120] : memref<80x1xf32, #tpu.memory_space<vmem>>, vector<8x1xf32>
    %422 = arith.addf %421, %415 : vector<8x1xf32>
    %423 = arith.index_cast %363 : i32 to index
    %c0_121 = arith.constant 0 : index
    %424 = vector.load %arg7[%423, %c0_121] : memref<80x1xf32, #tpu.memory_space<vmem>>, vector<8x1xf32>
    tpu.vector_store %arg7[%423, %c0_121], %422 {strides = array<i32>} : memref<80x1xf32, #tpu.memory_space<vmem>>, vector<8x1xf32>,
    %425 = arith.index_cast %366 : i32 to index
    %c0_122 = arith.constant 0 : index
    %426 = vector.load %arg7[%425, %c0_122] : memref<80x1xf32, #tpu.memory_space<vmem>>, vector<8x1xf32>
    %427 = arith.addf %426, %419 : vector<8x1xf32>
    %428 = arith.index_cast %366 : i32 to index
    %c0_123 = arith.constant 0 : index
    %429 = vector.load %arg7[%428, %c0_123] : memref<80x1xf32, #tpu.memory_space<vmem>>, vector<8x1xf32>
    tpu.vector_store %arg7[%428, %c0_123], %427 {strides = array<i32>} : memref<80x1xf32, #tpu.memory_space<vmem>>, vector<8x1xf32>,
    %430 = tpu.concatenate %408, %411 in 1 : vector<8x32xf32>, vector<8x32xf32> -> vector<8x64xf32>
    %c6_i32 = arith.constant 6 : i32
    %c8_i32_124 = arith.constant 8 : i32
    %431 = arith.muli %c6_i32, %c8_i32_124 : i32
    %432 = tpu.assume_multiple %431, 8 : i32
    %c9_i32_125 = arith.constant 9 : i32
    %433 = arith.subi %c9_i32_125, %c6_i32 : i32
    %c8_i32_126 = arith.constant 8 : i32
    %434 = arith.muli %433, %c8_i32_126 : i32
    %435 = tpu.assume_multiple %434, 8 : i32
    %cst_127 = arith.constant dense<0.000000e+00> : vector<8x256xf32>
    %436 = tpu.matmul %430, %7, %cst_127 {dimension_numbers = #tpu.dot_dimension_numbers<[1], [0], [0], [1], [0, 0, 1, 1], [], []>} : vector<8x64xf32>, vector<64x256xf32>, vector<8x256xf32> -> vector<8x256xf32>
    %437 = arith.index_cast %432 : i32 to index
    %c0_128 = arith.constant 0 : index
    %438 = vector.load %arg8[%437, %c0_128] : memref<80x256xf32, #tpu.memory_space<vmem>>, vector<8x128xf32>
    %439 = vector.extract_strided_slice %436 {offsets = [0, 0], sizes = [8, 128], strides = [1, 1]} : vector<8x256xf32> to vector<8x128xf32>
    %440 = arith.addf %438, %439 : vector<8x128xf32>
    %441 = arith.index_cast %435 : i32 to index
    %c128_129 = arith.constant 128 : index
    %442 = vector.load %arg8[%441, %c128_129] : memref<80x256xf32, #tpu.memory_space<vmem>>, vector<8x128xf32>
    %443 = vector.extract_strided_slice %436 {offsets = [0, 128], sizes = [8, 128], strides = [1, 1]} : vector<8x256xf32> to vector<8x128xf32>
    %444 = arith.addf %442, %443 : vector<8x128xf32>
    %445 = arith.negf %440 : vector<8x128xf32>
    %446 = math.exp %445 : vector<8x128xf32>
    %cst_130 = arith.constant 1.000000e+00 : f32
    %447 = vector.broadcast %cst_130 : f32 to vector<8x128xf32>
    %448 = arith.addf %447, %446 : vector<8x128xf32>
    %449 = arith.divf %447, %448 : vector<8x128xf32>
    %450 = arith.negf %444 : vector<8x128xf32>
    %451 = math.exp %450 : vector<8x128xf32>
    %cst_131 = arith.constant 1.000000e+00 : f32
    %452 = vector.broadcast %cst_131 : f32 to vector<8x128xf32>
    %453 = arith.addf %452, %451 : vector<8x128xf32>
    %454 = arith.divf %452, %453 : vector<8x128xf32>
    %455 = vector.extract_strided_slice %449 {offsets = [0, 32], sizes = [8, 32], strides = [1, 1]} : vector<8x128xf32> to vector<8x32xf32>
    %456 = arith.mulf %455, %395 : vector<8x32xf32>
    %457 = vector.extract_strided_slice %449 {offsets = [0, 0], sizes = [8, 32], strides = [1, 1]} : vector<8x128xf32> to vector<8x32xf32>
    %458 = vector.extract_strided_slice %449 {offsets = [0, 64], sizes = [8, 32], strides = [1, 1]} : vector<8x128xf32> to vector<8x32xf32>
    %cst_132 = arith.constant 2.000000e+00 : f32
    %459 = vector.broadcast %cst_132 : f32 to vector<8x32xf32>
    %460 = arith.mulf %459, %458 : vector<8x32xf32>
    %cst_133 = arith.constant 1.000000e+00 : f32
    %461 = vector.broadcast %cst_133 : f32 to vector<8x32xf32>
    %462 = arith.subf %460, %461 : vector<8x32xf32>
    %463 = arith.mulf %457, %462 : vector<8x32xf32>
    %464 = arith.addf %456, %463 : vector<8x32xf32>
    %465 = vector.extract_strided_slice %454 {offsets = [0, 32], sizes = [8, 32], strides = [1, 1]} : vector<8x128xf32> to vector<8x32xf32>
    %466 = arith.mulf %465, %405 : vector<8x32xf32>
    %467 = vector.extract_strided_slice %454 {offsets = [0, 0], sizes = [8, 32], strides = [1, 1]} : vector<8x128xf32> to vector<8x32xf32>
    %468 = vector.extract_strided_slice %454 {offsets = [0, 64], sizes = [8, 32], strides = [1, 1]} : vector<8x128xf32> to vector<8x32xf32>
    %cst_134 = arith.constant 2.000000e+00 : f32
    %469 = vector.broadcast %cst_134 : f32 to vector<8x32xf32>
    %470 = arith.mulf %469, %468 : vector<8x32xf32>
    %cst_135 = arith.constant 1.000000e+00 : f32
    %471 = vector.broadcast %cst_135 : f32 to vector<8x32xf32>
    %472 = arith.subf %470, %471 : vector<8x32xf32>
    %473 = arith.mulf %467, %472 : vector<8x32xf32>
    %474 = arith.addf %466, %473 : vector<8x32xf32>
    %475 = vector.extract_strided_slice %449 {offsets = [0, 96], sizes = [8, 32], strides = [1, 1]} : vector<8x128xf32> to vector<8x32xf32>
    %476 = math.tanh %464 : vector<8x32xf32>
    %477 = arith.mulf %475, %476 : vector<8x32xf32>
    %478 = vector.extract_strided_slice %454 {offsets = [0, 96], sizes = [8, 32], strides = [1, 1]} : vector<8x128xf32> to vector<8x32xf32>
    %479 = math.tanh %474 : vector<8x32xf32>
    %480 = arith.mulf %478, %479 : vector<8x32xf32>
    %481 = vector.broadcast %8 : vector<1x32xf32> to vector<8x32xf32>
    %482 = arith.mulf %477, %481 : vector<8x32xf32>
    %cst_136 = arith.constant dense<0.000000e+00> : vector<8xf32>
    %483 = vector.multi_reduction <add>, %482, %cst_136 [1] : vector<8x32xf32> to vector<8xf32>
    %484 = vector.shape_cast %483 : vector<8xf32> to vector<8x1xf32>
    %485 = vector.broadcast %9 : vector<1x32xf32> to vector<8x32xf32>
    %486 = arith.mulf %480, %485 : vector<8x32xf32>
    %cst_137 = arith.constant dense<0.000000e+00> : vector<8xf32>
    %487 = vector.multi_reduction <add>, %486, %cst_137 [1] : vector<8x32xf32> to vector<8xf32>
    %488 = vector.shape_cast %487 : vector<8xf32> to vector<8x1xf32>
    %489 = arith.index_cast %432 : i32 to index
    %c0_138 = arith.constant 0 : index
    %490 = vector.load %arg7[%489, %c0_138] : memref<80x1xf32, #tpu.memory_space<vmem>>, vector<8x1xf32>
    %491 = arith.addf %490, %484 : vector<8x1xf32>
    %492 = arith.index_cast %432 : i32 to index
    %c0_139 = arith.constant 0 : index
    %493 = vector.load %arg7[%492, %c0_139] : memref<80x1xf32, #tpu.memory_space<vmem>>, vector<8x1xf32>
    tpu.vector_store %arg7[%492, %c0_139], %491 {strides = array<i32>} : memref<80x1xf32, #tpu.memory_space<vmem>>, vector<8x1xf32>,
    %494 = arith.index_cast %435 : i32 to index
    %c0_140 = arith.constant 0 : index
    %495 = vector.load %arg7[%494, %c0_140] : memref<80x1xf32, #tpu.memory_space<vmem>>, vector<8x1xf32>
    %496 = arith.addf %495, %488 : vector<8x1xf32>
    %497 = arith.index_cast %435 : i32 to index
    %c0_141 = arith.constant 0 : index
    %498 = vector.load %arg7[%497, %c0_141] : memref<80x1xf32, #tpu.memory_space<vmem>>, vector<8x1xf32>
    tpu.vector_store %arg7[%497, %c0_141], %496 {strides = array<i32>} : memref<80x1xf32, #tpu.memory_space<vmem>>, vector<8x1xf32>,
    %499 = tpu.concatenate %477, %480 in 1 : vector<8x32xf32>, vector<8x32xf32> -> vector<8x64xf32>
    %c7_i32 = arith.constant 7 : i32
    %c8_i32_142 = arith.constant 8 : i32
    %500 = arith.muli %c7_i32, %c8_i32_142 : i32
    %501 = tpu.assume_multiple %500, 8 : i32
    %c9_i32_143 = arith.constant 9 : i32
    %502 = arith.subi %c9_i32_143, %c7_i32 : i32
    %c8_i32_144 = arith.constant 8 : i32
    %503 = arith.muli %502, %c8_i32_144 : i32
    %504 = tpu.assume_multiple %503, 8 : i32
    %cst_145 = arith.constant dense<0.000000e+00> : vector<8x256xf32>
    %505 = tpu.matmul %499, %7, %cst_145 {dimension_numbers = #tpu.dot_dimension_numbers<[1], [0], [0], [1], [0, 0, 1, 1], [], []>} : vector<8x64xf32>, vector<64x256xf32>, vector<8x256xf32> -> vector<8x256xf32>
    %506 = arith.index_cast %501 : i32 to index
    %c0_146 = arith.constant 0 : index
    %507 = vector.load %arg8[%506, %c0_146] : memref<80x256xf32, #tpu.memory_space<vmem>>, vector<8x128xf32>
    %508 = vector.extract_strided_slice %505 {offsets = [0, 0], sizes = [8, 128], strides = [1, 1]} : vector<8x256xf32> to vector<8x128xf32>
    %509 = arith.addf %507, %508 : vector<8x128xf32>
    %510 = arith.index_cast %504 : i32 to index
    %c128_147 = arith.constant 128 : index
    %511 = vector.load %arg8[%510, %c128_147] : memref<80x256xf32, #tpu.memory_space<vmem>>, vector<8x128xf32>
    %512 = vector.extract_strided_slice %505 {offsets = [0, 128], sizes = [8, 128], strides = [1, 1]} : vector<8x256xf32> to vector<8x128xf32>
    %513 = arith.addf %511, %512 : vector<8x128xf32>
    %514 = arith.negf %509 : vector<8x128xf32>
    %515 = math.exp %514 : vector<8x128xf32>
    %cst_148 = arith.constant 1.000000e+00 : f32
    %516 = vector.broadcast %cst_148 : f32 to vector<8x128xf32>
    %517 = arith.addf %516, %515 : vector<8x128xf32>
    %518 = arith.divf %516, %517 : vector<8x128xf32>
    %519 = arith.negf %513 : vector<8x128xf32>
    %520 = math.exp %519 : vector<8x128xf32>
    %cst_149 = arith.constant 1.000000e+00 : f32
    %521 = vector.broadcast %cst_149 : f32 to vector<8x128xf32>
    %522 = arith.addf %521, %520 : vector<8x128xf32>
    %523 = arith.divf %521, %522 : vector<8x128xf32>
    %524 = vector.extract_strided_slice %518 {offsets = [0, 32], sizes = [8, 32], strides = [1, 1]} : vector<8x128xf32> to vector<8x32xf32>
    %525 = arith.mulf %524, %464 : vector<8x32xf32>
    %526 = vector.extract_strided_slice %518 {offsets = [0, 0], sizes = [8, 32], strides = [1, 1]} : vector<8x128xf32> to vector<8x32xf32>
    %527 = vector.extract_strided_slice %518 {offsets = [0, 64], sizes = [8, 32], strides = [1, 1]} : vector<8x128xf32> to vector<8x32xf32>
    %cst_150 = arith.constant 2.000000e+00 : f32
    %528 = vector.broadcast %cst_150 : f32 to vector<8x32xf32>
    %529 = arith.mulf %528, %527 : vector<8x32xf32>
    %cst_151 = arith.constant 1.000000e+00 : f32
    %530 = vector.broadcast %cst_151 : f32 to vector<8x32xf32>
    %531 = arith.subf %529, %530 : vector<8x32xf32>
    %532 = arith.mulf %526, %531 : vector<8x32xf32>
    %533 = arith.addf %525, %532 : vector<8x32xf32>
    %534 = vector.extract_strided_slice %523 {offsets = [0, 32], sizes = [8, 32], strides = [1, 1]} : vector<8x128xf32> to vector<8x32xf32>
    %535 = arith.mulf %534, %474 : vector<8x32xf32>
    %536 = vector.extract_strided_slice %523 {offsets = [0, 0], sizes = [8, 32], strides = [1, 1]} : vector<8x128xf32> to vector<8x32xf32>
    %537 = vector.extract_strided_slice %523 {offsets = [0, 64], sizes = [8, 32], strides = [1, 1]} : vector<8x128xf32> to vector<8x32xf32>
    %cst_152 = arith.constant 2.000000e+00 : f32
    %538 = vector.broadcast %cst_152 : f32 to vector<8x32xf32>
    %539 = arith.mulf %538, %537 : vector<8x32xf32>
    %cst_153 = arith.constant 1.000000e+00 : f32
    %540 = vector.broadcast %cst_153 : f32 to vector<8x32xf32>
    %541 = arith.subf %539, %540 : vector<8x32xf32>
    %542 = arith.mulf %536, %541 : vector<8x32xf32>
    %543 = arith.addf %535, %542 : vector<8x32xf32>
    %544 = vector.extract_strided_slice %518 {offsets = [0, 96], sizes = [8, 32], strides = [1, 1]} : vector<8x128xf32> to vector<8x32xf32>
    %545 = math.tanh %533 : vector<8x32xf32>
    %546 = arith.mulf %544, %545 : vector<8x32xf32>
    %547 = vector.extract_strided_slice %523 {offsets = [0, 96], sizes = [8, 32], strides = [1, 1]} : vector<8x128xf32> to vector<8x32xf32>
    %548 = math.tanh %543 : vector<8x32xf32>
    %549 = arith.mulf %547, %548 : vector<8x32xf32>
    %550 = vector.broadcast %8 : vector<1x32xf32> to vector<8x32xf32>
    %551 = arith.mulf %546, %550 : vector<8x32xf32>
    %cst_154 = arith.constant dense<0.000000e+00> : vector<8xf32>
    %552 = vector.multi_reduction <add>, %551, %cst_154 [1] : vector<8x32xf32> to vector<8xf32>
    %553 = vector.shape_cast %552 : vector<8xf32> to vector<8x1xf32>
    %554 = vector.broadcast %9 : vector<1x32xf32> to vector<8x32xf32>
    %555 = arith.mulf %549, %554 : vector<8x32xf32>
    %cst_155 = arith.constant dense<0.000000e+00> : vector<8xf32>
    %556 = vector.multi_reduction <add>, %555, %cst_155 [1] : vector<8x32xf32> to vector<8xf32>
    %557 = vector.shape_cast %556 : vector<8xf32> to vector<8x1xf32>
    %558 = arith.index_cast %501 : i32 to index
    %c0_156 = arith.constant 0 : index
    %559 = vector.load %arg7[%558, %c0_156] : memref<80x1xf32, #tpu.memory_space<vmem>>, vector<8x1xf32>
    %560 = arith.addf %559, %553 : vector<8x1xf32>
    %561 = arith.index_cast %501 : i32 to index
    %c0_157 = arith.constant 0 : index
    %562 = vector.load %arg7[%561, %c0_157] : memref<80x1xf32, #tpu.memory_space<vmem>>, vector<8x1xf32>
    tpu.vector_store %arg7[%561, %c0_157], %560 {strides = array<i32>} : memref<80x1xf32, #tpu.memory_space<vmem>>, vector<8x1xf32>,
    %563 = arith.index_cast %504 : i32 to index
    %c0_158 = arith.constant 0 : index
    %564 = vector.load %arg7[%563, %c0_158] : memref<80x1xf32, #tpu.memory_space<vmem>>, vector<8x1xf32>
    %565 = arith.addf %564, %557 : vector<8x1xf32>
    %566 = arith.index_cast %504 : i32 to index
    %c0_159 = arith.constant 0 : index
    %567 = vector.load %arg7[%566, %c0_159] : memref<80x1xf32, #tpu.memory_space<vmem>>, vector<8x1xf32>
    tpu.vector_store %arg7[%566, %c0_159], %565 {strides = array<i32>} : memref<80x1xf32, #tpu.memory_space<vmem>>, vector<8x1xf32>,
    %568 = tpu.concatenate %546, %549 in 1 : vector<8x32xf32>, vector<8x32xf32> -> vector<8x64xf32>
    %c8_i32_160 = arith.constant 8 : i32
    %c8_i32_161 = arith.constant 8 : i32
    %569 = arith.muli %c8_i32_160, %c8_i32_161 : i32
    %570 = tpu.assume_multiple %569, 8 : i32
    %c9_i32_162 = arith.constant 9 : i32
    %571 = arith.subi %c9_i32_162, %c8_i32_160 : i32
    %c8_i32_163 = arith.constant 8 : i32
    %572 = arith.muli %571, %c8_i32_163 : i32
    %573 = tpu.assume_multiple %572, 8 : i32
    %cst_164 = arith.constant dense<0.000000e+00> : vector<8x256xf32>
    %574 = tpu.matmul %568, %7, %cst_164 {dimension_numbers = #tpu.dot_dimension_numbers<[1], [0], [0], [1], [0, 0, 1, 1], [], []>} : vector<8x64xf32>, vector<64x256xf32>, vector<8x256xf32> -> vector<8x256xf32>
    %575 = arith.index_cast %570 : i32 to index
    %c0_165 = arith.constant 0 : index
    %576 = vector.load %arg8[%575, %c0_165] : memref<80x256xf32, #tpu.memory_space<vmem>>, vector<8x128xf32>
    %577 = vector.extract_strided_slice %574 {offsets = [0, 0], sizes = [8, 128], strides = [1, 1]} : vector<8x256xf32> to vector<8x128xf32>
    %578 = arith.addf %576, %577 : vector<8x128xf32>
    %579 = arith.index_cast %573 : i32 to index
    %c128_166 = arith.constant 128 : index
    %580 = vector.load %arg8[%579, %c128_166] : memref<80x256xf32, #tpu.memory_space<vmem>>, vector<8x128xf32>
    %581 = vector.extract_strided_slice %574 {offsets = [0, 128], sizes = [8, 128], strides = [1, 1]} : vector<8x256xf32> to vector<8x128xf32>
    %582 = arith.addf %580, %581 : vector<8x128xf32>
    %583 = arith.negf %578 : vector<8x128xf32>
    %584 = math.exp %583 : vector<8x128xf32>
    %cst_167 = arith.constant 1.000000e+00 : f32
    %585 = vector.broadcast %cst_167 : f32 to vector<8x128xf32>
    %586 = arith.addf %585, %584 : vector<8x128xf32>
    %587 = arith.divf %585, %586 : vector<8x128xf32>
    %588 = arith.negf %582 : vector<8x128xf32>
    %589 = math.exp %588 : vector<8x128xf32>
    %cst_168 = arith.constant 1.000000e+00 : f32
    %590 = vector.broadcast %cst_168 : f32 to vector<8x128xf32>
    %591 = arith.addf %590, %589 : vector<8x128xf32>
    %592 = arith.divf %590, %591 : vector<8x128xf32>
    %593 = vector.extract_strided_slice %587 {offsets = [0, 32], sizes = [8, 32], strides = [1, 1]} : vector<8x128xf32> to vector<8x32xf32>
    %594 = arith.mulf %593, %533 : vector<8x32xf32>
    %595 = vector.extract_strided_slice %587 {offsets = [0, 0], sizes = [8, 32], strides = [1, 1]} : vector<8x128xf32> to vector<8x32xf32>
    %596 = vector.extract_strided_slice %587 {offsets = [0, 64], sizes = [8, 32], strides = [1, 1]} : vector<8x128xf32> to vector<8x32xf32>
    %cst_169 = arith.constant 2.000000e+00 : f32
    %597 = vector.broadcast %cst_169 : f32 to vector<8x32xf32>
    %598 = arith.mulf %597, %596 : vector<8x32xf32>
    %cst_170 = arith.constant 1.000000e+00 : f32
    %599 = vector.broadcast %cst_170 : f32 to vector<8x32xf32>
    %600 = arith.subf %598, %599 : vector<8x32xf32>
    %601 = arith.mulf %595, %600 : vector<8x32xf32>
    %602 = arith.addf %594, %601 : vector<8x32xf32>
    %603 = vector.extract_strided_slice %592 {offsets = [0, 32], sizes = [8, 32], strides = [1, 1]} : vector<8x128xf32> to vector<8x32xf32>
    %604 = arith.mulf %603, %543 : vector<8x32xf32>
    %605 = vector.extract_strided_slice %592 {offsets = [0, 0], sizes = [8, 32], strides = [1, 1]} : vector<8x128xf32> to vector<8x32xf32>
    %606 = vector.extract_strided_slice %592 {offsets = [0, 64], sizes = [8, 32], strides = [1, 1]} : vector<8x128xf32> to vector<8x32xf32>
    %cst_171 = arith.constant 2.000000e+00 : f32
    %607 = vector.broadcast %cst_171 : f32 to vector<8x32xf32>
    %608 = arith.mulf %607, %606 : vector<8x32xf32>
    %cst_172 = arith.constant 1.000000e+00 : f32
    %609 = vector.broadcast %cst_172 : f32 to vector<8x32xf32>
    %610 = arith.subf %608, %609 : vector<8x32xf32>
    %611 = arith.mulf %605, %610 : vector<8x32xf32>
    %612 = arith.addf %604, %611 : vector<8x32xf32>
    %613 = vector.extract_strided_slice %587 {offsets = [0, 96], sizes = [8, 32], strides = [1, 1]} : vector<8x128xf32> to vector<8x32xf32>
    %614 = math.tanh %602 : vector<8x32xf32>
    %615 = arith.mulf %613, %614 : vector<8x32xf32>
    %616 = vector.extract_strided_slice %592 {offsets = [0, 96], sizes = [8, 32], strides = [1, 1]} : vector<8x128xf32> to vector<8x32xf32>
    %617 = math.tanh %612 : vector<8x32xf32>
    %618 = arith.mulf %616, %617 : vector<8x32xf32>
    %619 = vector.broadcast %8 : vector<1x32xf32> to vector<8x32xf32>
    %620 = arith.mulf %615, %619 : vector<8x32xf32>
    %cst_173 = arith.constant dense<0.000000e+00> : vector<8xf32>
    %621 = vector.multi_reduction <add>, %620, %cst_173 [1] : vector<8x32xf32> to vector<8xf32>
    %622 = vector.shape_cast %621 : vector<8xf32> to vector<8x1xf32>
    %623 = vector.broadcast %9 : vector<1x32xf32> to vector<8x32xf32>
    %624 = arith.mulf %618, %623 : vector<8x32xf32>
    %cst_174 = arith.constant dense<0.000000e+00> : vector<8xf32>
    %625 = vector.multi_reduction <add>, %624, %cst_174 [1] : vector<8x32xf32> to vector<8xf32>
    %626 = vector.shape_cast %625 : vector<8xf32> to vector<8x1xf32>
    %627 = arith.index_cast %570 : i32 to index
    %c0_175 = arith.constant 0 : index
    %628 = vector.load %arg7[%627, %c0_175] : memref<80x1xf32, #tpu.memory_space<vmem>>, vector<8x1xf32>
    %629 = arith.addf %628, %622 : vector<8x1xf32>
    %630 = arith.index_cast %570 : i32 to index
    %c0_176 = arith.constant 0 : index
    %631 = vector.load %arg7[%630, %c0_176] : memref<80x1xf32, #tpu.memory_space<vmem>>, vector<8x1xf32>
    tpu.vector_store %arg7[%630, %c0_176], %629 {strides = array<i32>} : memref<80x1xf32, #tpu.memory_space<vmem>>, vector<8x1xf32>,
    %632 = arith.index_cast %573 : i32 to index
    %c0_177 = arith.constant 0 : index
    %633 = vector.load %arg7[%632, %c0_177] : memref<80x1xf32, #tpu.memory_space<vmem>>, vector<8x1xf32>
    %634 = arith.addf %633, %626 : vector<8x1xf32>
    %635 = arith.index_cast %573 : i32 to index
    %c0_178 = arith.constant 0 : index
    %636 = vector.load %arg7[%635, %c0_178] : memref<80x1xf32, #tpu.memory_space<vmem>>, vector<8x1xf32>
    tpu.vector_store %arg7[%635, %c0_178], %634 {strides = array<i32>} : memref<80x1xf32, #tpu.memory_space<vmem>>, vector<8x1xf32>,
    %637 = tpu.concatenate %615, %618 in 1 : vector<8x32xf32>, vector<8x32xf32> -> vector<8x64xf32>
    %c9_i32_179 = arith.constant 9 : i32
    %c8_i32_180 = arith.constant 8 : i32
    %638 = arith.muli %c9_i32_179, %c8_i32_180 : i32
    %639 = tpu.assume_multiple %638, 8 : i32
    %c9_i32_181 = arith.constant 9 : i32
    %640 = arith.subi %c9_i32_181, %c9_i32_179 : i32
    %c8_i32_182 = arith.constant 8 : i32
    %641 = arith.muli %640, %c8_i32_182 : i32
    %642 = tpu.assume_multiple %641, 8 : i32
    %cst_183 = arith.constant dense<0.000000e+00> : vector<8x256xf32>
    %643 = tpu.matmul %637, %7, %cst_183 {dimension_numbers = #tpu.dot_dimension_numbers<[1], [0], [0], [1], [0, 0, 1, 1], [], []>} : vector<8x64xf32>, vector<64x256xf32>, vector<8x256xf32> -> vector<8x256xf32>
    %644 = arith.index_cast %639 : i32 to index
    %c0_184 = arith.constant 0 : index
    %645 = vector.load %arg8[%644, %c0_184] : memref<80x256xf32, #tpu.memory_space<vmem>>, vector<8x128xf32>
    %646 = vector.extract_strided_slice %643 {offsets = [0, 0], sizes = [8, 128], strides = [1, 1]} : vector<8x256xf32> to vector<8x128xf32>
    %647 = arith.addf %645, %646 : vector<8x128xf32>
    %648 = arith.index_cast %642 : i32 to index
    %c128_185 = arith.constant 128 : index
    %649 = vector.load %arg8[%648, %c128_185] : memref<80x256xf32, #tpu.memory_space<vmem>>, vector<8x128xf32>
    %650 = vector.extract_strided_slice %643 {offsets = [0, 128], sizes = [8, 128], strides = [1, 1]} : vector<8x256xf32> to vector<8x128xf32>
    %651 = arith.addf %649, %650 : vector<8x128xf32>
    %652 = arith.negf %647 : vector<8x128xf32>
    %653 = math.exp %652 : vector<8x128xf32>
    %cst_186 = arith.constant 1.000000e+00 : f32
    %654 = vector.broadcast %cst_186 : f32 to vector<8x128xf32>
    %655 = arith.addf %654, %653 : vector<8x128xf32>
    %656 = arith.divf %654, %655 : vector<8x128xf32>
    %657 = arith.negf %651 : vector<8x128xf32>
    %658 = math.exp %657 : vector<8x128xf32>
    %cst_187 = arith.constant 1.000000e+00 : f32
    %659 = vector.broadcast %cst_187 : f32 to vector<8x128xf32>
    %660 = arith.addf %659, %658 : vector<8x128xf32>
    %661 = arith.divf %659, %660 : vector<8x128xf32>
    %662 = vector.extract_strided_slice %656 {offsets = [0, 32], sizes = [8, 32], strides = [1, 1]} : vector<8x128xf32> to vector<8x32xf32>
    %663 = arith.mulf %662, %602 : vector<8x32xf32>
    %664 = vector.extract_strided_slice %656 {offsets = [0, 0], sizes = [8, 32], strides = [1, 1]} : vector<8x128xf32> to vector<8x32xf32>
    %665 = vector.extract_strided_slice %656 {offsets = [0, 64], sizes = [8, 32], strides = [1, 1]} : vector<8x128xf32> to vector<8x32xf32>
    %cst_188 = arith.constant 2.000000e+00 : f32
    %666 = vector.broadcast %cst_188 : f32 to vector<8x32xf32>
    %667 = arith.mulf %666, %665 : vector<8x32xf32>
    %cst_189 = arith.constant 1.000000e+00 : f32
    %668 = vector.broadcast %cst_189 : f32 to vector<8x32xf32>
    %669 = arith.subf %667, %668 : vector<8x32xf32>
    %670 = arith.mulf %664, %669 : vector<8x32xf32>
    %671 = arith.addf %663, %670 : vector<8x32xf32>
    %672 = vector.extract_strided_slice %661 {offsets = [0, 32], sizes = [8, 32], strides = [1, 1]} : vector<8x128xf32> to vector<8x32xf32>
    %673 = arith.mulf %672, %612 : vector<8x32xf32>
    %674 = vector.extract_strided_slice %661 {offsets = [0, 0], sizes = [8, 32], strides = [1, 1]} : vector<8x128xf32> to vector<8x32xf32>
    %675 = vector.extract_strided_slice %661 {offsets = [0, 64], sizes = [8, 32], strides = [1, 1]} : vector<8x128xf32> to vector<8x32xf32>
    %cst_190 = arith.constant 2.000000e+00 : f32
    %676 = vector.broadcast %cst_190 : f32 to vector<8x32xf32>
    %677 = arith.mulf %676, %675 : vector<8x32xf32>
    %cst_191 = arith.constant 1.000000e+00 : f32
    %678 = vector.broadcast %cst_191 : f32 to vector<8x32xf32>
    %679 = arith.subf %677, %678 : vector<8x32xf32>
    %680 = arith.mulf %674, %679 : vector<8x32xf32>
    %681 = arith.addf %673, %680 : vector<8x32xf32>
    %682 = vector.extract_strided_slice %656 {offsets = [0, 96], sizes = [8, 32], strides = [1, 1]} : vector<8x128xf32> to vector<8x32xf32>
    %683 = math.tanh %671 : vector<8x32xf32>
    %684 = arith.mulf %682, %683 : vector<8x32xf32>
    %685 = vector.extract_strided_slice %661 {offsets = [0, 96], sizes = [8, 32], strides = [1, 1]} : vector<8x128xf32> to vector<8x32xf32>
    %686 = math.tanh %681 : vector<8x32xf32>
    %687 = arith.mulf %685, %686 : vector<8x32xf32>
    %688 = vector.broadcast %8 : vector<1x32xf32> to vector<8x32xf32>
    %689 = arith.mulf %684, %688 : vector<8x32xf32>
    %cst_192 = arith.constant dense<0.000000e+00> : vector<8xf32>
    %690 = vector.multi_reduction <add>, %689, %cst_192 [1] : vector<8x32xf32> to vector<8xf32>
    %691 = vector.shape_cast %690 : vector<8xf32> to vector<8x1xf32>
    %692 = vector.broadcast %9 : vector<1x32xf32> to vector<8x32xf32>
    %693 = arith.mulf %687, %692 : vector<8x32xf32>
    %cst_193 = arith.constant dense<0.000000e+00> : vector<8xf32>
    %694 = vector.multi_reduction <add>, %693, %cst_193 [1] : vector<8x32xf32> to vector<8xf32>
    %695 = vector.shape_cast %694 : vector<8xf32> to vector<8x1xf32>
    %696 = arith.index_cast %639 : i32 to index
    %c0_194 = arith.constant 0 : index
    %697 = vector.load %arg7[%696, %c0_194] : memref<80x1xf32, #tpu.memory_space<vmem>>, vector<8x1xf32>
    %698 = arith.addf %697, %691 : vector<8x1xf32>
    %699 = arith.index_cast %639 : i32 to index
    %c0_195 = arith.constant 0 : index
    %700 = vector.load %arg7[%699, %c0_195] : memref<80x1xf32, #tpu.memory_space<vmem>>, vector<8x1xf32>
    tpu.vector_store %arg7[%699, %c0_195], %698 {strides = array<i32>} : memref<80x1xf32, #tpu.memory_space<vmem>>, vector<8x1xf32>,
    %701 = arith.index_cast %642 : i32 to index
    %c0_196 = arith.constant 0 : index
    %702 = vector.load %arg7[%701, %c0_196] : memref<80x1xf32, #tpu.memory_space<vmem>>, vector<8x1xf32>
    %703 = arith.addf %702, %695 : vector<8x1xf32>
    %704 = arith.index_cast %642 : i32 to index
    %c0_197 = arith.constant 0 : index
    %705 = vector.load %arg7[%704, %c0_197] : memref<80x1xf32, #tpu.memory_space<vmem>>, vector<8x1xf32>
    tpu.vector_store %arg7[%704, %c0_197], %703 {strides = array<i32>} : memref<80x1xf32, #tpu.memory_space<vmem>>, vector<8x1xf32>,
    %706 = tpu.concatenate %684, %687 in 1 : vector<8x32xf32>, vector<8x32xf32> -> vector<8x64xf32>
    %c10_i32 = arith.constant 10 : i32
    return
  }
  func.func @transform_0(%arg0: i32) -> (i32, i32) {
    %c0_i32 = arith.constant 0 : i32
    %c0_i32_0 = arith.constant 0 : i32
    %c0_i32_1 = arith.constant 0 : i32
    return %c0_i32, %c0_i32_0 : i32, i32
  }
  func.func @transform_1(%arg0: i32) -> (i32, i32) {
    %c0_i32 = arith.constant 0 : i32
    %c0_i32_0 = arith.constant 0 : i32
    %c0_i32_1 = arith.constant 0 : i32
    return %c0_i32, %c0_i32_0 : i32, i32
  }
  func.func @transform_2(%arg0: i32) -> (i32, i32) {
    %c0_i32 = arith.constant 0 : i32
    %c0_i32_0 = arith.constant 0 : i32
    %c0_i32_1 = arith.constant 0 : i32
    return %c0_i32, %c0_i32_0 : i32, i32
  }
  func.func @transform_3(%arg0: i32) -> (i32, i32) {
    %c0_i32 = arith.constant 0 : i32
    %c0_i32_0 = arith.constant 0 : i32
    %c0_i32_1 = arith.constant 0 : i32
    return %c0_i32, %c0_i32_0 : i32, i32
  }
  func.func @transform_4(%arg0: i32) -> (i32, i32) {
    %c0_i32 = arith.constant 0 : i32
    %c0_i32_0 = arith.constant 0 : i32
    %c0_i32_1 = arith.constant 0 : i32
    return %c0_i32, %c0_i32_0 : i32, i32
  }
  func.func @transform_5(%arg0: i32) -> (i32, i32) {
    %c0_i32 = arith.constant 0 : i32
    %c0_i32_0 = arith.constant 0 : i32
    %c0_i32_1 = arith.constant 0 : i32
    return %c0_i32, %c0_i32_0 : i32, i32
  }
  func.func @transform_6(%arg0: i32) -> (i32, i32) {
    %c0_i32 = arith.constant 0 : i32
    %c0_i32_0 = arith.constant 0 : i32
    %c0_i32_1 = arith.constant 0 : i32
    return %c0_i32, %c0_i32_0 : i32, i32
  }
}

module attributes {stable_mosaic.version = 11 : i64} {
  func.func @kernel(%arg0: i32, %arg1: memref<80x32xf32, #tpu.memory_space<vmem>>, %arg2: memref<32x256xf32, #tpu.memory_space<vmem>>, %arg3: memref<64x256xf32, #tpu.memory_space<vmem>>, %arg4: memref<1x256xf32, #tpu.memory_space<vmem>>, %arg5: memref<80x64xf32, #tpu.memory_space<vmem>>, %arg6: memref<80x256xf32, #tpu.memory_space<vmem>>) attributes {dimension_semantics = [#tpu.dimension_semantics<arbitrary>], iteration_bounds = array<i64: 1>, scalar_prefetch = 0 : i64, scratch_operands = 1 : i64, tpu.core_type = #tpu.core_type<tc>, window_params = [{pipeline_mode = #tpu.pipeline_mode<synchronous>, transform_indices = @transform_0, window_bounds = array<i64: 80, 32>}, {pipeline_mode = #tpu.pipeline_mode<synchronous>, transform_indices = @transform_1, window_bounds = array<i64: 32, 256>}, {pipeline_mode = #tpu.pipeline_mode<synchronous>, transform_indices = @transform_2, window_bounds = array<i64: 64, 256>}, {pipeline_mode = #tpu.pipeline_mode<synchronous>, transform_indices = @transform_3, window_bounds = array<i64: 1, 256>}, {pipeline_mode = #tpu.pipeline_mode<synchronous>, transform_indices = @transform_4, window_bounds = array<i64: 80, 64>}]} {
    %c0 = arith.constant 0 : index
    %c0_0 = arith.constant 0 : index
    %0 = vector.load %arg1[%c0, %c0_0] : memref<80x32xf32, #tpu.memory_space<vmem>>, vector<80x32xf32>
    %c0_1 = arith.constant 0 : index
    %c0_2 = arith.constant 0 : index
    %1 = vector.load %arg2[%c0_1, %c0_2] : memref<32x256xf32, #tpu.memory_space<vmem>>, vector<32x256xf32>
    %cst = arith.constant dense<0.000000e+00> : vector<80x256xf32>
    %2 = tpu.matmul %0, %1, %cst {dimension_numbers = #tpu.dot_dimension_numbers<[1], [0], [0], [1], [0, 0, 1, 1], [], []>} : vector<80x32xf32>, vector<32x256xf32>, vector<80x256xf32> -> vector<80x256xf32>
    %c0_3 = arith.constant 0 : index
    %c0_4 = arith.constant 0 : index
    %3 = vector.load %arg4[%c0_3, %c0_4] : memref<1x256xf32, #tpu.memory_space<vmem>>, vector<1x256xf32>
    %4 = vector.broadcast %3 : vector<1x256xf32> to vector<80x256xf32>
    %5 = arith.addf %2, %4 : vector<80x256xf32>
    %c0_5 = arith.constant 0 : index
    %c0_6 = arith.constant 0 : index
    %6 = vector.load %arg6[%c0_5, %c0_6] : memref<80x256xf32, #tpu.memory_space<vmem>>, vector<80x256xf32>
    tpu.vector_store %arg6[%c0_5, %c0_6], %5 {strides = array<i32>} : memref<80x256xf32, #tpu.memory_space<vmem>>, vector<80x256xf32>,
    %c0_7 = arith.constant 0 : index
    %c0_8 = arith.constant 0 : index
    %7 = vector.load %arg3[%c0_7, %c0_8] : memref<64x256xf32, #tpu.memory_space<vmem>>, vector<64x256xf32>
    %cst_9 = arith.constant 0.000000e+00 : f32
    %8 = vector.broadcast %cst_9 : f32 to vector<8x64xf32>
    %cst_10 = arith.constant 0.000000e+00 : f32
    %9 = vector.broadcast %cst_10 : f32 to vector<8x32xf32>
    %c0_i32 = arith.constant 0 : i32
    %c8_i32 = arith.constant 8 : i32
    %10 = arith.muli %c0_i32, %c8_i32 : i32
    %11 = tpu.assume_multiple %10, 8 : i32
    %c9_i32 = arith.constant 9 : i32
    %12 = arith.subi %c9_i32, %c0_i32 : i32
    %c8_i32_11 = arith.constant 8 : i32
    %13 = arith.muli %12, %c8_i32_11 : i32
    %14 = tpu.assume_multiple %13, 8 : i32
    %cst_12 = arith.constant dense<0.000000e+00> : vector<8x256xf32>
    %15 = tpu.matmul %8, %7, %cst_12 {dimension_numbers = #tpu.dot_dimension_numbers<[1], [0], [0], [1], [0, 0, 1, 1], [], []>} : vector<8x64xf32>, vector<64x256xf32>, vector<8x256xf32> -> vector<8x256xf32>
    %16 = arith.index_cast %11 : i32 to index
    %c0_13 = arith.constant 0 : index
    %17 = vector.load %arg6[%16, %c0_13] : memref<80x256xf32, #tpu.memory_space<vmem>>, vector<8x128xf32>
    %18 = vector.extract_strided_slice %15 {offsets = [0, 0], sizes = [8, 128], strides = [1, 1]} : vector<8x256xf32> to vector<8x128xf32>
    %19 = arith.addf %17, %18 : vector<8x128xf32>
    %20 = arith.index_cast %14 : i32 to index
    %c128 = arith.constant 128 : index
    %21 = vector.load %arg6[%20, %c128] : memref<80x256xf32, #tpu.memory_space<vmem>>, vector<8x128xf32>
    %22 = vector.extract_strided_slice %15 {offsets = [0, 128], sizes = [8, 128], strides = [1, 1]} : vector<8x256xf32> to vector<8x128xf32>
    %23 = arith.addf %21, %22 : vector<8x128xf32>
    %24 = arith.negf %19 : vector<8x128xf32>
    %25 = math.exp %24 : vector<8x128xf32>
    %cst_14 = arith.constant 1.000000e+00 : f32
    %26 = vector.broadcast %cst_14 : f32 to vector<8x128xf32>
    %27 = arith.addf %26, %25 : vector<8x128xf32>
    %28 = arith.divf %26, %27 : vector<8x128xf32>
    %29 = arith.negf %23 : vector<8x128xf32>
    %30 = math.exp %29 : vector<8x128xf32>
    %cst_15 = arith.constant 1.000000e+00 : f32
    %31 = vector.broadcast %cst_15 : f32 to vector<8x128xf32>
    %32 = arith.addf %31, %30 : vector<8x128xf32>
    %33 = arith.divf %31, %32 : vector<8x128xf32>
    %34 = vector.extract_strided_slice %28 {offsets = [0, 32], sizes = [8, 32], strides = [1, 1]} : vector<8x128xf32> to vector<8x32xf32>
    %35 = arith.mulf %34, %9 : vector<8x32xf32>
    %36 = vector.extract_strided_slice %28 {offsets = [0, 0], sizes = [8, 32], strides = [1, 1]} : vector<8x128xf32> to vector<8x32xf32>
    %37 = vector.extract_strided_slice %28 {offsets = [0, 64], sizes = [8, 32], strides = [1, 1]} : vector<8x128xf32> to vector<8x32xf32>
    %cst_16 = arith.constant 2.000000e+00 : f32
    %38 = vector.broadcast %cst_16 : f32 to vector<8x32xf32>
    %39 = arith.mulf %38, %37 : vector<8x32xf32>
    %cst_17 = arith.constant 1.000000e+00 : f32
    %40 = vector.broadcast %cst_17 : f32 to vector<8x32xf32>
    %41 = arith.subf %39, %40 : vector<8x32xf32>
    %42 = arith.mulf %36, %41 : vector<8x32xf32>
    %43 = arith.addf %35, %42 : vector<8x32xf32>
    %44 = vector.extract_strided_slice %33 {offsets = [0, 32], sizes = [8, 32], strides = [1, 1]} : vector<8x128xf32> to vector<8x32xf32>
    %45 = arith.mulf %44, %9 : vector<8x32xf32>
    %46 = vector.extract_strided_slice %33 {offsets = [0, 0], sizes = [8, 32], strides = [1, 1]} : vector<8x128xf32> to vector<8x32xf32>
    %47 = vector.extract_strided_slice %33 {offsets = [0, 64], sizes = [8, 32], strides = [1, 1]} : vector<8x128xf32> to vector<8x32xf32>
    %cst_18 = arith.constant 2.000000e+00 : f32
    %48 = vector.broadcast %cst_18 : f32 to vector<8x32xf32>
    %49 = arith.mulf %48, %47 : vector<8x32xf32>
    %cst_19 = arith.constant 1.000000e+00 : f32
    %50 = vector.broadcast %cst_19 : f32 to vector<8x32xf32>
    %51 = arith.subf %49, %50 : vector<8x32xf32>
    %52 = arith.mulf %46, %51 : vector<8x32xf32>
    %53 = arith.addf %45, %52 : vector<8x32xf32>
    %54 = vector.extract_strided_slice %28 {offsets = [0, 96], sizes = [8, 32], strides = [1, 1]} : vector<8x128xf32> to vector<8x32xf32>
    %55 = math.tanh %43 : vector<8x32xf32>
    %56 = arith.mulf %54, %55 : vector<8x32xf32>
    %57 = vector.extract_strided_slice %33 {offsets = [0, 96], sizes = [8, 32], strides = [1, 1]} : vector<8x128xf32> to vector<8x32xf32>
    %58 = math.tanh %53 : vector<8x32xf32>
    %59 = arith.mulf %57, %58 : vector<8x32xf32>
    %60 = arith.index_cast %11 : i32 to index
    %c0_20 = arith.constant 0 : index
    %61 = vector.load %arg5[%60, %c0_20] : memref<80x64xf32, #tpu.memory_space<vmem>>, vector<8x32xf32>
    tpu.vector_store %arg5[%60, %c0_20], %56 {strides = array<i32>} : memref<80x64xf32, #tpu.memory_space<vmem>>, vector<8x32xf32>,
    %62 = arith.index_cast %14 : i32 to index
    %c32 = arith.constant 32 : index
    %63 = vector.load %arg5[%62, %c32] : memref<80x64xf32, #tpu.memory_space<vmem>>, vector<8x32xf32>
    tpu.vector_store %arg5[%62, %c32], %59 {strides = array<i32>} : memref<80x64xf32, #tpu.memory_space<vmem>>, vector<8x32xf32>,
    %64 = tpu.concatenate %56, %59 in 1 : vector<8x32xf32>, vector<8x32xf32> -> vector<8x64xf32>
    %c1_i32 = arith.constant 1 : i32
    %c8_i32_21 = arith.constant 8 : i32
    %65 = arith.muli %c1_i32, %c8_i32_21 : i32
    %66 = tpu.assume_multiple %65, 8 : i32
    %c9_i32_22 = arith.constant 9 : i32
    %67 = arith.subi %c9_i32_22, %c1_i32 : i32
    %c8_i32_23 = arith.constant 8 : i32
    %68 = arith.muli %67, %c8_i32_23 : i32
    %69 = tpu.assume_multiple %68, 8 : i32
    %cst_24 = arith.constant dense<0.000000e+00> : vector<8x256xf32>
    %70 = tpu.matmul %64, %7, %cst_24 {dimension_numbers = #tpu.dot_dimension_numbers<[1], [0], [0], [1], [0, 0, 1, 1], [], []>} : vector<8x64xf32>, vector<64x256xf32>, vector<8x256xf32> -> vector<8x256xf32>
    %71 = arith.index_cast %66 : i32 to index
    %c0_25 = arith.constant 0 : index
    %72 = vector.load %arg6[%71, %c0_25] : memref<80x256xf32, #tpu.memory_space<vmem>>, vector<8x128xf32>
    %73 = vector.extract_strided_slice %70 {offsets = [0, 0], sizes = [8, 128], strides = [1, 1]} : vector<8x256xf32> to vector<8x128xf32>
    %74 = arith.addf %72, %73 : vector<8x128xf32>
    %75 = arith.index_cast %69 : i32 to index
    %c128_26 = arith.constant 128 : index
    %76 = vector.load %arg6[%75, %c128_26] : memref<80x256xf32, #tpu.memory_space<vmem>>, vector<8x128xf32>
    %77 = vector.extract_strided_slice %70 {offsets = [0, 128], sizes = [8, 128], strides = [1, 1]} : vector<8x256xf32> to vector<8x128xf32>
    %78 = arith.addf %76, %77 : vector<8x128xf32>
    %79 = arith.negf %74 : vector<8x128xf32>
    %80 = math.exp %79 : vector<8x128xf32>
    %cst_27 = arith.constant 1.000000e+00 : f32
    %81 = vector.broadcast %cst_27 : f32 to vector<8x128xf32>
    %82 = arith.addf %81, %80 : vector<8x128xf32>
    %83 = arith.divf %81, %82 : vector<8x128xf32>
    %84 = arith.negf %78 : vector<8x128xf32>
    %85 = math.exp %84 : vector<8x128xf32>
    %cst_28 = arith.constant 1.000000e+00 : f32
    %86 = vector.broadcast %cst_28 : f32 to vector<8x128xf32>
    %87 = arith.addf %86, %85 : vector<8x128xf32>
    %88 = arith.divf %86, %87 : vector<8x128xf32>
    %89 = vector.extract_strided_slice %83 {offsets = [0, 32], sizes = [8, 32], strides = [1, 1]} : vector<8x128xf32> to vector<8x32xf32>
    %90 = arith.mulf %89, %43 : vector<8x32xf32>
    %91 = vector.extract_strided_slice %83 {offsets = [0, 0], sizes = [8, 32], strides = [1, 1]} : vector<8x128xf32> to vector<8x32xf32>
    %92 = vector.extract_strided_slice %83 {offsets = [0, 64], sizes = [8, 32], strides = [1, 1]} : vector<8x128xf32> to vector<8x32xf32>
    %cst_29 = arith.constant 2.000000e+00 : f32
    %93 = vector.broadcast %cst_29 : f32 to vector<8x32xf32>
    %94 = arith.mulf %93, %92 : vector<8x32xf32>
    %cst_30 = arith.constant 1.000000e+00 : f32
    %95 = vector.broadcast %cst_30 : f32 to vector<8x32xf32>
    %96 = arith.subf %94, %95 : vector<8x32xf32>
    %97 = arith.mulf %91, %96 : vector<8x32xf32>
    %98 = arith.addf %90, %97 : vector<8x32xf32>
    %99 = vector.extract_strided_slice %88 {offsets = [0, 32], sizes = [8, 32], strides = [1, 1]} : vector<8x128xf32> to vector<8x32xf32>
    %100 = arith.mulf %99, %53 : vector<8x32xf32>
    %101 = vector.extract_strided_slice %88 {offsets = [0, 0], sizes = [8, 32], strides = [1, 1]} : vector<8x128xf32> to vector<8x32xf32>
    %102 = vector.extract_strided_slice %88 {offsets = [0, 64], sizes = [8, 32], strides = [1, 1]} : vector<8x128xf32> to vector<8x32xf32>
    %cst_31 = arith.constant 2.000000e+00 : f32
    %103 = vector.broadcast %cst_31 : f32 to vector<8x32xf32>
    %104 = arith.mulf %103, %102 : vector<8x32xf32>
    %cst_32 = arith.constant 1.000000e+00 : f32
    %105 = vector.broadcast %cst_32 : f32 to vector<8x32xf32>
    %106 = arith.subf %104, %105 : vector<8x32xf32>
    %107 = arith.mulf %101, %106 : vector<8x32xf32>
    %108 = arith.addf %100, %107 : vector<8x32xf32>
    %109 = vector.extract_strided_slice %83 {offsets = [0, 96], sizes = [8, 32], strides = [1, 1]} : vector<8x128xf32> to vector<8x32xf32>
    %110 = math.tanh %98 : vector<8x32xf32>
    %111 = arith.mulf %109, %110 : vector<8x32xf32>
    %112 = vector.extract_strided_slice %88 {offsets = [0, 96], sizes = [8, 32], strides = [1, 1]} : vector<8x128xf32> to vector<8x32xf32>
    %113 = math.tanh %108 : vector<8x32xf32>
    %114 = arith.mulf %112, %113 : vector<8x32xf32>
    %115 = arith.index_cast %66 : i32 to index
    %c0_33 = arith.constant 0 : index
    %116 = vector.load %arg5[%115, %c0_33] : memref<80x64xf32, #tpu.memory_space<vmem>>, vector<8x32xf32>
    tpu.vector_store %arg5[%115, %c0_33], %111 {strides = array<i32>} : memref<80x64xf32, #tpu.memory_space<vmem>>, vector<8x32xf32>,
    %117 = arith.index_cast %69 : i32 to index
    %c32_34 = arith.constant 32 : index
    %118 = vector.load %arg5[%117, %c32_34] : memref<80x64xf32, #tpu.memory_space<vmem>>, vector<8x32xf32>
    tpu.vector_store %arg5[%117, %c32_34], %114 {strides = array<i32>} : memref<80x64xf32, #tpu.memory_space<vmem>>, vector<8x32xf32>,
    %119 = tpu.concatenate %111, %114 in 1 : vector<8x32xf32>, vector<8x32xf32> -> vector<8x64xf32>
    %c2_i32 = arith.constant 2 : i32
    %c8_i32_35 = arith.constant 8 : i32
    %120 = arith.muli %c2_i32, %c8_i32_35 : i32
    %121 = tpu.assume_multiple %120, 8 : i32
    %c9_i32_36 = arith.constant 9 : i32
    %122 = arith.subi %c9_i32_36, %c2_i32 : i32
    %c8_i32_37 = arith.constant 8 : i32
    %123 = arith.muli %122, %c8_i32_37 : i32
    %124 = tpu.assume_multiple %123, 8 : i32
    %cst_38 = arith.constant dense<0.000000e+00> : vector<8x256xf32>
    %125 = tpu.matmul %119, %7, %cst_38 {dimension_numbers = #tpu.dot_dimension_numbers<[1], [0], [0], [1], [0, 0, 1, 1], [], []>} : vector<8x64xf32>, vector<64x256xf32>, vector<8x256xf32> -> vector<8x256xf32>
    %126 = arith.index_cast %121 : i32 to index
    %c0_39 = arith.constant 0 : index
    %127 = vector.load %arg6[%126, %c0_39] : memref<80x256xf32, #tpu.memory_space<vmem>>, vector<8x128xf32>
    %128 = vector.extract_strided_slice %125 {offsets = [0, 0], sizes = [8, 128], strides = [1, 1]} : vector<8x256xf32> to vector<8x128xf32>
    %129 = arith.addf %127, %128 : vector<8x128xf32>
    %130 = arith.index_cast %124 : i32 to index
    %c128_40 = arith.constant 128 : index
    %131 = vector.load %arg6[%130, %c128_40] : memref<80x256xf32, #tpu.memory_space<vmem>>, vector<8x128xf32>
    %132 = vector.extract_strided_slice %125 {offsets = [0, 128], sizes = [8, 128], strides = [1, 1]} : vector<8x256xf32> to vector<8x128xf32>
    %133 = arith.addf %131, %132 : vector<8x128xf32>
    %134 = arith.negf %129 : vector<8x128xf32>
    %135 = math.exp %134 : vector<8x128xf32>
    %cst_41 = arith.constant 1.000000e+00 : f32
    %136 = vector.broadcast %cst_41 : f32 to vector<8x128xf32>
    %137 = arith.addf %136, %135 : vector<8x128xf32>
    %138 = arith.divf %136, %137 : vector<8x128xf32>
    %139 = arith.negf %133 : vector<8x128xf32>
    %140 = math.exp %139 : vector<8x128xf32>
    %cst_42 = arith.constant 1.000000e+00 : f32
    %141 = vector.broadcast %cst_42 : f32 to vector<8x128xf32>
    %142 = arith.addf %141, %140 : vector<8x128xf32>
    %143 = arith.divf %141, %142 : vector<8x128xf32>
    %144 = vector.extract_strided_slice %138 {offsets = [0, 32], sizes = [8, 32], strides = [1, 1]} : vector<8x128xf32> to vector<8x32xf32>
    %145 = arith.mulf %144, %98 : vector<8x32xf32>
    %146 = vector.extract_strided_slice %138 {offsets = [0, 0], sizes = [8, 32], strides = [1, 1]} : vector<8x128xf32> to vector<8x32xf32>
    %147 = vector.extract_strided_slice %138 {offsets = [0, 64], sizes = [8, 32], strides = [1, 1]} : vector<8x128xf32> to vector<8x32xf32>
    %cst_43 = arith.constant 2.000000e+00 : f32
    %148 = vector.broadcast %cst_43 : f32 to vector<8x32xf32>
    %149 = arith.mulf %148, %147 : vector<8x32xf32>
    %cst_44 = arith.constant 1.000000e+00 : f32
    %150 = vector.broadcast %cst_44 : f32 to vector<8x32xf32>
    %151 = arith.subf %149, %150 : vector<8x32xf32>
    %152 = arith.mulf %146, %151 : vector<8x32xf32>
    %153 = arith.addf %145, %152 : vector<8x32xf32>
    %154 = vector.extract_strided_slice %143 {offsets = [0, 32], sizes = [8, 32], strides = [1, 1]} : vector<8x128xf32> to vector<8x32xf32>
    %155 = arith.mulf %154, %108 : vector<8x32xf32>
    %156 = vector.extract_strided_slice %143 {offsets = [0, 0], sizes = [8, 32], strides = [1, 1]} : vector<8x128xf32> to vector<8x32xf32>
    %157 = vector.extract_strided_slice %143 {offsets = [0, 64], sizes = [8, 32], strides = [1, 1]} : vector<8x128xf32> to vector<8x32xf32>
    %cst_45 = arith.constant 2.000000e+00 : f32
    %158 = vector.broadcast %cst_45 : f32 to vector<8x32xf32>
    %159 = arith.mulf %158, %157 : vector<8x32xf32>
    %cst_46 = arith.constant 1.000000e+00 : f32
    %160 = vector.broadcast %cst_46 : f32 to vector<8x32xf32>
    %161 = arith.subf %159, %160 : vector<8x32xf32>
    %162 = arith.mulf %156, %161 : vector<8x32xf32>
    %163 = arith.addf %155, %162 : vector<8x32xf32>
    %164 = vector.extract_strided_slice %138 {offsets = [0, 96], sizes = [8, 32], strides = [1, 1]} : vector<8x128xf32> to vector<8x32xf32>
    %165 = math.tanh %153 : vector<8x32xf32>
    %166 = arith.mulf %164, %165 : vector<8x32xf32>
    %167 = vector.extract_strided_slice %143 {offsets = [0, 96], sizes = [8, 32], strides = [1, 1]} : vector<8x128xf32> to vector<8x32xf32>
    %168 = math.tanh %163 : vector<8x32xf32>
    %169 = arith.mulf %167, %168 : vector<8x32xf32>
    %170 = arith.index_cast %121 : i32 to index
    %c0_47 = arith.constant 0 : index
    %171 = vector.load %arg5[%170, %c0_47] : memref<80x64xf32, #tpu.memory_space<vmem>>, vector<8x32xf32>
    tpu.vector_store %arg5[%170, %c0_47], %166 {strides = array<i32>} : memref<80x64xf32, #tpu.memory_space<vmem>>, vector<8x32xf32>,
    %172 = arith.index_cast %124 : i32 to index
    %c32_48 = arith.constant 32 : index
    %173 = vector.load %arg5[%172, %c32_48] : memref<80x64xf32, #tpu.memory_space<vmem>>, vector<8x32xf32>
    tpu.vector_store %arg5[%172, %c32_48], %169 {strides = array<i32>} : memref<80x64xf32, #tpu.memory_space<vmem>>, vector<8x32xf32>,
    %174 = tpu.concatenate %166, %169 in 1 : vector<8x32xf32>, vector<8x32xf32> -> vector<8x64xf32>
    %c3_i32 = arith.constant 3 : i32
    %c8_i32_49 = arith.constant 8 : i32
    %175 = arith.muli %c3_i32, %c8_i32_49 : i32
    %176 = tpu.assume_multiple %175, 8 : i32
    %c9_i32_50 = arith.constant 9 : i32
    %177 = arith.subi %c9_i32_50, %c3_i32 : i32
    %c8_i32_51 = arith.constant 8 : i32
    %178 = arith.muli %177, %c8_i32_51 : i32
    %179 = tpu.assume_multiple %178, 8 : i32
    %cst_52 = arith.constant dense<0.000000e+00> : vector<8x256xf32>
    %180 = tpu.matmul %174, %7, %cst_52 {dimension_numbers = #tpu.dot_dimension_numbers<[1], [0], [0], [1], [0, 0, 1, 1], [], []>} : vector<8x64xf32>, vector<64x256xf32>, vector<8x256xf32> -> vector<8x256xf32>
    %181 = arith.index_cast %176 : i32 to index
    %c0_53 = arith.constant 0 : index
    %182 = vector.load %arg6[%181, %c0_53] : memref<80x256xf32, #tpu.memory_space<vmem>>, vector<8x128xf32>
    %183 = vector.extract_strided_slice %180 {offsets = [0, 0], sizes = [8, 128], strides = [1, 1]} : vector<8x256xf32> to vector<8x128xf32>
    %184 = arith.addf %182, %183 : vector<8x128xf32>
    %185 = arith.index_cast %179 : i32 to index
    %c128_54 = arith.constant 128 : index
    %186 = vector.load %arg6[%185, %c128_54] : memref<80x256xf32, #tpu.memory_space<vmem>>, vector<8x128xf32>
    %187 = vector.extract_strided_slice %180 {offsets = [0, 128], sizes = [8, 128], strides = [1, 1]} : vector<8x256xf32> to vector<8x128xf32>
    %188 = arith.addf %186, %187 : vector<8x128xf32>
    %189 = arith.negf %184 : vector<8x128xf32>
    %190 = math.exp %189 : vector<8x128xf32>
    %cst_55 = arith.constant 1.000000e+00 : f32
    %191 = vector.broadcast %cst_55 : f32 to vector<8x128xf32>
    %192 = arith.addf %191, %190 : vector<8x128xf32>
    %193 = arith.divf %191, %192 : vector<8x128xf32>
    %194 = arith.negf %188 : vector<8x128xf32>
    %195 = math.exp %194 : vector<8x128xf32>
    %cst_56 = arith.constant 1.000000e+00 : f32
    %196 = vector.broadcast %cst_56 : f32 to vector<8x128xf32>
    %197 = arith.addf %196, %195 : vector<8x128xf32>
    %198 = arith.divf %196, %197 : vector<8x128xf32>
    %199 = vector.extract_strided_slice %193 {offsets = [0, 32], sizes = [8, 32], strides = [1, 1]} : vector<8x128xf32> to vector<8x32xf32>
    %200 = arith.mulf %199, %153 : vector<8x32xf32>
    %201 = vector.extract_strided_slice %193 {offsets = [0, 0], sizes = [8, 32], strides = [1, 1]} : vector<8x128xf32> to vector<8x32xf32>
    %202 = vector.extract_strided_slice %193 {offsets = [0, 64], sizes = [8, 32], strides = [1, 1]} : vector<8x128xf32> to vector<8x32xf32>
    %cst_57 = arith.constant 2.000000e+00 : f32
    %203 = vector.broadcast %cst_57 : f32 to vector<8x32xf32>
    %204 = arith.mulf %203, %202 : vector<8x32xf32>
    %cst_58 = arith.constant 1.000000e+00 : f32
    %205 = vector.broadcast %cst_58 : f32 to vector<8x32xf32>
    %206 = arith.subf %204, %205 : vector<8x32xf32>
    %207 = arith.mulf %201, %206 : vector<8x32xf32>
    %208 = arith.addf %200, %207 : vector<8x32xf32>
    %209 = vector.extract_strided_slice %198 {offsets = [0, 32], sizes = [8, 32], strides = [1, 1]} : vector<8x128xf32> to vector<8x32xf32>
    %210 = arith.mulf %209, %163 : vector<8x32xf32>
    %211 = vector.extract_strided_slice %198 {offsets = [0, 0], sizes = [8, 32], strides = [1, 1]} : vector<8x128xf32> to vector<8x32xf32>
    %212 = vector.extract_strided_slice %198 {offsets = [0, 64], sizes = [8, 32], strides = [1, 1]} : vector<8x128xf32> to vector<8x32xf32>
    %cst_59 = arith.constant 2.000000e+00 : f32
    %213 = vector.broadcast %cst_59 : f32 to vector<8x32xf32>
    %214 = arith.mulf %213, %212 : vector<8x32xf32>
    %cst_60 = arith.constant 1.000000e+00 : f32
    %215 = vector.broadcast %cst_60 : f32 to vector<8x32xf32>
    %216 = arith.subf %214, %215 : vector<8x32xf32>
    %217 = arith.mulf %211, %216 : vector<8x32xf32>
    %218 = arith.addf %210, %217 : vector<8x32xf32>
    %219 = vector.extract_strided_slice %193 {offsets = [0, 96], sizes = [8, 32], strides = [1, 1]} : vector<8x128xf32> to vector<8x32xf32>
    %220 = math.tanh %208 : vector<8x32xf32>
    %221 = arith.mulf %219, %220 : vector<8x32xf32>
    %222 = vector.extract_strided_slice %198 {offsets = [0, 96], sizes = [8, 32], strides = [1, 1]} : vector<8x128xf32> to vector<8x32xf32>
    %223 = math.tanh %218 : vector<8x32xf32>
    %224 = arith.mulf %222, %223 : vector<8x32xf32>
    %225 = arith.index_cast %176 : i32 to index
    %c0_61 = arith.constant 0 : index
    %226 = vector.load %arg5[%225, %c0_61] : memref<80x64xf32, #tpu.memory_space<vmem>>, vector<8x32xf32>
    tpu.vector_store %arg5[%225, %c0_61], %221 {strides = array<i32>} : memref<80x64xf32, #tpu.memory_space<vmem>>, vector<8x32xf32>,
    %227 = arith.index_cast %179 : i32 to index
    %c32_62 = arith.constant 32 : index
    %228 = vector.load %arg5[%227, %c32_62] : memref<80x64xf32, #tpu.memory_space<vmem>>, vector<8x32xf32>
    tpu.vector_store %arg5[%227, %c32_62], %224 {strides = array<i32>} : memref<80x64xf32, #tpu.memory_space<vmem>>, vector<8x32xf32>,
    %229 = tpu.concatenate %221, %224 in 1 : vector<8x32xf32>, vector<8x32xf32> -> vector<8x64xf32>
    %c4_i32 = arith.constant 4 : i32
    %c8_i32_63 = arith.constant 8 : i32
    %230 = arith.muli %c4_i32, %c8_i32_63 : i32
    %231 = tpu.assume_multiple %230, 8 : i32
    %c9_i32_64 = arith.constant 9 : i32
    %232 = arith.subi %c9_i32_64, %c4_i32 : i32
    %c8_i32_65 = arith.constant 8 : i32
    %233 = arith.muli %232, %c8_i32_65 : i32
    %234 = tpu.assume_multiple %233, 8 : i32
    %cst_66 = arith.constant dense<0.000000e+00> : vector<8x256xf32>
    %235 = tpu.matmul %229, %7, %cst_66 {dimension_numbers = #tpu.dot_dimension_numbers<[1], [0], [0], [1], [0, 0, 1, 1], [], []>} : vector<8x64xf32>, vector<64x256xf32>, vector<8x256xf32> -> vector<8x256xf32>
    %236 = arith.index_cast %231 : i32 to index
    %c0_67 = arith.constant 0 : index
    %237 = vector.load %arg6[%236, %c0_67] : memref<80x256xf32, #tpu.memory_space<vmem>>, vector<8x128xf32>
    %238 = vector.extract_strided_slice %235 {offsets = [0, 0], sizes = [8, 128], strides = [1, 1]} : vector<8x256xf32> to vector<8x128xf32>
    %239 = arith.addf %237, %238 : vector<8x128xf32>
    %240 = arith.index_cast %234 : i32 to index
    %c128_68 = arith.constant 128 : index
    %241 = vector.load %arg6[%240, %c128_68] : memref<80x256xf32, #tpu.memory_space<vmem>>, vector<8x128xf32>
    %242 = vector.extract_strided_slice %235 {offsets = [0, 128], sizes = [8, 128], strides = [1, 1]} : vector<8x256xf32> to vector<8x128xf32>
    %243 = arith.addf %241, %242 : vector<8x128xf32>
    %244 = arith.negf %239 : vector<8x128xf32>
    %245 = math.exp %244 : vector<8x128xf32>
    %cst_69 = arith.constant 1.000000e+00 : f32
    %246 = vector.broadcast %cst_69 : f32 to vector<8x128xf32>
    %247 = arith.addf %246, %245 : vector<8x128xf32>
    %248 = arith.divf %246, %247 : vector<8x128xf32>
    %249 = arith.negf %243 : vector<8x128xf32>
    %250 = math.exp %249 : vector<8x128xf32>
    %cst_70 = arith.constant 1.000000e+00 : f32
    %251 = vector.broadcast %cst_70 : f32 to vector<8x128xf32>
    %252 = arith.addf %251, %250 : vector<8x128xf32>
    %253 = arith.divf %251, %252 : vector<8x128xf32>
    %254 = vector.extract_strided_slice %248 {offsets = [0, 32], sizes = [8, 32], strides = [1, 1]} : vector<8x128xf32> to vector<8x32xf32>
    %255 = arith.mulf %254, %208 : vector<8x32xf32>
    %256 = vector.extract_strided_slice %248 {offsets = [0, 0], sizes = [8, 32], strides = [1, 1]} : vector<8x128xf32> to vector<8x32xf32>
    %257 = vector.extract_strided_slice %248 {offsets = [0, 64], sizes = [8, 32], strides = [1, 1]} : vector<8x128xf32> to vector<8x32xf32>
    %cst_71 = arith.constant 2.000000e+00 : f32
    %258 = vector.broadcast %cst_71 : f32 to vector<8x32xf32>
    %259 = arith.mulf %258, %257 : vector<8x32xf32>
    %cst_72 = arith.constant 1.000000e+00 : f32
    %260 = vector.broadcast %cst_72 : f32 to vector<8x32xf32>
    %261 = arith.subf %259, %260 : vector<8x32xf32>
    %262 = arith.mulf %256, %261 : vector<8x32xf32>
    %263 = arith.addf %255, %262 : vector<8x32xf32>
    %264 = vector.extract_strided_slice %253 {offsets = [0, 32], sizes = [8, 32], strides = [1, 1]} : vector<8x128xf32> to vector<8x32xf32>
    %265 = arith.mulf %264, %218 : vector<8x32xf32>
    %266 = vector.extract_strided_slice %253 {offsets = [0, 0], sizes = [8, 32], strides = [1, 1]} : vector<8x128xf32> to vector<8x32xf32>
    %267 = vector.extract_strided_slice %253 {offsets = [0, 64], sizes = [8, 32], strides = [1, 1]} : vector<8x128xf32> to vector<8x32xf32>
    %cst_73 = arith.constant 2.000000e+00 : f32
    %268 = vector.broadcast %cst_73 : f32 to vector<8x32xf32>
    %269 = arith.mulf %268, %267 : vector<8x32xf32>
    %cst_74 = arith.constant 1.000000e+00 : f32
    %270 = vector.broadcast %cst_74 : f32 to vector<8x32xf32>
    %271 = arith.subf %269, %270 : vector<8x32xf32>
    %272 = arith.mulf %266, %271 : vector<8x32xf32>
    %273 = arith.addf %265, %272 : vector<8x32xf32>
    %274 = vector.extract_strided_slice %248 {offsets = [0, 96], sizes = [8, 32], strides = [1, 1]} : vector<8x128xf32> to vector<8x32xf32>
    %275 = math.tanh %263 : vector<8x32xf32>
    %276 = arith.mulf %274, %275 : vector<8x32xf32>
    %277 = vector.extract_strided_slice %253 {offsets = [0, 96], sizes = [8, 32], strides = [1, 1]} : vector<8x128xf32> to vector<8x32xf32>
    %278 = math.tanh %273 : vector<8x32xf32>
    %279 = arith.mulf %277, %278 : vector<8x32xf32>
    %280 = arith.index_cast %231 : i32 to index
    %c0_75 = arith.constant 0 : index
    %281 = vector.load %arg5[%280, %c0_75] : memref<80x64xf32, #tpu.memory_space<vmem>>, vector<8x32xf32>
    tpu.vector_store %arg5[%280, %c0_75], %276 {strides = array<i32>} : memref<80x64xf32, #tpu.memory_space<vmem>>, vector<8x32xf32>,
    %282 = arith.index_cast %234 : i32 to index
    %c32_76 = arith.constant 32 : index
    %283 = vector.load %arg5[%282, %c32_76] : memref<80x64xf32, #tpu.memory_space<vmem>>, vector<8x32xf32>
    tpu.vector_store %arg5[%282, %c32_76], %279 {strides = array<i32>} : memref<80x64xf32, #tpu.memory_space<vmem>>, vector<8x32xf32>,
    %284 = tpu.concatenate %276, %279 in 1 : vector<8x32xf32>, vector<8x32xf32> -> vector<8x64xf32>
    %c5_i32 = arith.constant 5 : i32
    %c8_i32_77 = arith.constant 8 : i32
    %285 = arith.muli %c5_i32, %c8_i32_77 : i32
    %286 = tpu.assume_multiple %285, 8 : i32
    %c9_i32_78 = arith.constant 9 : i32
    %287 = arith.subi %c9_i32_78, %c5_i32 : i32
    %c8_i32_79 = arith.constant 8 : i32
    %288 = arith.muli %287, %c8_i32_79 : i32
    %289 = tpu.assume_multiple %288, 8 : i32
    %cst_80 = arith.constant dense<0.000000e+00> : vector<8x256xf32>
    %290 = tpu.matmul %284, %7, %cst_80 {dimension_numbers = #tpu.dot_dimension_numbers<[1], [0], [0], [1], [0, 0, 1, 1], [], []>} : vector<8x64xf32>, vector<64x256xf32>, vector<8x256xf32> -> vector<8x256xf32>
    %291 = arith.index_cast %286 : i32 to index
    %c0_81 = arith.constant 0 : index
    %292 = vector.load %arg6[%291, %c0_81] : memref<80x256xf32, #tpu.memory_space<vmem>>, vector<8x128xf32>
    %293 = vector.extract_strided_slice %290 {offsets = [0, 0], sizes = [8, 128], strides = [1, 1]} : vector<8x256xf32> to vector<8x128xf32>
    %294 = arith.addf %292, %293 : vector<8x128xf32>
    %295 = arith.index_cast %289 : i32 to index
    %c128_82 = arith.constant 128 : index
    %296 = vector.load %arg6[%295, %c128_82] : memref<80x256xf32, #tpu.memory_space<vmem>>, vector<8x128xf32>
    %297 = vector.extract_strided_slice %290 {offsets = [0, 128], sizes = [8, 128], strides = [1, 1]} : vector<8x256xf32> to vector<8x128xf32>
    %298 = arith.addf %296, %297 : vector<8x128xf32>
    %299 = arith.negf %294 : vector<8x128xf32>
    %300 = math.exp %299 : vector<8x128xf32>
    %cst_83 = arith.constant 1.000000e+00 : f32
    %301 = vector.broadcast %cst_83 : f32 to vector<8x128xf32>
    %302 = arith.addf %301, %300 : vector<8x128xf32>
    %303 = arith.divf %301, %302 : vector<8x128xf32>
    %304 = arith.negf %298 : vector<8x128xf32>
    %305 = math.exp %304 : vector<8x128xf32>
    %cst_84 = arith.constant 1.000000e+00 : f32
    %306 = vector.broadcast %cst_84 : f32 to vector<8x128xf32>
    %307 = arith.addf %306, %305 : vector<8x128xf32>
    %308 = arith.divf %306, %307 : vector<8x128xf32>
    %309 = vector.extract_strided_slice %303 {offsets = [0, 32], sizes = [8, 32], strides = [1, 1]} : vector<8x128xf32> to vector<8x32xf32>
    %310 = arith.mulf %309, %263 : vector<8x32xf32>
    %311 = vector.extract_strided_slice %303 {offsets = [0, 0], sizes = [8, 32], strides = [1, 1]} : vector<8x128xf32> to vector<8x32xf32>
    %312 = vector.extract_strided_slice %303 {offsets = [0, 64], sizes = [8, 32], strides = [1, 1]} : vector<8x128xf32> to vector<8x32xf32>
    %cst_85 = arith.constant 2.000000e+00 : f32
    %313 = vector.broadcast %cst_85 : f32 to vector<8x32xf32>
    %314 = arith.mulf %313, %312 : vector<8x32xf32>
    %cst_86 = arith.constant 1.000000e+00 : f32
    %315 = vector.broadcast %cst_86 : f32 to vector<8x32xf32>
    %316 = arith.subf %314, %315 : vector<8x32xf32>
    %317 = arith.mulf %311, %316 : vector<8x32xf32>
    %318 = arith.addf %310, %317 : vector<8x32xf32>
    %319 = vector.extract_strided_slice %308 {offsets = [0, 32], sizes = [8, 32], strides = [1, 1]} : vector<8x128xf32> to vector<8x32xf32>
    %320 = arith.mulf %319, %273 : vector<8x32xf32>
    %321 = vector.extract_strided_slice %308 {offsets = [0, 0], sizes = [8, 32], strides = [1, 1]} : vector<8x128xf32> to vector<8x32xf32>
    %322 = vector.extract_strided_slice %308 {offsets = [0, 64], sizes = [8, 32], strides = [1, 1]} : vector<8x128xf32> to vector<8x32xf32>
    %cst_87 = arith.constant 2.000000e+00 : f32
    %323 = vector.broadcast %cst_87 : f32 to vector<8x32xf32>
    %324 = arith.mulf %323, %322 : vector<8x32xf32>
    %cst_88 = arith.constant 1.000000e+00 : f32
    %325 = vector.broadcast %cst_88 : f32 to vector<8x32xf32>
    %326 = arith.subf %324, %325 : vector<8x32xf32>
    %327 = arith.mulf %321, %326 : vector<8x32xf32>
    %328 = arith.addf %320, %327 : vector<8x32xf32>
    %329 = vector.extract_strided_slice %303 {offsets = [0, 96], sizes = [8, 32], strides = [1, 1]} : vector<8x128xf32> to vector<8x32xf32>
    %330 = math.tanh %318 : vector<8x32xf32>
    %331 = arith.mulf %329, %330 : vector<8x32xf32>
    %332 = vector.extract_strided_slice %308 {offsets = [0, 96], sizes = [8, 32], strides = [1, 1]} : vector<8x128xf32> to vector<8x32xf32>
    %333 = math.tanh %328 : vector<8x32xf32>
    %334 = arith.mulf %332, %333 : vector<8x32xf32>
    %335 = arith.index_cast %286 : i32 to index
    %c0_89 = arith.constant 0 : index
    %336 = vector.load %arg5[%335, %c0_89] : memref<80x64xf32, #tpu.memory_space<vmem>>, vector<8x32xf32>
    tpu.vector_store %arg5[%335, %c0_89], %331 {strides = array<i32>} : memref<80x64xf32, #tpu.memory_space<vmem>>, vector<8x32xf32>,
    %337 = arith.index_cast %289 : i32 to index
    %c32_90 = arith.constant 32 : index
    %338 = vector.load %arg5[%337, %c32_90] : memref<80x64xf32, #tpu.memory_space<vmem>>, vector<8x32xf32>
    tpu.vector_store %arg5[%337, %c32_90], %334 {strides = array<i32>} : memref<80x64xf32, #tpu.memory_space<vmem>>, vector<8x32xf32>,
    %339 = tpu.concatenate %331, %334 in 1 : vector<8x32xf32>, vector<8x32xf32> -> vector<8x64xf32>
    %c6_i32 = arith.constant 6 : i32
    %c8_i32_91 = arith.constant 8 : i32
    %340 = arith.muli %c6_i32, %c8_i32_91 : i32
    %341 = tpu.assume_multiple %340, 8 : i32
    %c9_i32_92 = arith.constant 9 : i32
    %342 = arith.subi %c9_i32_92, %c6_i32 : i32
    %c8_i32_93 = arith.constant 8 : i32
    %343 = arith.muli %342, %c8_i32_93 : i32
    %344 = tpu.assume_multiple %343, 8 : i32
    %cst_94 = arith.constant dense<0.000000e+00> : vector<8x256xf32>
    %345 = tpu.matmul %339, %7, %cst_94 {dimension_numbers = #tpu.dot_dimension_numbers<[1], [0], [0], [1], [0, 0, 1, 1], [], []>} : vector<8x64xf32>, vector<64x256xf32>, vector<8x256xf32> -> vector<8x256xf32>
    %346 = arith.index_cast %341 : i32 to index
    %c0_95 = arith.constant 0 : index
    %347 = vector.load %arg6[%346, %c0_95] : memref<80x256xf32, #tpu.memory_space<vmem>>, vector<8x128xf32>
    %348 = vector.extract_strided_slice %345 {offsets = [0, 0], sizes = [8, 128], strides = [1, 1]} : vector<8x256xf32> to vector<8x128xf32>
    %349 = arith.addf %347, %348 : vector<8x128xf32>
    %350 = arith.index_cast %344 : i32 to index
    %c128_96 = arith.constant 128 : index
    %351 = vector.load %arg6[%350, %c128_96] : memref<80x256xf32, #tpu.memory_space<vmem>>, vector<8x128xf32>
    %352 = vector.extract_strided_slice %345 {offsets = [0, 128], sizes = [8, 128], strides = [1, 1]} : vector<8x256xf32> to vector<8x128xf32>
    %353 = arith.addf %351, %352 : vector<8x128xf32>
    %354 = arith.negf %349 : vector<8x128xf32>
    %355 = math.exp %354 : vector<8x128xf32>
    %cst_97 = arith.constant 1.000000e+00 : f32
    %356 = vector.broadcast %cst_97 : f32 to vector<8x128xf32>
    %357 = arith.addf %356, %355 : vector<8x128xf32>
    %358 = arith.divf %356, %357 : vector<8x128xf32>
    %359 = arith.negf %353 : vector<8x128xf32>
    %360 = math.exp %359 : vector<8x128xf32>
    %cst_98 = arith.constant 1.000000e+00 : f32
    %361 = vector.broadcast %cst_98 : f32 to vector<8x128xf32>
    %362 = arith.addf %361, %360 : vector<8x128xf32>
    %363 = arith.divf %361, %362 : vector<8x128xf32>
    %364 = vector.extract_strided_slice %358 {offsets = [0, 32], sizes = [8, 32], strides = [1, 1]} : vector<8x128xf32> to vector<8x32xf32>
    %365 = arith.mulf %364, %318 : vector<8x32xf32>
    %366 = vector.extract_strided_slice %358 {offsets = [0, 0], sizes = [8, 32], strides = [1, 1]} : vector<8x128xf32> to vector<8x32xf32>
    %367 = vector.extract_strided_slice %358 {offsets = [0, 64], sizes = [8, 32], strides = [1, 1]} : vector<8x128xf32> to vector<8x32xf32>
    %cst_99 = arith.constant 2.000000e+00 : f32
    %368 = vector.broadcast %cst_99 : f32 to vector<8x32xf32>
    %369 = arith.mulf %368, %367 : vector<8x32xf32>
    %cst_100 = arith.constant 1.000000e+00 : f32
    %370 = vector.broadcast %cst_100 : f32 to vector<8x32xf32>
    %371 = arith.subf %369, %370 : vector<8x32xf32>
    %372 = arith.mulf %366, %371 : vector<8x32xf32>
    %373 = arith.addf %365, %372 : vector<8x32xf32>
    %374 = vector.extract_strided_slice %363 {offsets = [0, 32], sizes = [8, 32], strides = [1, 1]} : vector<8x128xf32> to vector<8x32xf32>
    %375 = arith.mulf %374, %328 : vector<8x32xf32>
    %376 = vector.extract_strided_slice %363 {offsets = [0, 0], sizes = [8, 32], strides = [1, 1]} : vector<8x128xf32> to vector<8x32xf32>
    %377 = vector.extract_strided_slice %363 {offsets = [0, 64], sizes = [8, 32], strides = [1, 1]} : vector<8x128xf32> to vector<8x32xf32>
    %cst_101 = arith.constant 2.000000e+00 : f32
    %378 = vector.broadcast %cst_101 : f32 to vector<8x32xf32>
    %379 = arith.mulf %378, %377 : vector<8x32xf32>
    %cst_102 = arith.constant 1.000000e+00 : f32
    %380 = vector.broadcast %cst_102 : f32 to vector<8x32xf32>
    %381 = arith.subf %379, %380 : vector<8x32xf32>
    %382 = arith.mulf %376, %381 : vector<8x32xf32>
    %383 = arith.addf %375, %382 : vector<8x32xf32>
    %384 = vector.extract_strided_slice %358 {offsets = [0, 96], sizes = [8, 32], strides = [1, 1]} : vector<8x128xf32> to vector<8x32xf32>
    %385 = math.tanh %373 : vector<8x32xf32>
    %386 = arith.mulf %384, %385 : vector<8x32xf32>
    %387 = vector.extract_strided_slice %363 {offsets = [0, 96], sizes = [8, 32], strides = [1, 1]} : vector<8x128xf32> to vector<8x32xf32>
    %388 = math.tanh %383 : vector<8x32xf32>
    %389 = arith.mulf %387, %388 : vector<8x32xf32>
    %390 = arith.index_cast %341 : i32 to index
    %c0_103 = arith.constant 0 : index
    %391 = vector.load %arg5[%390, %c0_103] : memref<80x64xf32, #tpu.memory_space<vmem>>, vector<8x32xf32>
    tpu.vector_store %arg5[%390, %c0_103], %386 {strides = array<i32>} : memref<80x64xf32, #tpu.memory_space<vmem>>, vector<8x32xf32>,
    %392 = arith.index_cast %344 : i32 to index
    %c32_104 = arith.constant 32 : index
    %393 = vector.load %arg5[%392, %c32_104] : memref<80x64xf32, #tpu.memory_space<vmem>>, vector<8x32xf32>
    tpu.vector_store %arg5[%392, %c32_104], %389 {strides = array<i32>} : memref<80x64xf32, #tpu.memory_space<vmem>>, vector<8x32xf32>,
    %394 = tpu.concatenate %386, %389 in 1 : vector<8x32xf32>, vector<8x32xf32> -> vector<8x64xf32>
    %c7_i32 = arith.constant 7 : i32
    %c8_i32_105 = arith.constant 8 : i32
    %395 = arith.muli %c7_i32, %c8_i32_105 : i32
    %396 = tpu.assume_multiple %395, 8 : i32
    %c9_i32_106 = arith.constant 9 : i32
    %397 = arith.subi %c9_i32_106, %c7_i32 : i32
    %c8_i32_107 = arith.constant 8 : i32
    %398 = arith.muli %397, %c8_i32_107 : i32
    %399 = tpu.assume_multiple %398, 8 : i32
    %cst_108 = arith.constant dense<0.000000e+00> : vector<8x256xf32>
    %400 = tpu.matmul %394, %7, %cst_108 {dimension_numbers = #tpu.dot_dimension_numbers<[1], [0], [0], [1], [0, 0, 1, 1], [], []>} : vector<8x64xf32>, vector<64x256xf32>, vector<8x256xf32> -> vector<8x256xf32>
    %401 = arith.index_cast %396 : i32 to index
    %c0_109 = arith.constant 0 : index
    %402 = vector.load %arg6[%401, %c0_109] : memref<80x256xf32, #tpu.memory_space<vmem>>, vector<8x128xf32>
    %403 = vector.extract_strided_slice %400 {offsets = [0, 0], sizes = [8, 128], strides = [1, 1]} : vector<8x256xf32> to vector<8x128xf32>
    %404 = arith.addf %402, %403 : vector<8x128xf32>
    %405 = arith.index_cast %399 : i32 to index
    %c128_110 = arith.constant 128 : index
    %406 = vector.load %arg6[%405, %c128_110] : memref<80x256xf32, #tpu.memory_space<vmem>>, vector<8x128xf32>
    %407 = vector.extract_strided_slice %400 {offsets = [0, 128], sizes = [8, 128], strides = [1, 1]} : vector<8x256xf32> to vector<8x128xf32>
    %408 = arith.addf %406, %407 : vector<8x128xf32>
    %409 = arith.negf %404 : vector<8x128xf32>
    %410 = math.exp %409 : vector<8x128xf32>
    %cst_111 = arith.constant 1.000000e+00 : f32
    %411 = vector.broadcast %cst_111 : f32 to vector<8x128xf32>
    %412 = arith.addf %411, %410 : vector<8x128xf32>
    %413 = arith.divf %411, %412 : vector<8x128xf32>
    %414 = arith.negf %408 : vector<8x128xf32>
    %415 = math.exp %414 : vector<8x128xf32>
    %cst_112 = arith.constant 1.000000e+00 : f32
    %416 = vector.broadcast %cst_112 : f32 to vector<8x128xf32>
    %417 = arith.addf %416, %415 : vector<8x128xf32>
    %418 = arith.divf %416, %417 : vector<8x128xf32>
    %419 = vector.extract_strided_slice %413 {offsets = [0, 32], sizes = [8, 32], strides = [1, 1]} : vector<8x128xf32> to vector<8x32xf32>
    %420 = arith.mulf %419, %373 : vector<8x32xf32>
    %421 = vector.extract_strided_slice %413 {offsets = [0, 0], sizes = [8, 32], strides = [1, 1]} : vector<8x128xf32> to vector<8x32xf32>
    %422 = vector.extract_strided_slice %413 {offsets = [0, 64], sizes = [8, 32], strides = [1, 1]} : vector<8x128xf32> to vector<8x32xf32>
    %cst_113 = arith.constant 2.000000e+00 : f32
    %423 = vector.broadcast %cst_113 : f32 to vector<8x32xf32>
    %424 = arith.mulf %423, %422 : vector<8x32xf32>
    %cst_114 = arith.constant 1.000000e+00 : f32
    %425 = vector.broadcast %cst_114 : f32 to vector<8x32xf32>
    %426 = arith.subf %424, %425 : vector<8x32xf32>
    %427 = arith.mulf %421, %426 : vector<8x32xf32>
    %428 = arith.addf %420, %427 : vector<8x32xf32>
    %429 = vector.extract_strided_slice %418 {offsets = [0, 32], sizes = [8, 32], strides = [1, 1]} : vector<8x128xf32> to vector<8x32xf32>
    %430 = arith.mulf %429, %383 : vector<8x32xf32>
    %431 = vector.extract_strided_slice %418 {offsets = [0, 0], sizes = [8, 32], strides = [1, 1]} : vector<8x128xf32> to vector<8x32xf32>
    %432 = vector.extract_strided_slice %418 {offsets = [0, 64], sizes = [8, 32], strides = [1, 1]} : vector<8x128xf32> to vector<8x32xf32>
    %cst_115 = arith.constant 2.000000e+00 : f32
    %433 = vector.broadcast %cst_115 : f32 to vector<8x32xf32>
    %434 = arith.mulf %433, %432 : vector<8x32xf32>
    %cst_116 = arith.constant 1.000000e+00 : f32
    %435 = vector.broadcast %cst_116 : f32 to vector<8x32xf32>
    %436 = arith.subf %434, %435 : vector<8x32xf32>
    %437 = arith.mulf %431, %436 : vector<8x32xf32>
    %438 = arith.addf %430, %437 : vector<8x32xf32>
    %439 = vector.extract_strided_slice %413 {offsets = [0, 96], sizes = [8, 32], strides = [1, 1]} : vector<8x128xf32> to vector<8x32xf32>
    %440 = math.tanh %428 : vector<8x32xf32>
    %441 = arith.mulf %439, %440 : vector<8x32xf32>
    %442 = vector.extract_strided_slice %418 {offsets = [0, 96], sizes = [8, 32], strides = [1, 1]} : vector<8x128xf32> to vector<8x32xf32>
    %443 = math.tanh %438 : vector<8x32xf32>
    %444 = arith.mulf %442, %443 : vector<8x32xf32>
    %445 = arith.index_cast %396 : i32 to index
    %c0_117 = arith.constant 0 : index
    %446 = vector.load %arg5[%445, %c0_117] : memref<80x64xf32, #tpu.memory_space<vmem>>, vector<8x32xf32>
    tpu.vector_store %arg5[%445, %c0_117], %441 {strides = array<i32>} : memref<80x64xf32, #tpu.memory_space<vmem>>, vector<8x32xf32>,
    %447 = arith.index_cast %399 : i32 to index
    %c32_118 = arith.constant 32 : index
    %448 = vector.load %arg5[%447, %c32_118] : memref<80x64xf32, #tpu.memory_space<vmem>>, vector<8x32xf32>
    tpu.vector_store %arg5[%447, %c32_118], %444 {strides = array<i32>} : memref<80x64xf32, #tpu.memory_space<vmem>>, vector<8x32xf32>,
    %449 = tpu.concatenate %441, %444 in 1 : vector<8x32xf32>, vector<8x32xf32> -> vector<8x64xf32>
    %c8_i32_119 = arith.constant 8 : i32
    %c8_i32_120 = arith.constant 8 : i32
    %450 = arith.muli %c8_i32_119, %c8_i32_120 : i32
    %451 = tpu.assume_multiple %450, 8 : i32
    %c9_i32_121 = arith.constant 9 : i32
    %452 = arith.subi %c9_i32_121, %c8_i32_119 : i32
    %c8_i32_122 = arith.constant 8 : i32
    %453 = arith.muli %452, %c8_i32_122 : i32
    %454 = tpu.assume_multiple %453, 8 : i32
    %cst_123 = arith.constant dense<0.000000e+00> : vector<8x256xf32>
    %455 = tpu.matmul %449, %7, %cst_123 {dimension_numbers = #tpu.dot_dimension_numbers<[1], [0], [0], [1], [0, 0, 1, 1], [], []>} : vector<8x64xf32>, vector<64x256xf32>, vector<8x256xf32> -> vector<8x256xf32>
    %456 = arith.index_cast %451 : i32 to index
    %c0_124 = arith.constant 0 : index
    %457 = vector.load %arg6[%456, %c0_124] : memref<80x256xf32, #tpu.memory_space<vmem>>, vector<8x128xf32>
    %458 = vector.extract_strided_slice %455 {offsets = [0, 0], sizes = [8, 128], strides = [1, 1]} : vector<8x256xf32> to vector<8x128xf32>
    %459 = arith.addf %457, %458 : vector<8x128xf32>
    %460 = arith.index_cast %454 : i32 to index
    %c128_125 = arith.constant 128 : index
    %461 = vector.load %arg6[%460, %c128_125] : memref<80x256xf32, #tpu.memory_space<vmem>>, vector<8x128xf32>
    %462 = vector.extract_strided_slice %455 {offsets = [0, 128], sizes = [8, 128], strides = [1, 1]} : vector<8x256xf32> to vector<8x128xf32>
    %463 = arith.addf %461, %462 : vector<8x128xf32>
    %464 = arith.negf %459 : vector<8x128xf32>
    %465 = math.exp %464 : vector<8x128xf32>
    %cst_126 = arith.constant 1.000000e+00 : f32
    %466 = vector.broadcast %cst_126 : f32 to vector<8x128xf32>
    %467 = arith.addf %466, %465 : vector<8x128xf32>
    %468 = arith.divf %466, %467 : vector<8x128xf32>
    %469 = arith.negf %463 : vector<8x128xf32>
    %470 = math.exp %469 : vector<8x128xf32>
    %cst_127 = arith.constant 1.000000e+00 : f32
    %471 = vector.broadcast %cst_127 : f32 to vector<8x128xf32>
    %472 = arith.addf %471, %470 : vector<8x128xf32>
    %473 = arith.divf %471, %472 : vector<8x128xf32>
    %474 = vector.extract_strided_slice %468 {offsets = [0, 32], sizes = [8, 32], strides = [1, 1]} : vector<8x128xf32> to vector<8x32xf32>
    %475 = arith.mulf %474, %428 : vector<8x32xf32>
    %476 = vector.extract_strided_slice %468 {offsets = [0, 0], sizes = [8, 32], strides = [1, 1]} : vector<8x128xf32> to vector<8x32xf32>
    %477 = vector.extract_strided_slice %468 {offsets = [0, 64], sizes = [8, 32], strides = [1, 1]} : vector<8x128xf32> to vector<8x32xf32>
    %cst_128 = arith.constant 2.000000e+00 : f32
    %478 = vector.broadcast %cst_128 : f32 to vector<8x32xf32>
    %479 = arith.mulf %478, %477 : vector<8x32xf32>
    %cst_129 = arith.constant 1.000000e+00 : f32
    %480 = vector.broadcast %cst_129 : f32 to vector<8x32xf32>
    %481 = arith.subf %479, %480 : vector<8x32xf32>
    %482 = arith.mulf %476, %481 : vector<8x32xf32>
    %483 = arith.addf %475, %482 : vector<8x32xf32>
    %484 = vector.extract_strided_slice %473 {offsets = [0, 32], sizes = [8, 32], strides = [1, 1]} : vector<8x128xf32> to vector<8x32xf32>
    %485 = arith.mulf %484, %438 : vector<8x32xf32>
    %486 = vector.extract_strided_slice %473 {offsets = [0, 0], sizes = [8, 32], strides = [1, 1]} : vector<8x128xf32> to vector<8x32xf32>
    %487 = vector.extract_strided_slice %473 {offsets = [0, 64], sizes = [8, 32], strides = [1, 1]} : vector<8x128xf32> to vector<8x32xf32>
    %cst_130 = arith.constant 2.000000e+00 : f32
    %488 = vector.broadcast %cst_130 : f32 to vector<8x32xf32>
    %489 = arith.mulf %488, %487 : vector<8x32xf32>
    %cst_131 = arith.constant 1.000000e+00 : f32
    %490 = vector.broadcast %cst_131 : f32 to vector<8x32xf32>
    %491 = arith.subf %489, %490 : vector<8x32xf32>
    %492 = arith.mulf %486, %491 : vector<8x32xf32>
    %493 = arith.addf %485, %492 : vector<8x32xf32>
    %494 = vector.extract_strided_slice %468 {offsets = [0, 96], sizes = [8, 32], strides = [1, 1]} : vector<8x128xf32> to vector<8x32xf32>
    %495 = math.tanh %483 : vector<8x32xf32>
    %496 = arith.mulf %494, %495 : vector<8x32xf32>
    %497 = vector.extract_strided_slice %473 {offsets = [0, 96], sizes = [8, 32], strides = [1, 1]} : vector<8x128xf32> to vector<8x32xf32>
    %498 = math.tanh %493 : vector<8x32xf32>
    %499 = arith.mulf %497, %498 : vector<8x32xf32>
    %500 = arith.index_cast %451 : i32 to index
    %c0_132 = arith.constant 0 : index
    %501 = vector.load %arg5[%500, %c0_132] : memref<80x64xf32, #tpu.memory_space<vmem>>, vector<8x32xf32>
    tpu.vector_store %arg5[%500, %c0_132], %496 {strides = array<i32>} : memref<80x64xf32, #tpu.memory_space<vmem>>, vector<8x32xf32>,
    %502 = arith.index_cast %454 : i32 to index
    %c32_133 = arith.constant 32 : index
    %503 = vector.load %arg5[%502, %c32_133] : memref<80x64xf32, #tpu.memory_space<vmem>>, vector<8x32xf32>
    tpu.vector_store %arg5[%502, %c32_133], %499 {strides = array<i32>} : memref<80x64xf32, #tpu.memory_space<vmem>>, vector<8x32xf32>,
    %504 = tpu.concatenate %496, %499 in 1 : vector<8x32xf32>, vector<8x32xf32> -> vector<8x64xf32>
    %c9_i32_134 = arith.constant 9 : i32
    %c8_i32_135 = arith.constant 8 : i32
    %505 = arith.muli %c9_i32_134, %c8_i32_135 : i32
    %506 = tpu.assume_multiple %505, 8 : i32
    %c9_i32_136 = arith.constant 9 : i32
    %507 = arith.subi %c9_i32_136, %c9_i32_134 : i32
    %c8_i32_137 = arith.constant 8 : i32
    %508 = arith.muli %507, %c8_i32_137 : i32
    %509 = tpu.assume_multiple %508, 8 : i32
    %cst_138 = arith.constant dense<0.000000e+00> : vector<8x256xf32>
    %510 = tpu.matmul %504, %7, %cst_138 {dimension_numbers = #tpu.dot_dimension_numbers<[1], [0], [0], [1], [0, 0, 1, 1], [], []>} : vector<8x64xf32>, vector<64x256xf32>, vector<8x256xf32> -> vector<8x256xf32>
    %511 = arith.index_cast %506 : i32 to index
    %c0_139 = arith.constant 0 : index
    %512 = vector.load %arg6[%511, %c0_139] : memref<80x256xf32, #tpu.memory_space<vmem>>, vector<8x128xf32>
    %513 = vector.extract_strided_slice %510 {offsets = [0, 0], sizes = [8, 128], strides = [1, 1]} : vector<8x256xf32> to vector<8x128xf32>
    %514 = arith.addf %512, %513 : vector<8x128xf32>
    %515 = arith.index_cast %509 : i32 to index
    %c128_140 = arith.constant 128 : index
    %516 = vector.load %arg6[%515, %c128_140] : memref<80x256xf32, #tpu.memory_space<vmem>>, vector<8x128xf32>
    %517 = vector.extract_strided_slice %510 {offsets = [0, 128], sizes = [8, 128], strides = [1, 1]} : vector<8x256xf32> to vector<8x128xf32>
    %518 = arith.addf %516, %517 : vector<8x128xf32>
    %519 = arith.negf %514 : vector<8x128xf32>
    %520 = math.exp %519 : vector<8x128xf32>
    %cst_141 = arith.constant 1.000000e+00 : f32
    %521 = vector.broadcast %cst_141 : f32 to vector<8x128xf32>
    %522 = arith.addf %521, %520 : vector<8x128xf32>
    %523 = arith.divf %521, %522 : vector<8x128xf32>
    %524 = arith.negf %518 : vector<8x128xf32>
    %525 = math.exp %524 : vector<8x128xf32>
    %cst_142 = arith.constant 1.000000e+00 : f32
    %526 = vector.broadcast %cst_142 : f32 to vector<8x128xf32>
    %527 = arith.addf %526, %525 : vector<8x128xf32>
    %528 = arith.divf %526, %527 : vector<8x128xf32>
    %529 = vector.extract_strided_slice %523 {offsets = [0, 32], sizes = [8, 32], strides = [1, 1]} : vector<8x128xf32> to vector<8x32xf32>
    %530 = arith.mulf %529, %483 : vector<8x32xf32>
    %531 = vector.extract_strided_slice %523 {offsets = [0, 0], sizes = [8, 32], strides = [1, 1]} : vector<8x128xf32> to vector<8x32xf32>
    %532 = vector.extract_strided_slice %523 {offsets = [0, 64], sizes = [8, 32], strides = [1, 1]} : vector<8x128xf32> to vector<8x32xf32>
    %cst_143 = arith.constant 2.000000e+00 : f32
    %533 = vector.broadcast %cst_143 : f32 to vector<8x32xf32>
    %534 = arith.mulf %533, %532 : vector<8x32xf32>
    %cst_144 = arith.constant 1.000000e+00 : f32
    %535 = vector.broadcast %cst_144 : f32 to vector<8x32xf32>
    %536 = arith.subf %534, %535 : vector<8x32xf32>
    %537 = arith.mulf %531, %536 : vector<8x32xf32>
    %538 = arith.addf %530, %537 : vector<8x32xf32>
    %539 = vector.extract_strided_slice %528 {offsets = [0, 32], sizes = [8, 32], strides = [1, 1]} : vector<8x128xf32> to vector<8x32xf32>
    %540 = arith.mulf %539, %493 : vector<8x32xf32>
    %541 = vector.extract_strided_slice %528 {offsets = [0, 0], sizes = [8, 32], strides = [1, 1]} : vector<8x128xf32> to vector<8x32xf32>
    %542 = vector.extract_strided_slice %528 {offsets = [0, 64], sizes = [8, 32], strides = [1, 1]} : vector<8x128xf32> to vector<8x32xf32>
    %cst_145 = arith.constant 2.000000e+00 : f32
    %543 = vector.broadcast %cst_145 : f32 to vector<8x32xf32>
    %544 = arith.mulf %543, %542 : vector<8x32xf32>
    %cst_146 = arith.constant 1.000000e+00 : f32
    %545 = vector.broadcast %cst_146 : f32 to vector<8x32xf32>
    %546 = arith.subf %544, %545 : vector<8x32xf32>
    %547 = arith.mulf %541, %546 : vector<8x32xf32>
    %548 = arith.addf %540, %547 : vector<8x32xf32>
    %549 = vector.extract_strided_slice %523 {offsets = [0, 96], sizes = [8, 32], strides = [1, 1]} : vector<8x128xf32> to vector<8x32xf32>
    %550 = math.tanh %538 : vector<8x32xf32>
    %551 = arith.mulf %549, %550 : vector<8x32xf32>
    %552 = vector.extract_strided_slice %528 {offsets = [0, 96], sizes = [8, 32], strides = [1, 1]} : vector<8x128xf32> to vector<8x32xf32>
    %553 = math.tanh %548 : vector<8x32xf32>
    %554 = arith.mulf %552, %553 : vector<8x32xf32>
    %555 = arith.index_cast %506 : i32 to index
    %c0_147 = arith.constant 0 : index
    %556 = vector.load %arg5[%555, %c0_147] : memref<80x64xf32, #tpu.memory_space<vmem>>, vector<8x32xf32>
    tpu.vector_store %arg5[%555, %c0_147], %551 {strides = array<i32>} : memref<80x64xf32, #tpu.memory_space<vmem>>, vector<8x32xf32>,
    %557 = arith.index_cast %509 : i32 to index
    %c32_148 = arith.constant 32 : index
    %558 = vector.load %arg5[%557, %c32_148] : memref<80x64xf32, #tpu.memory_space<vmem>>, vector<8x32xf32>
    tpu.vector_store %arg5[%557, %c32_148], %554 {strides = array<i32>} : memref<80x64xf32, #tpu.memory_space<vmem>>, vector<8x32xf32>,
    %559 = tpu.concatenate %551, %554 in 1 : vector<8x32xf32>, vector<8x32xf32> -> vector<8x64xf32>
    %c10_i32 = arith.constant 10 : i32
    return
  }
  func.func @transform_0(%arg0: i32) -> (i32, i32) {
    %c0_i32 = arith.constant 0 : i32
    %c0_i32_0 = arith.constant 0 : i32
    %c0_i32_1 = arith.constant 0 : i32
    return %c0_i32, %c0_i32_0 : i32, i32
  }
  func.func @transform_1(%arg0: i32) -> (i32, i32) {
    %c0_i32 = arith.constant 0 : i32
    %c0_i32_0 = arith.constant 0 : i32
    %c0_i32_1 = arith.constant 0 : i32
    return %c0_i32, %c0_i32_0 : i32, i32
  }
  func.func @transform_2(%arg0: i32) -> (i32, i32) {
    %c0_i32 = arith.constant 0 : i32
    %c0_i32_0 = arith.constant 0 : i32
    %c0_i32_1 = arith.constant 0 : i32
    return %c0_i32, %c0_i32_0 : i32, i32
  }
  func.func @transform_3(%arg0: i32) -> (i32, i32) {
    %c0_i32 = arith.constant 0 : i32
    %c0_i32_0 = arith.constant 0 : i32
    %c0_i32_1 = arith.constant 0 : i32
    return %c0_i32, %c0_i32_0 : i32, i32
  }
  func.func @transform_4(%arg0: i32) -> (i32, i32) {
    %c0_i32 = arith.constant 0 : i32
    %c0_i32_0 = arith.constant 0 : i32
    %c0_i32_1 = arith.constant 0 : i32
    return %c0_i32, %c0_i32_0 : i32, i32
  }
}

</mosaic_0001>

<llo_original>
// kernel: _lambda_.3
$region0: #{_lambda_.3}
  #allocation0 [shape = 'u32[]', space=smem, size = 0x4, offset = 0x4, fixed_abs, tag = 'smem constant byte address 0x4 - core index']
  #allocation1 [shape = 'u32[72,128]{1,0:T(1,128)}', space=vmem, size = 0x9000, scoped, tag = 'internal scratch']
  #allocation2 [shape = 'f32[80,256]{1,0:T(8,128)}', space=vmem, size = 0x14000, scoped, tag = 'scratch operand']
  #allocation3 [shape = 'f32[1,1]{1,0:T(1,128)S(1)}', space=vmem, size = 0x200, scoped, tag = 'scoped memory for _lambda_.3']
  %s0 = inlined_call_operand.vmem [shape: f32[80,64], index: 0, kind: input, shape index: {}]
  %s1 = inlined_call_operand.vmem [shape: f32[64,256], index: 1, kind: input, shape index: {}]
  %s2 = inlined_call_operand.vmem [shape: f32[64,256], index: 2, kind: input, shape index: {}]
  %s3 = inlined_call_operand.vmem [shape: f32[1,256], index: 3, kind: input, shape index: {}]
  %s4 = inlined_call_operand.vmem [shape: f32[1,64], index: 4, kind: input, shape index: {}]
  %s5 = inlined_call_operand.<no memory space> [shape: f32[1,1], index: 5, kind: input, shape index: {}]
  %s6 = inlined_call_operand.vmem [shape: f32[80,1], index: 6, kind: output, shape index: {}]
  %s7 = sld [smem:[#allocation0]]
  $region34: #{_lambda_.3} parent=0
    _
  %s9 = ssub.s32 1, %s7
  %s10 = scalar_select 0, %s9, %s7
  %v11 = vstv %s5
  %12 = vst [vmem:[#allocation3] sm:$0x1] %v11
  // Predicated region
  $region2: #{_lambda_.3} parent=0 // pred_check
    _
  $region3: #{_lambda_.3} parent=0 // pred_check_branch
    %14 = sbr.rel (0) target = $region5
  $region4: #{_lambda_.3} parent=0 // pred_region
    _
  $region5: #{_lambda_.3} parent=0 // pred_fallthru
    _
  // Predicated region
  $region6: #{_lambda_.3} parent=0 // pred_check
    _
  $region7: #{_lambda_.3} parent=0 // pred_check_branch
    %16 = sbr.rel (0) target = $region9
  $region8: #{_lambda_.3} parent=0 // pred_region
    _
  $region9: #{_lambda_.3} parent=0 // pred_fallthru
    _
  // Predicated region
  $region10: #{_lambda_.3} parent=0 // pred_check
    _
  $region11: #{_lambda_.3} parent=0 // pred_check_branch
    %18 = sbr.rel (0) target = $region13
  $region12: #{_lambda_.3} parent=0 // pred_region
    _
  $region13: #{_lambda_.3} parent=0 // pred_fallthru
    _
  // Predicated region
  $region14: #{_lambda_.3} parent=0 // pred_check
    _
  $region15: #{_lambda_.3} parent=0 // pred_check_branch
    %20 = sbr.rel (0) target = $region17
  $region16: #{_lambda_.3} parent=0 // pred_region
    _
  $region17: #{_lambda_.3} parent=0 // pred_fallthru
    _
  // Predicated region
  $region18: #{_lambda_.3} parent=0 // pred_check
    _
  $region19: #{_lambda_.3} parent=0 // pred_check_branch
    %22 = sbr.rel (0) target = $region21
  $region20: #{_lambda_.3} parent=0 // pred_region
    _
  $region21: #{_lambda_.3} parent=0 // pred_fallthru
    _
  // Predicated region
  $region22: #{_lambda_.3} parent=0 // pred_check
    _
  $region23: #{_lambda_.3} parent=0 // pred_check_branch
    %24 = sbr.rel (0) target = $region25
  $region24: #{_lambda_.3} parent=0 // pred_region
    _
  $region25: #{_lambda_.3} parent=0 // pred_fallthru
    _
  %v25 = vld [vmem:[%s0] sm:$0xff]
  %v26 = vld [vmem:[%s0 + $0x8] sm:$0xff]
  %v27 = vld [vmem:[%s0 + $0x10] sm:$0xff]
  %v28 = vld [vmem:[%s0 + $0x18] sm:$0xff]
  %v29 = vld [vmem:[%s0 + $0x20] sm:$0xff]
  %v30 = vld [vmem:[%s0 + $0x28] sm:$0xff]
  %v31 = vld [vmem:[%s0 + $0x30] sm:$0xff]
  %v32 = vld [vmem:[%s0 + $0x38] sm:$0xff]
  %v33 = vld [vmem:[%s0 + $0x40] sm:$0xff]
  %v34 = vld [vmem:[%s0 + $0x48] sm:$0xff]
  %v35 = vld [vmem:[%s1] sm:$0xff]
  %v36 = vld [vmem:[%s1 + $0x8] sm:$0xff]
  %v37 = vld [vmem:[%s1 + $0x10] sm:$0xff]
  %v38 = vld [vmem:[%s1 + $0x18] sm:$0xff]
  %v39 = vld [vmem:[%s1 + $0x20] sm:$0xff]
  %v40 = vld [vmem:[%s1 + $0x28] sm:$0xff]
  %v41 = vld [vmem:[%s1 + $0x30] sm:$0xff]
  %v42 = vld [vmem:[%s1 + $0x38] sm:$0xff]
  %v43 = vld [vmem:[%s1 + $0x40] sm:$0xff]
  %v44 = vld [vmem:[%s1 + $0x48] sm:$0xff]
  %v45 = vld [vmem:[%s1 + $0x50] sm:$0xff]
  %v46 = vld [vmem:[%s1 + $0x58] sm:$0xff]
  %v47 = vld [vmem:[%s1 + $0x60] sm:$0xff]
  %v48 = vld [vmem:[%s1 + $0x68] sm:$0xff]
  %v49 = vld [vmem:[%s1 + $0x70] sm:$0xff]
  %v50 = vld [vmem:[%s1 + $0x78] sm:$0xff]
  %v51 = vld [vmem:[%s3] sm:$0x3]
  %v53 = vperm.slane %v51, 0
  %v54 = vperm.slane %v51, 1
  %vm57 = vcmask 523264
  %v59 = vsel %vm57, %v25, 0
  %v62 = vsel %vm57, %v26, 0
  %v65 = vsel %vm57, %v27, 0
  %v68 = vsel %vm57, %v28, 0
  %v71 = vsel %vm57, %v29, 0
  %v74 = vsel %vm57, %v30, 0
  %v77 = vsel %vm57, %v31, 0
  %v80 = vsel %vm57, %v32, 0
  %v83 = vsel %vm57, %v33, 0
  %v86 = vsel %vm57, %v34, 0
  %88 = vmatpush.msra.mxu0 0.0
  %89 = vmatpush.msra.mxu0 0.0
  %90 = vmatpush.msra.mxu0 0.0
  %91 = vmatpush.msra.mxu0 0.0
  %92 = vmatpush.msra.mxu0 0.0
  %93 = vmatpush.msra.mxu0 0.0
  %94 = vmatpush.msra.mxu0 0.0
  %95 = vmatpush.msra.mxu0 0.0
  %96 = vmatpush.msra.mxu0 %v49
  %97 = vmatpush.msra.mxu0 %v47
  %98 = vmatpush.msra.mxu0 %v45
  %99 = vmatpush.msra.mxu0 %v43
  %100 = vmatpush.msra.mxu0 %v41
  %101 = vmatpush.msra.mxu0 %v39
  %102 = vmatpush.msra.mxu0 %v37
  %103 = vmatpush.msra.mxu0 %v35
  %104 = vmatmul.f32.gmra.mxu0 %v59
  %v105 = vpop.f32.mrf.mxu0
  %v106 = vadd.f32 %v53, %v105
  %107 = vmatmul.f32.gmra.mxu0 %v62
  %v108 = vpop.f32.mrf.mxu0
  %v109 = vadd.f32 %v53, %v108
  %110 = vmatmul.f32.gmra.mxu0 %v65
  %v111 = vpop.f32.mrf.mxu0
  %v112 = vadd.f32 %v53, %v111
  %113 = vmatmul.f32.gmra.mxu0 %v68
  %v114 = vpop.f32.mrf.mxu0
  %v115 = vadd.f32 %v53, %v114
  %116 = vmatmul.f32.gmra.mxu0 %v71
  %v117 = vpop.f32.mrf.mxu0
  %v118 = vadd.f32 %v53, %v117
  %119 = vmatmul.f32.gmra.mxu0 %v74
  %v120 = vpop.f32.mrf.mxu0
  %v121 = vadd.f32 %v53, %v120
  %122 = vmatmul.f32.gmra.mxu0 %v77
  %v123 = vpop.f32.mrf.mxu0
  %v124 = vadd.f32 %v53, %v123
  %125 = vmatmul.f32.gmra.mxu0 %v80
  %v126 = vpop.f32.mrf.mxu0
  %v127 = vadd.f32 %v53, %v126
  %128 = vmatmul.f32.gmra.mxu0 %v83
  %v129 = vpop.f32.mrf.mxu0
  %v130 = vadd.f32 %v53, %v129
  %131 = vmatmul.f32.gmra.mxu0 %v86
  %v132 = vpop.f32.mrf.mxu0
  %v133 = vadd.f32 %v53, %v132
  %134 = vdwg.mxu0
  %135 = vmatpush.msra.mxu0 0.0
  %136 = vmatpush.msra.mxu0 0.0
  %137 = vmatpush.msra.mxu0 0.0
  %138 = vmatpush.msra.mxu0 0.0
  %139 = vmatpush.msra.mxu0 0.0
  %140 = vmatpush.msra.mxu0 0.0
  %141 = vmatpush.msra.mxu0 0.0
  %142 = vmatpush.msra.mxu0 0.0
  %143 = vmatpush.msra.mxu0 %v50
  %144 = vmatpush.msra.mxu0 %v48
  %145 = vmatpush.msra.mxu0 %v46
  %146 = vmatpush.msra.mxu0 %v44
  %147 = vmatpush.msra.mxu0 %v42
  %148 = vmatpush.msra.mxu0 %v40
  %149 = vmatpush.msra.mxu0 %v38
  %150 = vmatpush.msra.mxu0 %v36
  %151 = vmatmul.f32.gmra.mxu0 %v59
  %v152 = vpop.f32.mrf.mxu0
  %v153 = vadd.f32 %v54, %v152
  %154 = vmatmul.f32.gmra.mxu0 %v62
  %v155 = vpop.f32.mrf.mxu0
  %v156 = vadd.f32 %v54, %v155
  %157 = vmatmul.f32.gmra.mxu0 %v65
  %v158 = vpop.f32.mrf.mxu0
  %v159 = vadd.f32 %v54, %v158
  %160 = vmatmul.f32.gmra.mxu0 %v68
  %v161 = vpop.f32.mrf.mxu0
  %v162 = vadd.f32 %v54, %v161
  %163 = vmatmul.f32.gmra.mxu0 %v71
  %v164 = vpop.f32.mrf.mxu0
  %v165 = vadd.f32 %v54, %v164
  %166 = vmatmul.f32.gmra.mxu0 %v74
  %v167 = vpop.f32.mrf.mxu0
  %v168 = vadd.f32 %v54, %v167
  %169 = vmatmul.f32.gmra.mxu0 %v77
  %v170 = vpop.f32.mrf.mxu0
  %v171 = vadd.f32 %v54, %v170
  %172 = vmatmul.f32.gmra.mxu0 %v80
  %v173 = vpop.f32.mrf.mxu0
  %v174 = vadd.f32 %v54, %v173
  %175 = vmatmul.f32.gmra.mxu0 %v83
  %v176 = vpop.f32.mrf.mxu0
  %v177 = vadd.f32 %v54, %v176
  %178 = vmatmul.f32.gmra.mxu0 %v86
  %v179 = vpop.f32.mrf.mxu0
  %v180 = vadd.f32 %v54, %v179
  %181 = vdwg.mxu0
  %182 = vst [vmem:[#allocation2] sm:$0xff] %v106
  %183 = vst [vmem:[#allocation2 + $0x8] sm:$0xff] %v153
  %184 = vst [vmem:[#allocation2 + $0x10] sm:$0xff] %v109
  %185 = vst [vmem:[#allocation2 + $0x18] sm:$0xff] %v156
  %186 = vst [vmem:[#allocation2 + $0x20] sm:$0xff] %v112
  %187 = vst [vmem:[#allocation2 + $0x28] sm:$0xff] %v159
  %188 = vst [vmem:[#allocation2 + $0x30] sm:$0xff] %v115
  %189 = vst [vmem:[#allocation2 + $0x38] sm:$0xff] %v162
  %190 = vst [vmem:[#allocation2 + $0x40] sm:$0xff] %v118
  %191 = vst [vmem:[#allocation2 + $0x48] sm:$0xff] %v165
  %192 = vst [vmem:[#allocation2 + $0x50] sm:$0xff] %v121
  %193 = vst [vmem:[#allocation2 + $0x58] sm:$0xff] %v168
  %194 = vst [vmem:[#allocation2 + $0x60] sm:$0xff] %v124
  %195 = vst [vmem:[#allocation2 + $0x68] sm:$0xff] %v171
  %196 = vst [vmem:[#allocation2 + $0x70] sm:$0xff] %v127
  %197 = vst [vmem:[#allocation2 + $0x78] sm:$0xff] %v174
  %198 = vst [vmem:[#allocation2 + $0x80] sm:$0xff] %v130
  %199 = vst [vmem:[#allocation2 + $0x88] sm:$0xff] %v177
  %200 = vst [vmem:[#allocation2 + $0x90] sm:$0xff] %v133
  %201 = vst [vmem:[#allocation2 + $0x98] sm:$0xff] %v180
  %v202 = vld [vmem:[%s2] sm:$0xff]
  %v203 = vld [vmem:[%s2 + $0x8] sm:$0xff]
  %v204 = vld [vmem:[%s2 + $0x10] sm:$0xff]
  %v205 = vld [vmem:[%s2 + $0x18] sm:$0xff]
  %v206 = vld [vmem:[%s2 + $0x20] sm:$0xff]
  %v207 = vld [vmem:[%s2 + $0x28] sm:$0xff]
  %v208 = vld [vmem:[%s2 + $0x30] sm:$0xff]
  %v209 = vld [vmem:[%s2 + $0x38] sm:$0xff]
  %v210 = vld [vmem:[%s2 + $0x40] sm:$0xff]
  %v211 = vld [vmem:[%s2 + $0x48] sm:$0xff]
  %v212 = vld [vmem:[%s2 + $0x50] sm:$0xff]
  %v213 = vld [vmem:[%s2 + $0x58] sm:$0xff]
  %v214 = vld [vmem:[%s2 + $0x60] sm:$0xff]
  %v215 = vld [vmem:[%s2 + $0x68] sm:$0xff]
  %v216 = vld [vmem:[%s2 + $0x70] sm:$0xff]
  %v217 = vld [vmem:[%s2 + $0x78] sm:$0xff]
  %v218 = vld [vmem:[%s4] sm:$0x1]
  %v219 = vld [vmem:[#allocation3] sm:$0x1]
  %v221 = vperm.slane %v219, 0
  %v223 = vadd.f32 %v221, 0.0
  %vm224 = vcmask 7168
  %225 = vst.msk [vmem:[%s6] sm:$0xff] %vm224, %v223
  %226 = vst.msk [vmem:[%s6 + $0x8] sm:$0xff] %vm224, %v223
  %227 = vst.msk [vmem:[%s6 + $0x10] sm:$0xff] %vm224, %v223
  %228 = vst.msk [vmem:[%s6 + $0x18] sm:$0xff] %vm224, %v223
  %229 = vst.msk [vmem:[%s6 + $0x20] sm:$0xff] %vm224, %v223
  %230 = vst.msk [vmem:[%s6 + $0x28] sm:$0xff] %vm224, %v223
  %231 = vst.msk [vmem:[%s6 + $0x30] sm:$0xff] %vm224, %v223
  %232 = vst.msk [vmem:[%s6 + $0x38] sm:$0xff] %vm224, %v223
  %233 = vst.msk [vmem:[%s6 + $0x40] sm:$0xff] %vm224, %v223
  %234 = vst.msk [vmem:[%s6 + $0x48] sm:$0xff] %vm224, %v223
  %v236 = vsel %vm57, 0.0, 0
  %238 = vmatpush.msra.mxu0 0.0
  %239 = vmatpush.msra.mxu0 0.0
  %240 = vmatpush.msra.mxu0 0.0
  %241 = vmatpush.msra.mxu0 0.0
  %242 = vmatpush.msra.mxu0 0.0
  %243 = vmatpush.msra.mxu0 0.0
  %244 = vmatpush.msra.mxu0 0.0
  %245 = vmatpush.msra.mxu0 0.0
  %246 = vmatpush.msra.mxu0 %v216
  %247 = vmatpush.msra.mxu0 %v214
  %248 = vmatpush.msra.mxu0 %v212
  %249 = vmatpush.msra.mxu0 %v210
  %250 = vmatpush.msra.mxu0 %v208
  %251 = vmatpush.msra.mxu0 %v206
  %252 = vmatpush.msra.mxu0 %v204
  %253 = vmatpush.msra.mxu0 %v202
  %254 = vmatmul.f32.gmra.mxu0 %v236
  %v255 = vpop.f32.mrf.mxu0
  %v256 = vadd.f32 0.0, %v255
  %257 = vdwg.mxu0
  %258 = vmatpush.msra.mxu0 0.0
  %259 = vmatpush.msra.mxu0 0.0
  %260 = vmatpush.msra.mxu0 0.0
  %261 = vmatpush.msra.mxu0 0.0
  %262 = vmatpush.msra.mxu0 0.0
  %263 = vmatpush.msra.mxu0 0.0
  %264 = vmatpush.msra.mxu0 0.0
  %265 = vmatpush.msra.mxu0 0.0
  %266 = vmatpush.msra.mxu0 %v217
  %267 = vmatpush.msra.mxu0 %v215
  %268 = vmatpush.msra.mxu0 %v213
  %269 = vmatpush.msra.mxu0 %v211
  %270 = vmatpush.msra.mxu0 %v209
  %271 = vmatpush.msra.mxu0 %v207
  %272 = vmatpush.msra.mxu0 %v205
  %273 = vmatpush.msra.mxu0 %v203
  %274 = vmatmul.f32.gmra.mxu0 %v236
  %v275 = vpop.f32.mrf.mxu0
  %v276 = vadd.f32 0.0, %v275
  %277 = vdwg.mxu0
  %s278 = smul.u32 0, 2
  %s279 = smul.addr %s278, 8
  %s280 = scalar_lea.vmem [#allocation2], %s279
  %v281 = vld [vmem:[%s280] sm:$0xff]
  %v282 = vadd.f32 %v281, %v256
  %s283 = smul.u32 9, 2
  %s284 = smul.addr %s283, 8
  %s285 = scalar_lea.vmem [#allocation2], %s284
  %v286 = vld [vmem:[%s285 + $0x8] sm:$0xff]
  %v287 = vadd.f32 %v286, %v276
  %v288 = vxor.u32 %v282, 2147483648
  %v289 = vmul.f32 %v288, 1.442695
  %v290 = vpow.pop %v289
  %v291 = vadd.f32 %v290, 1.0
  %v292 = vrcp.pop %v291
  %v293 = vmul.f32 %v291, %v292
  %v294 = vsub.f32 1.0, %v293
  %v295 = vmul.f32 %v292, %v294
  %v296 = vadd.f32 %v292, %v295
  %vm297 = vweird.f32 %v291
  %vm298 = vweird.f32 %v292
  %vm299 = vmor %vm297, %vm298
  %v300 = vsel %vm299, %v292, %v296
  %v301 = vand.u32 2147483647, %v291
  %vm302 = vcmp.eq.f32.partialorder %v301, 8.507059e+37
  %v303 = vand.u32 %v291, 2147483648
  %v304 = vor.u32 1.1754944e-38, %v303
  %v305 = vsel %vm302, %v304, %v300
  %v306 = vmul.f32 1.0, %v305
  %v307 = vxor.u32 %v287, 2147483648
  %v308 = vmul.f32 %v307, 1.442695
  %v309 = vpow.pop %v308
  %v310 = vadd.f32 %v309, 1.0
  %v311 = vrcp.pop %v310
  %v312 = vmul.f32 %v310, %v311
  %v313 = vsub.f32 1.0, %v312
  %v314 = vmul.f32 %v311, %v313
  %v315 = vadd.f32 %v311, %v314
  %vm316 = vweird.f32 %v310
  %vm317 = vweird.f32 %v311
  %vm318 = vmor %vm316, %vm317
  %v319 = vsel %vm318, %v311, %v315
  %v320 = vand.u32 2147483647, %v310
  %vm321 = vcmp.eq.f32.partialorder %v320, 8.507059e+37
  %v322 = vand.u32 %v310, 2147483648
  %v323 = vor.u32 1.1754944e-38, %v322
  %v324 = vsel %vm321, %v323, %v319
  %v325 = vmul.f32 1.0, %v324
  %v326 = vmul.f32 %v306, 0.0
  %v327 = vmul.f32 %v306, 2.0
  %v328 = vsub.f32 %v327, 1.0
  %330 = vrot.lane.b32.xlu0 %v328, 64
  %v331 = vpop.permute.xlu0 %330
  %v333 = vmul.f32 %v306, %v331
  %335 = vrot.lane.b32.xlu0 %v333, 32
  %v336 = vpop.permute.xlu0 %335
  %v338 = vadd.f32 %v326, %v336
  %v339 = vmul.f32 %v325, 0.0
  %v340 = vmul.f32 %v325, 2.0
  %v341 = vsub.f32 %v340, 1.0
  %343 = vrot.lane.b32.xlu0 %v341, 64
  %v344 = vpop.permute.xlu0 %343
  %v346 = vmul.f32 %v325, %v344
  %348 = vrot.lane.b32.xlu0 %v346, 32
  %v349 = vpop.permute.xlu0 %348
  %v351 = vadd.f32 %v339, %v349
  %v352 = vtanh.pop %v338
  %354 = vrot.lane.b32.xlu0 %v352, 64
  %v355 = vpop.permute.xlu0 %354
  %v357 = vmul.f32 %v306, %v355
  %v358 = vtanh.pop %v351
  %360 = vrot.lane.b32.xlu0 %v358, 64
  %v361 = vpop.permute.xlu0 %360
  %v363 = vmul.f32 %v325, %v361
  %v365 = vperm.slane %v218, 0
  %366 = vrot.lane.b32.xlu0 %v365, 96
  %v367 = vpop.permute.xlu0 %366
  %v369 = vmul.f32 %v357, %v367
  %371 = vrot.lane.b32.xlu0 %v369, 32
  %v372 = vpop.permute.xlu0 %371
  %vm374 = vcmask 261120
  %v375 = vsel %vm374, %v372, 0.0
  %376 = vadd.xlane.f32.xlu0 %v375
  %v377 = vpop.xlane.xlu0 %376
  %378 = vrot.lane.b32.xlu0 %v365, 64
  %v379 = vpop.permute.xlu0 %378
  %v381 = vmul.f32 %v363, %v379
  %383 = vrot.lane.b32.xlu0 %v381, 32
  %v384 = vpop.permute.xlu0 %383
  %v386 = vsel %vm374, %v384, 0.0
  %387 = vadd.xlane.f32.xlu0 %v386
  %v388 = vpop.xlane.xlu0 %387
  %v389 = vld [vmem:[%s6] sm:$0xff]
  %v390 = vadd.f32 %v389, %v377
  %391 = vst.msk [vmem:[%s6] sm:$0xff] %vm224, %v390
  %s392 = scalar_lea.vmem %s6, 72
  %v393 = vld [vmem:[%s392] sm:$0xff]
  %v394 = vadd.f32 %v393, %v388
  %395 = vst.msk [vmem:[%s392] sm:$0xff] %vm224, %v394
  %397 = vrot.lane.b32.xlu0 %v357, 32
  %v398 = vpop.permute.xlu0 %397
  %401 = vrot.lane.b32.xlu0 %v363, 64
  %v402 = vpop.permute.xlu0 %401
  %v404 = vsel %vm374, %v398, %v402
  %v406 = vsel %vm57, %v404, 0
  %408 = vmatpush.msra.mxu0 0.0
  %409 = vmatpush.msra.mxu0 0.0
  %410 = vmatpush.msra.mxu0 0.0
  %411 = vmatpush.msra.mxu0 0.0
  %412 = vmatpush.msra.mxu0 0.0
  %413 = vmatpush.msra.mxu0 0.0
  %414 = vmatpush.msra.mxu0 0.0
  %415 = vmatpush.msra.mxu0 0.0
  %416 = vmatpush.msra.mxu0 %v216
  %417 = vmatpush.msra.mxu0 %v214
  %418 = vmatpush.msra.mxu0 %v212
  %419 = vmatpush.msra.mxu0 %v210
  %420 = vmatpush.msra.mxu0 %v208
  %421 = vmatpush.msra.mxu0 %v206
  %422 = vmatpush.msra.mxu0 %v204
  %423 = vmatpush.msra.mxu0 %v202
  %424 = vmatmul.f32.gmra.mxu0 %v406
  %v425 = vpop.f32.mrf.mxu0
  %v426 = vadd.f32 0.0, %v425
  %427 = vdwg.mxu0
  %428 = vmatpush.msra.mxu0 0.0
  %429 = vmatpush.msra.mxu0 0.0
  %430 = vmatpush.msra.mxu0 0.0
  %431 = vmatpush.msra.mxu0 0.0
  %432 = vmatpush.msra.mxu0 0.0
  %433 = vmatpush.msra.mxu0 0.0
  %434 = vmatpush.msra.mxu0 0.0
  %435 = vmatpush.msra.mxu0 0.0
  %436 = vmatpush.msra.mxu0 %v217
  %437 = vmatpush.msra.mxu0 %v215
  %438 = vmatpush.msra.mxu0 %v213
  %439 = vmatpush.msra.mxu0 %v211
  %440 = vmatpush.msra.mxu0 %v209
  %441 = vmatpush.msra.mxu0 %v207
  %442 = vmatpush.msra.mxu0 %v205
  %443 = vmatpush.msra.mxu0 %v203
  %444 = vmatmul.f32.gmra.mxu0 %v406
  %v445 = vpop.f32.mrf.mxu0
  %v446 = vadd.f32 0.0, %v445
  %447 = vdwg.mxu0
  %s448 = smul.u32 1, 2
  %s449 = smul.addr %s448, 8
  %s450 = scalar_lea.vmem [#allocation2], %s449
  %v451 = vld [vmem:[%s450] sm:$0xff]
  %v452 = vadd.f32 %v451, %v426
  %s453 = smul.u32 8, 2
  %s454 = smul.addr %s453, 8
  %s455 = scalar_lea.vmem [#allocation2], %s454
  %v456 = vld [vmem:[%s455 + $0x8] sm:$0xff]
  %v457 = vadd.f32 %v456, %v446
  %v458 = vxor.u32 %v452, 2147483648
  %v459 = vmul.f32 %v458, 1.442695
  %v460 = vpow.pop %v459
  %v461 = vadd.f32 %v460, 1.0
  %v462 = vrcp.pop %v461
  %v463 = vmul.f32 %v461, %v462
  %v464 = vsub.f32 1.0, %v463
  %v465 = vmul.f32 %v462, %v464
  %v466 = vadd.f32 %v462, %v465
  %vm467 = vweird.f32 %v461
  %vm468 = vweird.f32 %v462
  %vm469 = vmor %vm467, %vm468
  %v470 = vsel %vm469, %v462, %v466
  %v471 = vand.u32 2147483647, %v461
  %vm472 = vcmp.eq.f32.partialorder %v471, 8.507059e+37
  %v473 = vand.u32 %v461, 2147483648
  %v474 = vor.u32 1.1754944e-38, %v473
  %v475 = vsel %vm472, %v474, %v470
  %v476 = vmul.f32 1.0, %v475
  %v477 = vxor.u32 %v457, 2147483648
  %v478 = vmul.f32 %v477, 1.442695
  %v479 = vpow.pop %v478
  %v480 = vadd.f32 %v479, 1.0
  %v481 = vrcp.pop %v480
  %v482 = vmul.f32 %v480, %v481
  %v483 = vsub.f32 1.0, %v482
  %v484 = vmul.f32 %v481, %v483
  %v485 = vadd.f32 %v481, %v484
  %vm486 = vweird.f32 %v480
  %vm487 = vweird.f32 %v481
  %vm488 = vmor %vm486, %vm487
  %v489 = vsel %vm488, %v481, %v485
  %v490 = vand.u32 2147483647, %v480
  %vm491 = vcmp.eq.f32.partialorder %v490, 8.507059e+37
  %v492 = vand.u32 %v480, 2147483648
  %v493 = vor.u32 1.1754944e-38, %v492
  %v494 = vsel %vm491, %v493, %v489
  %v495 = vmul.f32 1.0, %v494
  %v496 = vmul.f32 %v476, %v338
  %v497 = vmul.f32 %v476, 2.0
  %v498 = vsub.f32 %v497, 1.0
  %500 = vrot.lane.b32.xlu0 %v498, 64
  %v501 = vpop.permute.xlu0 %500
  %v503 = vmul.f32 %v476, %v501
  %505 = vrot.lane.b32.xlu0 %v503, 32
  %v506 = vpop.permute.xlu0 %505
  %v508 = vadd.f32 %v496, %v506
  %v509 = vmul.f32 %v495, %v351
  %v510 = vmul.f32 %v495, 2.0
  %v511 = vsub.f32 %v510, 1.0
  %513 = vrot.lane.b32.xlu0 %v511, 64
  %v514 = vpop.permute.xlu0 %513
  %v516 = vmul.f32 %v495, %v514
  %518 = vrot.lane.b32.xlu0 %v516, 32
  %v519 = vpop.permute.xlu0 %518
  %v521 = vadd.f32 %v509, %v519
  %v522 = vtanh.pop %v508
  %524 = vrot.lane.b32.xlu0 %v522, 64
  %v525 = vpop.permute.xlu0 %524
  %v527 = vmul.f32 %v476, %v525
  %v528 = vtanh.pop %v521
  %530 = vrot.lane.b32.xlu0 %v528, 64
  %v531 = vpop.permute.xlu0 %530
  %v533 = vmul.f32 %v495, %v531
  %v534 = vmul.f32 %v527, %v367
  %536 = vrot.lane.b32.xlu0 %v534, 32
  %v537 = vpop.permute.xlu0 %536
  %v539 = vsel %vm374, %v537, 0.0
  %540 = vadd.xlane.f32.xlu0 %v539
  %v541 = vpop.xlane.xlu0 %540
  %v542 = vmul.f32 %v533, %v379
  %544 = vrot.lane.b32.xlu0 %v542, 32
  %v545 = vpop.permute.xlu0 %544
  %v547 = vsel %vm374, %v545, 0.0
  %548 = vadd.xlane.f32.xlu0 %v547
  %v549 = vpop.xlane.xlu0 %548
  %s550 = scalar_lea.vmem %s6, 8
  %v551 = vld [vmem:[%s550] sm:$0xff]
  %v552 = vadd.f32 %v551, %v541
  %553 = vst.msk [vmem:[%s550] sm:$0xff] %vm224, %v552
  %s554 = scalar_lea.vmem %s6, 64
  %v555 = vld [vmem:[%s554] sm:$0xff]
  %v556 = vadd.f32 %v555, %v549
  %557 = vst.msk [vmem:[%s554] sm:$0xff] %vm224, %v556
  %559 = vrot.lane.b32.xlu0 %v527, 32
  %v560 = vpop.permute.xlu0 %559
  %563 = vrot.lane.b32.xlu0 %v533, 64
  %v564 = vpop.permute.xlu0 %563
  %v566 = vsel %vm374, %v560, %v564
  %v568 = vsel %vm57, %v566, 0
  %570 = vmatpush.msra.mxu0 0.0
  %571 = vmatpush.msra.mxu0 0.0
  %572 = vmatpush.msra.mxu0 0.0
  %573 = vmatpush.msra.mxu0 0.0
  %574 = vmatpush.msra.mxu0 0.0
  %575 = vmatpush.msra.mxu0 0.0
  %576 = vmatpush.msra.mxu0 0.0
  %577 = vmatpush.msra.mxu0 0.0
  %578 = vmatpush.msra.mxu0 %v216
  %579 = vmatpush.msra.mxu0 %v214
  %580 = vmatpush.msra.mxu0 %v212
  %581 = vmatpush.msra.mxu0 %v210
  %582 = vmatpush.msra.mxu0 %v208
  %583 = vmatpush.msra.mxu0 %v206
  %584 = vmatpush.msra.mxu0 %v204
  %585 = vmatpush.msra.mxu0 %v202
  %586 = vmatmul.f32.gmra.mxu0 %v568
  %v587 = vpop.f32.mrf.mxu0
  %v588 = vadd.f32 0.0, %v587
  %589 = vdwg.mxu0
  %590 = vmatpush.msra.mxu0 0.0
  %591 = vmatpush.msra.mxu0 0.0
  %592 = vmatpush.msra.mxu0 0.0
  %593 = vmatpush.msra.mxu0 0.0
  %594 = vmatpush.msra.mxu0 0.0
  %595 = vmatpush.msra.mxu0 0.0
  %596 = vmatpush.msra.mxu0 0.0
  %597 = vmatpush.msra.mxu0 0.0
  %598 = vmatpush.msra.mxu0 %v217
  %599 = vmatpush.msra.mxu0 %v215
  %600 = vmatpush.msra.mxu0 %v213
  %601 = vmatpush.msra.mxu0 %v211
  %602 = vmatpush.msra.mxu0 %v209
  %603 = vmatpush.msra.mxu0 %v207
  %604 = vmatpush.msra.mxu0 %v205
  %605 = vmatpush.msra.mxu0 %v203
  %606 = vmatmul.f32.gmra.mxu0 %v568
  %v607 = vpop.f32.mrf.mxu0
  %v608 = vadd.f32 0.0, %v607
  %609 = vdwg.mxu0
  %s610 = smul.u32 2, 2
  %s611 = smul.addr %s610, 8
  %s612 = scalar_lea.vmem [#allocation2], %s611
  %v613 = vld [vmem:[%s612] sm:$0xff]
  %v614 = vadd.f32 %v613, %v588
  %s615 = smul.u32 7, 2
  %s616 = smul.addr %s615, 8
  %s617 = scalar_lea.vmem [#allocation2], %s616
  %v618 = vld [vmem:[%s617 + $0x8] sm:$0xff]
  %v619 = vadd.f32 %v618, %v608
  %v620 = vxor.u32 %v614, 2147483648
  %v621 = vmul.f32 %v620, 1.442695
  %v622 = vpow.pop %v621
  %v623 = vadd.f32 %v622, 1.0
  %v624 = vrcp.pop %v623
  %v625 = vmul.f32 %v623, %v624
  %v626 = vsub.f32 1.0, %v625
  %v627 = vmul.f32 %v624, %v626
  %v628 = vadd.f32 %v624, %v627
  %vm629 = vweird.f32 %v623
  %vm630 = vweird.f32 %v624
  %vm631 = vmor %vm629, %vm630
  %v632 = vsel %vm631, %v624, %v628
  %v633 = vand.u32 2147483647, %v623
  %vm634 = vcmp.eq.f32.partialorder %v633, 8.507059e+37
  %v635 = vand.u32 %v623, 2147483648
  %v636 = vor.u32 1.1754944e-38, %v635
  %v637 = vsel %vm634, %v636, %v632
  %v638 = vmul.f32 1.0, %v637
  %v639 = vxor.u32 %v619, 2147483648
  %v640 = vmul.f32 %v639, 1.442695
  %v641 = vpow.pop %v640
  %v642 = vadd.f32 %v641, 1.0
  %v643 = vrcp.pop %v642
  %v644 = vmul.f32 %v642, %v643
  %v645 = vsub.f32 1.0, %v644
  %v646 = vmul.f32 %v643, %v645
  %v647 = vadd.f32 %v643, %v646
  %vm648 = vweird.f32 %v642
  %vm649 = vweird.f32 %v643
  %vm650 = vmor %vm648, %vm649
  %v651 = vsel %vm650, %v643, %v647
  %v652 = vand.u32 2147483647, %v642
  %vm653 = vcmp.eq.f32.partialorder %v652, 8.507059e+37
  %v654 = vand.u32 %v642, 2147483648
  %v655 = vor.u32 1.1754944e-38, %v654
  %v656 = vsel %vm653, %v655, %v651
  %v657 = vmul.f32 1.0, %v656
  %v658 = vmul.f32 %v638, %v508
  %v659 = vmul.f32 %v638, 2.0
  %v660 = vsub.f32 %v659, 1.0
  %662 = vrot.lane.b32.xlu0 %v660, 64
  %v663 = vpop.permute.xlu0 %662
  %v665 = vmul.f32 %v638, %v663
  %667 = vrot.lane.b32.xlu0 %v665, 32
  %v668 = vpop.permute.xlu0 %667
  %v670 = vadd.f32 %v658, %v668
  %v671 = vmul.f32 %v657, %v521
  %v672 = vmul.f32 %v657, 2.0
  %v673 = vsub.f32 %v672, 1.0
  %675 = vrot.lane.b32.xlu0 %v673, 64
  %v676 = vpop.permute.xlu0 %675
  %v678 = vmul.f32 %v657, %v676
  %680 = vrot.lane.b32.xlu0 %v678, 32
  %v681 = vpop.permute.xlu0 %680
  %v683 = vadd.f32 %v671, %v681
  %v684 = vtanh.pop %v670
  %686 = vrot.lane.b32.xlu0 %v684, 64
  %v687 = vpop.permute.xlu0 %686
  %v689 = vmul.f32 %v638, %v687
  %v690 = vtanh.pop %v683
  %692 = vrot.lane.b32.xlu0 %v690, 64
  %v693 = vpop.permute.xlu0 %692
  %v695 = vmul.f32 %v657, %v693
  %v696 = vmul.f32 %v689, %v367
  %698 = vrot.lane.b32.xlu0 %v696, 32
  %v699 = vpop.permute.xlu0 %698
  %v701 = vsel %vm374, %v699, 0.0
  %702 = vadd.xlane.f32.xlu0 %v701
  %v703 = vpop.xlane.xlu0 %702
  %v704 = vmul.f32 %v695, %v379
  %706 = vrot.lane.b32.xlu0 %v704, 32
  %v707 = vpop.permute.xlu0 %706
  %v709 = vsel %vm374, %v707, 0.0
  %710 = vadd.xlane.f32.xlu0 %v709
  %v711 = vpop.xlane.xlu0 %710
  %s712 = scalar_lea.vmem %s6, 16
  %v713 = vld [vmem:[%s712] sm:$0xff]
  %v714 = vadd.f32 %v713, %v703
  %715 = vst.msk [vmem:[%s712] sm:$0xff] %vm224, %v714
  %s716 = scalar_lea.vmem %s6, 56
  %v717 = vld [vmem:[%s716] sm:$0xff]
  %v718 = vadd.f32 %v717, %v711
  %719 = vst.msk [vmem:[%s716] sm:$0xff] %vm224, %v718
  %721 = vrot.lane.b32.xlu0 %v689, 32
  %v722 = vpop.permute.xlu0 %721
  %725 = vrot.lane.b32.xlu0 %v695, 64
  %v726 = vpop.permute.xlu0 %725
  %v728 = vsel %vm374, %v722, %v726
  %v730 = vsel %vm57, %v728, 0
  %732 = vmatpush.msra.mxu0 0.0
  %733 = vmatpush.msra.mxu0 0.0
  %734 = vmatpush.msra.mxu0 0.0
  %735 = vmatpush.msra.mxu0 0.0
  %736 = vmatpush.msra.mxu0 0.0
  %737 = vmatpush.msra.mxu0 0.0
  %738 = vmatpush.msra.mxu0 0.0
  %739 = vmatpush.msra.mxu0 0.0
  %740 = vmatpush.msra.mxu0 %v216
  %741 = vmatpush.msra.mxu0 %v214
  %742 = vmatpush.msra.mxu0 %v212
  %743 = vmatpush.msra.mxu0 %v210
  %744 = vmatpush.msra.mxu0 %v208
  %745 = vmatpush.msra.mxu0 %v206
  %746 = vmatpush.msra.mxu0 %v204
  %747 = vmatpush.msra.mxu0 %v202
  %748 = vmatmul.f32.gmra.mxu0 %v730
  %v749 = vpop.f32.mrf.mxu0
  %v750 = vadd.f32 0.0, %v749
  %751 = vdwg.mxu0
  %752 = vmatpush.msra.mxu0 0.0
  %753 = vmatpush.msra.mxu0 0.0
  %754 = vmatpush.msra.mxu0 0.0
  %755 = vmatpush.msra.mxu0 0.0
  %756 = vmatpush.msra.mxu0 0.0
  %757 = vmatpush.msra.mxu0 0.0
  %758 = vmatpush.msra.mxu0 0.0
  %759 = vmatpush.msra.mxu0 0.0
  %760 = vmatpush.msra.mxu0 %v217
  %761 = vmatpush.msra.mxu0 %v215
  %762 = vmatpush.msra.mxu0 %v213
  %763 = vmatpush.msra.mxu0 %v211
  %764 = vmatpush.msra.mxu0 %v209
  %765 = vmatpush.msra.mxu0 %v207
  %766 = vmatpush.msra.mxu0 %v205
  %767 = vmatpush.msra.mxu0 %v203
  %768 = vmatmul.f32.gmra.mxu0 %v730
  %v769 = vpop.f32.mrf.mxu0
  %v770 = vadd.f32 0.0, %v769
  %771 = vdwg.mxu0
  %s772 = smul.u32 3, 2
  %s773 = smul.addr %s772, 8
  %s774 = scalar_lea.vmem [#allocation2], %s773
  %v775 = vld [vmem:[%s774] sm:$0xff]
  %v776 = vadd.f32 %v775, %v750
  %s777 = smul.u32 6, 2
  %s778 = smul.addr %s777, 8
  %s779 = scalar_lea.vmem [#allocation2], %s778
  %v780 = vld [vmem:[%s779 + $0x8] sm:$0xff]
  %v781 = vadd.f32 %v780, %v770
  %v782 = vxor.u32 %v776, 2147483648
  %v783 = vmul.f32 %v782, 1.442695
  %v784 = vpow.pop %v783
  %v785 = vadd.f32 %v784, 1.0
  %v786 = vrcp.pop %v785
  %v787 = vmul.f32 %v785, %v786
  %v788 = vsub.f32 1.0, %v787
  %v789 = vmul.f32 %v786, %v788
  %v790 = vadd.f32 %v786, %v789
  %vm791 = vweird.f32 %v785
  %vm792 = vweird.f32 %v786
  %vm793 = vmor %vm791, %vm792
  %v794 = vsel %vm793, %v786, %v790
  %v795 = vand.u32 2147483647, %v785
  %vm796 = vcmp.eq.f32.partialorder %v795, 8.507059e+37
  %v797 = vand.u32 %v785, 2147483648
  %v798 = vor.u32 1.1754944e-38, %v797
  %v799 = vsel %vm796, %v798, %v794
  %v800 = vmul.f32 1.0, %v799
  %v801 = vxor.u32 %v781, 2147483648
  %v802 = vmul.f32 %v801, 1.442695
  %v803 = vpow.pop %v802
  %v804 = vadd.f32 %v803, 1.0
  %v805 = vrcp.pop %v804
  %v806 = vmul.f32 %v804, %v805
  %v807 = vsub.f32 1.0, %v806
  %v808 = vmul.f32 %v805, %v807
  %v809 = vadd.f32 %v805, %v808
  %vm810 = vweird.f32 %v804
  %vm811 = vweird.f32 %v805
  %vm812 = vmor %vm810, %vm811
  %v813 = vsel %vm812, %v805, %v809
  %v814 = vand.u32 2147483647, %v804
  %vm815 = vcmp.eq.f32.partialorder %v814, 8.507059e+37
  %v816 = vand.u32 %v804, 2147483648
  %v817 = vor.u32 1.1754944e-38, %v816
  %v818 = vsel %vm815, %v817, %v813
  %v819 = vmul.f32 1.0, %v818
  %v820 = vmul.f32 %v800, %v670
  %v821 = vmul.f32 %v800, 2.0
  %v822 = vsub.f32 %v821, 1.0
  %824 = vrot.lane.b32.xlu0 %v822, 64
  %v825 = vpop.permute.xlu0 %824
  %v827 = vmul.f32 %v800, %v825
  %829 = vrot.lane.b32.xlu0 %v827, 32
  %v830 = vpop.permute.xlu0 %829
  %v832 = vadd.f32 %v820, %v830
  %v833 = vmul.f32 %v819, %v683
  %v834 = vmul.f32 %v819, 2.0
  %v835 = vsub.f32 %v834, 1.0
  %837 = vrot.lane.b32.xlu0 %v835, 64
  %v838 = vpop.permute.xlu0 %837
  %v840 = vmul.f32 %v819, %v838
  %842 = vrot.lane.b32.xlu0 %v840, 32
  %v843 = vpop.permute.xlu0 %842
  %v845 = vadd.f32 %v833, %v843
  %v846 = vtanh.pop %v832
  %848 = vrot.lane.b32.xlu0 %v846, 64
  %v849 = vpop.permute.xlu0 %848
  %v851 = vmul.f32 %v800, %v849
  %v852 = vtanh.pop %v845
  %854 = vrot.lane.b32.xlu0 %v852, 64
  %v855 = vpop.permute.xlu0 %854
  %v857 = vmul.f32 %v819, %v855
  %v858 = vmul.f32 %v851, %v367
  %860 = vrot.lane.b32.xlu0 %v858, 32
  %v861 = vpop.permute.xlu0 %860
  %v863 = vsel %vm374, %v861, 0.0
  %864 = vadd.xlane.f32.xlu0 %v863
  %v865 = vpop.xlane.xlu0 %864
  %v866 = vmul.f32 %v857, %v379
  %868 = vrot.lane.b32.xlu0 %v866, 32
  %v869 = vpop.permute.xlu0 %868
  %v871 = vsel %vm374, %v869, 0.0
  %872 = vadd.xlane.f32.xlu0 %v871
  %v873 = vpop.xlane.xlu0 %872
  %s874 = scalar_lea.vmem %s6, 24
  %v875 = vld [vmem:[%s874] sm:$0xff]
  %v876 = vadd.f32 %v875, %v865
  %877 = vst.msk [vmem:[%s874] sm:$0xff] %vm224, %v876
  %s878 = scalar_lea.vmem %s6, 48
  %v879 = vld [vmem:[%s878] sm:$0xff]
  %v880 = vadd.f32 %v879, %v873
  %881 = vst.msk [vmem:[%s878] sm:$0xff] %vm224, %v880
  %883 = vrot.lane.b32.xlu0 %v851, 32
  %v884 = vpop.permute.xlu0 %883
  %887 = vrot.lane.b32.xlu0 %v857, 64
  %v888 = vpop.permute.xlu0 %887
  %v890 = vsel %vm374, %v884, %v888
  %v892 = vsel %vm57, %v890, 0
  %894 = vmatpush.msra.mxu0 0.0
  %895 = vmatpush.msra.mxu0 0.0
  %896 = vmatpush.msra.mxu0 0.0
  %897 = vmatpush.msra.mxu0 0.0
  %898 = vmatpush.msra.mxu0 0.0
  %899 = vmatpush.msra.mxu0 0.0
  %900 = vmatpush.msra.mxu0 0.0
  %901 = vmatpush.msra.mxu0 0.0
  %902 = vmatpush.msra.mxu0 %v216
  %903 = vmatpush.msra.mxu0 %v214
  %904 = vmatpush.msra.mxu0 %v212
  %905 = vmatpush.msra.mxu0 %v210
  %906 = vmatpush.msra.mxu0 %v208
  %907 = vmatpush.msra.mxu0 %v206
  %908 = vmatpush.msra.mxu0 %v204
  %909 = vmatpush.msra.mxu0 %v202
  %910 = vmatmul.f32.gmra.mxu0 %v892
  %v911 = vpop.f32.mrf.mxu0
  %v912 = vadd.f32 0.0, %v911
  %913 = vdwg.mxu0
  %914 = vmatpush.msra.mxu0 0.0
  %915 = vmatpush.msra.mxu0 0.0
  %916 = vmatpush.msra.mxu0 0.0
  %917 = vmatpush.msra.mxu0 0.0
  %918 = vmatpush.msra.mxu0 0.0
  %919 = vmatpush.msra.mxu0 0.0
  %920 = vmatpush.msra.mxu0 0.0
  %921 = vmatpush.msra.mxu0 0.0
  %922 = vmatpush.msra.mxu0 %v217
  %923 = vmatpush.msra.mxu0 %v215
  %924 = vmatpush.msra.mxu0 %v213
  %925 = vmatpush.msra.mxu0 %v211
  %926 = vmatpush.msra.mxu0 %v209
  %927 = vmatpush.msra.mxu0 %v207
  %928 = vmatpush.msra.mxu0 %v205
  %929 = vmatpush.msra.mxu0 %v203
  %930 = vmatmul.f32.gmra.mxu0 %v892
  %v931 = vpop.f32.mrf.mxu0
  %v932 = vadd.f32 0.0, %v931
  %933 = vdwg.mxu0
  %s934 = smul.u32 4, 2
  %s935 = smul.addr %s934, 8
  %s936 = scalar_lea.vmem [#allocation2], %s935
  %v937 = vld [vmem:[%s936] sm:$0xff]
  %v938 = vadd.f32 %v937, %v912
  %s939 = smul.u32 5, 2
  %s940 = smul.addr %s939, 8
  %s941 = scalar_lea.vmem [#allocation2], %s940
  %v942 = vld [vmem:[%s941 + $0x8] sm:$0xff]
  %v943 = vadd.f32 %v942, %v932
  %v944 = vxor.u32 %v938, 2147483648
  %v945 = vmul.f32 %v944, 1.442695
  %v946 = vpow.pop %v945
  %v947 = vadd.f32 %v946, 1.0
  %v948 = vrcp.pop %v947
  %v949 = vmul.f32 %v947, %v948
  %v950 = vsub.f32 1.0, %v949
  %v951 = vmul.f32 %v948, %v950
  %v952 = vadd.f32 %v948, %v951
  %vm953 = vweird.f32 %v947
  %vm954 = vweird.f32 %v948
  %vm955 = vmor %vm953, %vm954
  %v956 = vsel %vm955, %v948, %v952
  %v957 = vand.u32 2147483647, %v947
  %vm958 = vcmp.eq.f32.partialorder %v957, 8.507059e+37
  %v959 = vand.u32 %v947, 2147483648
  %v960 = vor.u32 1.1754944e-38, %v959
  %v961 = vsel %vm958, %v960, %v956
  %v962 = vmul.f32 1.0, %v961
  %v963 = vxor.u32 %v943, 2147483648
  %v964 = vmul.f32 %v963, 1.442695
  %v965 = vpow.pop %v964
  %v966 = vadd.f32 %v965, 1.0
  %v967 = vrcp.pop %v966
  %v968 = vmul.f32 %v966, %v967
  %v969 = vsub.f32 1.0, %v968
  %v970 = vmul.f32 %v967, %v969
  %v971 = vadd.f32 %v967, %v970
  %vm972 = vweird.f32 %v966
  %vm973 = vweird.f32 %v967
  %vm974 = vmor %vm972, %vm973
  %v975 = vsel %vm974, %v967, %v971
  %v976 = vand.u32 2147483647, %v966
  %vm977 = vcmp.eq.f32.partialorder %v976, 8.507059e+37
  %v978 = vand.u32 %v966, 2147483648
  %v979 = vor.u32 1.1754944e-38, %v978
  %v980 = vsel %vm977, %v979, %v975
  %v981 = vmul.f32 1.0, %v980
  %v982 = vmul.f32 %v962, %v832
  %v983 = vmul.f32 %v962, 2.0
  %v984 = vsub.f32 %v983, 1.0
  %986 = vrot.lane.b32.xlu0 %v984, 64
  %v987 = vpop.permute.xlu0 %986
  %v989 = vmul.f32 %v962, %v987
  %991 = vrot.lane.b32.xlu0 %v989, 32
  %v992 = vpop.permute.xlu0 %991
  %v994 = vadd.f32 %v982, %v992
  %v995 = vmul.f32 %v981, %v845
  %v996 = vmul.f32 %v981, 2.0
  %v997 = vsub.f32 %v996, 1.0
  %999 = vrot.lane.b32.xlu0 %v997, 64
  %v1000 = vpop.permute.xlu0 %999
  %v1002 = vmul.f32 %v981, %v1000
  %1004 = vrot.lane.b32.xlu0 %v1002, 32
  %v1005 = vpop.permute.xlu0 %1004
  %v1007 = vadd.f32 %v995, %v1005
  %v1008 = vtanh.pop %v994
  %1010 = vrot.lane.b32.xlu0 %v1008, 64
  %v1011 = vpop.permute.xlu0 %1010
  %v1013 = vmul.f32 %v962, %v1011
  %v1014 = vtanh.pop %v1007
  %1016 = vrot.lane.b32.xlu0 %v1014, 64
  %v1017 = vpop.permute.xlu0 %1016
  %v1019 = vmul.f32 %v981, %v1017
  %v1020 = vmul.f32 %v1013, %v367
  %1022 = vrot.lane.b32.xlu0 %v1020, 32
  %v1023 = vpop.permute.xlu0 %1022
  %v1025 = vsel %vm374, %v1023, 0.0
  %1026 = vadd.xlane.f32.xlu0 %v1025
  %v1027 = vpop.xlane.xlu0 %1026
  %v1028 = vmul.f32 %v1019, %v379
  %1030 = vrot.lane.b32.xlu0 %v1028, 32
  %v1031 = vpop.permute.xlu0 %1030
  %v1033 = vsel %vm374, %v1031, 0.0
  %1034 = vadd.xlane.f32.xlu0 %v1033
  %v1035 = vpop.xlane.xlu0 %1034
  %s1036 = scalar_lea.vmem %s6, 32
  %v1037 = vld [vmem:[%s1036] sm:$0xff]
  %v1038 = vadd.f32 %v1037, %v1027
  %1039 = vst.msk [vmem:[%s1036] sm:$0xff] %vm224, %v1038
  %s1040 = scalar_lea.vmem %s6, 40
  %v1041 = vld [vmem:[%s1040] sm:$0xff]
  %v1042 = vadd.f32 %v1041, %v1035
  %1043 = vst.msk [vmem:[%s1040] sm:$0xff] %vm224, %v1042
  %1045 = vrot.lane.b32.xlu0 %v1013, 32
  %v1046 = vpop.permute.xlu0 %1045
  %1049 = vrot.lane.b32.xlu0 %v1019, 64
  %v1050 = vpop.permute.xlu0 %1049
  %v1052 = vsel %vm374, %v1046, %v1050
  %v1054 = vsel %vm57, %v1052, 0
  %1056 = vmatpush.msra.mxu0 0.0
  %1057 = vmatpush.msra.mxu0 0.0
  %1058 = vmatpush.msra.mxu0 0.0
  %1059 = vmatpush.msra.mxu0 0.0
  %1060 = vmatpush.msra.mxu0 0.0
  %1061 = vmatpush.msra.mxu0 0.0
  %1062 = vmatpush.msra.mxu0 0.0
  %1063 = vmatpush.msra.mxu0 0.0
  %1064 = vmatpush.msra.mxu0 %v216
  %1065 = vmatpush.msra.mxu0 %v214
  %1066 = vmatpush.msra.mxu0 %v212
  %1067 = vmatpush.msra.mxu0 %v210
  %1068 = vmatpush.msra.mxu0 %v208
  %1069 = vmatpush.msra.mxu0 %v206
  %1070 = vmatpush.msra.mxu0 %v204
  %1071 = vmatpush.msra.mxu0 %v202
  %1072 = vmatmul.f32.gmra.mxu0 %v1054
  %v1073 = vpop.f32.mrf.mxu0
  %v1074 = vadd.f32 0.0, %v1073
  %1075 = vdwg.mxu0
  %1076 = vmatpush.msra.mxu0 0.0
  %1077 = vmatpush.msra.mxu0 0.0
  %1078 = vmatpush.msra.mxu0 0.0
  %1079 = vmatpush.msra.mxu0 0.0
  %1080 = vmatpush.msra.mxu0 0.0
  %1081 = vmatpush.msra.mxu0 0.0
  %1082 = vmatpush.msra.mxu0 0.0
  %1083 = vmatpush.msra.mxu0 0.0
  %1084 = vmatpush.msra.mxu0 %v217
  %1085 = vmatpush.msra.mxu0 %v215
  %1086 = vmatpush.msra.mxu0 %v213
  %1087 = vmatpush.msra.mxu0 %v211
  %1088 = vmatpush.msra.mxu0 %v209
  %1089 = vmatpush.msra.mxu0 %v207
  %1090 = vmatpush.msra.mxu0 %v205
  %1091 = vmatpush.msra.mxu0 %v203
  %1092 = vmatmul.f32.gmra.mxu0 %v1054
  %v1093 = vpop.f32.mrf.mxu0
  %v1094 = vadd.f32 0.0, %v1093
  %1095 = vdwg.mxu0
  %v1096 = vld [vmem:[%s941] sm:$0xff]
  %v1097 = vadd.f32 %v1096, %v1074
  %v1098 = vld [vmem:[%s936 + $0x8] sm:$0xff]
  %v1099 = vadd.f32 %v1098, %v1094
  %v1100 = vxor.u32 %v1097, 2147483648
  %v1101 = vmul.f32 %v1100, 1.442695
  %v1102 = vpow.pop %v1101
  %v1103 = vadd.f32 %v1102, 1.0
  %v1104 = vrcp.pop %v1103
  %v1105 = vmul.f32 %v1103, %v1104
  %v1106 = vsub.f32 1.0, %v1105
  %v1107 = vmul.f32 %v1104, %v1106
  %v1108 = vadd.f32 %v1104, %v1107
  %vm1109 = vweird.f32 %v1103
  %vm1110 = vweird.f32 %v1104
  %vm1111 = vmor %vm1109, %vm1110
  %v1112 = vsel %vm1111, %v1104, %v1108
  %v1113 = vand.u32 2147483647, %v1103
  %vm1114 = vcmp.eq.f32.partialorder %v1113, 8.507059e+37
  %v1115 = vand.u32 %v1103, 2147483648
  %v1116 = vor.u32 1.1754944e-38, %v1115
  %v1117 = vsel %vm1114, %v1116, %v1112
  %v1118 = vmul.f32 1.0, %v1117
  %v1119 = vxor.u32 %v1099, 2147483648
  %v1120 = vmul.f32 %v1119, 1.442695
  %v1121 = vpow.pop %v1120
  %v1122 = vadd.f32 %v1121, 1.0
  %v1123 = vrcp.pop %v1122
  %v1124 = vmul.f32 %v1122, %v1123
  %v1125 = vsub.f32 1.0, %v1124
  %v1126 = vmul.f32 %v1123, %v1125
  %v1127 = vadd.f32 %v1123, %v1126
  %vm1128 = vweird.f32 %v1122
  %vm1129 = vweird.f32 %v1123
  %vm1130 = vmor %vm1128, %vm1129
  %v1131 = vsel %vm1130, %v1123, %v1127
  %v1132 = vand.u32 2147483647, %v1122
  %vm1133 = vcmp.eq.f32.partialorder %v1132, 8.507059e+37
  %v1134 = vand.u32 %v1122, 2147483648
  %v1135 = vor.u32 1.1754944e-38, %v1134
  %v1136 = vsel %vm1133, %v1135, %v1131
  %v1137 = vmul.f32 1.0, %v1136
  %v1138 = vmul.f32 %v1118, %v994
  %v1139 = vmul.f32 %v1118, 2.0
  %v1140 = vsub.f32 %v1139, 1.0
  %1142 = vrot.lane.b32.xlu0 %v1140, 64
  %v1143 = vpop.permute.xlu0 %1142
  %v1145 = vmul.f32 %v1118, %v1143
  %1147 = vrot.lane.b32.xlu0 %v1145, 32
  %v1148 = vpop.permute.xlu0 %1147
  %v1150 = vadd.f32 %v1138, %v1148
  %v1151 = vmul.f32 %v1137, %v1007
  %v1152 = vmul.f32 %v1137, 2.0
  %v1153 = vsub.f32 %v1152, 1.0
  %1155 = vrot.lane.b32.xlu0 %v1153, 64
  %v1156 = vpop.permute.xlu0 %1155
  %v1158 = vmul.f32 %v1137, %v1156
  %1160 = vrot.lane.b32.xlu0 %v1158, 32
  %v1161 = vpop.permute.xlu0 %1160
  %v1163 = vadd.f32 %v1151, %v1161
  %v1164 = vtanh.pop %v1150
  %1166 = vrot.lane.b32.xlu0 %v1164, 64
  %v1167 = vpop.permute.xlu0 %1166
  %v1169 = vmul.f32 %v1118, %v1167
  %v1170 = vtanh.pop %v1163
  %1172 = vrot.lane.b32.xlu0 %v1170, 64
  %v1173 = vpop.permute.xlu0 %1172
  %v1175 = vmul.f32 %v1137, %v1173
  %v1176 = vmul.f32 %v1169, %v367
  %1178 = vrot.lane.b32.xlu0 %v1176, 32
  %v1179 = vpop.permute.xlu0 %1178
  %v1181 = vsel %vm374, %v1179, 0.0
  %1182 = vadd.xlane.f32.xlu0 %v1181
  %v1183 = vpop.xlane.xlu0 %1182
  %v1184 = vmul.f32 %v1175, %v379
  %1186 = vrot.lane.b32.xlu0 %v1184, 32
  %v1187 = vpop.permute.xlu0 %1186
  %v1189 = vsel %vm374, %v1187, 0.0
  %1190 = vadd.xlane.f32.xlu0 %v1189
  %v1191 = vpop.xlane.xlu0 %1190
  %v1192 = vld [vmem:[%s1040] sm:$0xff]
  %v1193 = vadd.f32 %v1192, %v1183
  %1194 = vst.msk [vmem:[%s1040] sm:$0xff] %vm224, %v1193
  %v1195 = vld [vmem:[%s1036] sm:$0xff]
  %v1196 = vadd.f32 %v1195, %v1191
  %1197 = vst.msk [vmem:[%s1036] sm:$0xff] %vm224, %v1196
  %1199 = vrot.lane.b32.xlu0 %v1169, 32
  %v1200 = vpop.permute.xlu0 %1199
  %1203 = vrot.lane.b32.xlu0 %v1175, 64
  %v1204 = vpop.permute.xlu0 %1203
  %v1206 = vsel %vm374, %v1200, %v1204
  %v1208 = vsel %vm57, %v1206, 0
  %1210 = vmatpush.msra.mxu0 0.0
  %1211 = vmatpush.msra.mxu0 0.0
  %1212 = vmatpush.msra.mxu0 0.0
  %1213 = vmatpush.msra.mxu0 0.0
  %1214 = vmatpush.msra.mxu0 0.0
  %1215 = vmatpush.msra.mxu0 0.0
  %1216 = vmatpush.msra.mxu0 0.0
  %1217 = vmatpush.msra.mxu0 0.0
  %1218 = vmatpush.msra.mxu0 %v216
  %1219 = vmatpush.msra.mxu0 %v214
  %1220 = vmatpush.msra.mxu0 %v212
  %1221 = vmatpush.msra.mxu0 %v210
  %1222 = vmatpush.msra.mxu0 %v208
  %1223 = vmatpush.msra.mxu0 %v206
  %1224 = vmatpush.msra.mxu0 %v204
  %1225 = vmatpush.msra.mxu0 %v202
  %1226 = vmatmul.f32.gmra.mxu0 %v1208
  %v1227 = vpop.f32.mrf.mxu0
  %v1228 = vadd.f32 0.0, %v1227
  %1229 = vdwg.mxu0
  %1230 = vmatpush.msra.mxu0 0.0
  %1231 = vmatpush.msra.mxu0 0.0
  %1232 = vmatpush.msra.mxu0 0.0
  %1233 = vmatpush.msra.mxu0 0.0
  %1234 = vmatpush.msra.mxu0 0.0
  %1235 = vmatpush.msra.mxu0 0.0
  %1236 = vmatpush.msra.mxu0 0.0
  %1237 = vmatpush.msra.mxu0 0.0
  %1238 = vmatpush.msra.mxu0 %v217
  %1239 = vmatpush.msra.mxu0 %v215
  %1240 = vmatpush.msra.mxu0 %v213
  %1241 = vmatpush.msra.mxu0 %v211
  %1242 = vmatpush.msra.mxu0 %v209
  %1243 = vmatpush.msra.mxu0 %v207
  %1244 = vmatpush.msra.mxu0 %v205
  %1245 = vmatpush.msra.mxu0 %v203
  %1246 = vmatmul.f32.gmra.mxu0 %v1208
  %v1247 = vpop.f32.mrf.mxu0
  %v1248 = vadd.f32 0.0, %v1247
  %1249 = vdwg.mxu0
  %v1250 = vld [vmem:[%s779] sm:$0xff]
  %v1251 = vadd.f32 %v1250, %v1228
  %v1252 = vld [vmem:[%s774 + $0x8] sm:$0xff]
  %v1253 = vadd.f32 %v1252, %v1248
  %v1254 = vxor.u32 %v1251, 2147483648
  %v1255 = vmul.f32 %v1254, 1.442695
  %v1256 = vpow.pop %v1255
  %v1257 = vadd.f32 %v1256, 1.0
  %v1258 = vrcp.pop %v1257
  %v1259 = vmul.f32 %v1257, %v1258
  %v1260 = vsub.f32 1.0, %v1259
  %v1261 = vmul.f32 %v1258, %v1260
  %v1262 = vadd.f32 %v1258, %v1261
  %vm1263 = vweird.f32 %v1257
  %vm1264 = vweird.f32 %v1258
  %vm1265 = vmor %vm1263, %vm1264
  %v1266 = vsel %vm1265, %v1258, %v1262
  %v1267 = vand.u32 2147483647, %v1257
  %vm1268 = vcmp.eq.f32.partialorder %v1267, 8.507059e+37
  %v1269 = vand.u32 %v1257, 2147483648
  %v1270 = vor.u32 1.1754944e-38, %v1269
  %v1271 = vsel %vm1268, %v1270, %v1266
  %v1272 = vmul.f32 1.0, %v1271
  %v1273 = vxor.u32 %v1253, 2147483648
  %v1274 = vmul.f32 %v1273, 1.442695
  %v1275 = vpow.pop %v1274
  %v1276 = vadd.f32 %v1275, 1.0
  %v1277 = vrcp.pop %v1276
  %v1278 = vmul.f32 %v1276, %v1277
  %v1279 = vsub.f32 1.0, %v1278
  %v1280 = vmul.f32 %v1277, %v1279
  %v1281 = vadd.f32 %v1277, %v1280
  %vm1282 = vweird.f32 %v1276
  %vm1283 = vweird.f32 %v1277
  %vm1284 = vmor %vm1282, %vm1283
  %v1285 = vsel %vm1284, %v1277, %v1281
  %v1286 = vand.u32 2147483647, %v1276
  %vm1287 = vcmp.eq.f32.partialorder %v1286, 8.507059e+37
  %v1288 = vand.u32 %v1276, 2147483648
  %v1289 = vor.u32 1.1754944e-38, %v1288
  %v1290 = vsel %vm1287, %v1289, %v1285
  %v1291 = vmul.f32 1.0, %v1290
  %v1292 = vmul.f32 %v1272, %v1150
  %v1293 = vmul.f32 %v1272, 2.0
  %v1294 = vsub.f32 %v1293, 1.0
  %1296 = vrot.lane.b32.xlu0 %v1294, 64
  %v1297 = vpop.permute.xlu0 %1296
  %v1299 = vmul.f32 %v1272, %v1297
  %1301 = vrot.lane.b32.xlu0 %v1299, 32
  %v1302 = vpop.permute.xlu0 %1301
  %v1304 = vadd.f32 %v1292, %v1302
  %v1305 = vmul.f32 %v1291, %v1163
  %v1306 = vmul.f32 %v1291, 2.0
  %v1307 = vsub.f32 %v1306, 1.0
  %1309 = vrot.lane.b32.xlu0 %v1307, 64
  %v1310 = vpop.permute.xlu0 %1309
  %v1312 = vmul.f32 %v1291, %v1310
  %1314 = vrot.lane.b32.xlu0 %v1312, 32
  %v1315 = vpop.permute.xlu0 %1314
  %v1317 = vadd.f32 %v1305, %v1315
  %v1318 = vtanh.pop %v1304
  %1320 = vrot.lane.b32.xlu0 %v1318, 64
  %v1321 = vpop.permute.xlu0 %1320
  %v1323 = vmul.f32 %v1272, %v1321
  %v1324 = vtanh.pop %v1317
  %1326 = vrot.lane.b32.xlu0 %v1324, 64
  %v1327 = vpop.permute.xlu0 %1326
  %v1329 = vmul.f32 %v1291, %v1327
  %v1330 = vmul.f32 %v1323, %v367
  %1332 = vrot.lane.b32.xlu0 %v1330, 32
  %v1333 = vpop.permute.xlu0 %1332
  %v1335 = vsel %vm374, %v1333, 0.0
  %1336 = vadd.xlane.f32.xlu0 %v1335
  %v1337 = vpop.xlane.xlu0 %1336
  %v1338 = vmul.f32 %v1329, %v379
  %1340 = vrot.lane.b32.xlu0 %v1338, 32
  %v1341 = vpop.permute.xlu0 %1340
  %v1343 = vsel %vm374, %v1341, 0.0
  %1344 = vadd.xlane.f32.xlu0 %v1343
  %v1345 = vpop.xlane.xlu0 %1344
  %v1346 = vld [vmem:[%s878] sm:$0xff]
  %v1347 = vadd.f32 %v1346, %v1337
  %1348 = vst.msk [vmem:[%s878] sm:$0xff] %vm224, %v1347
  %v1349 = vld [vmem:[%s874] sm:$0xff]
  %v1350 = vadd.f32 %v1349, %v1345
  %1351 = vst.msk [vmem:[%s874] sm:$0xff] %vm224, %v1350
  %1353 = vrot.lane.b32.xlu0 %v1323, 32
  %v1354 = vpop.permute.xlu0 %1353
  %1357 = vrot.lane.b32.xlu0 %v1329, 64
  %v1358 = vpop.permute.xlu0 %1357
  %v1360 = vsel %vm374, %v1354, %v1358
  %v1362 = vsel %vm57, %v1360, 0
  %1364 = vmatpush.msra.mxu0 0.0
  %1365 = vmatpush.msra.mxu0 0.0
  %1366 = vmatpush.msra.mxu0 0.0
  %1367 = vmatpush.msra.mxu0 0.0
  %1368 = vmatpush.msra.mxu0 0.0
  %1369 = vmatpush.msra.mxu0 0.0
  %1370 = vmatpush.msra.mxu0 0.0
  %1371 = vmatpush.msra.mxu0 0.0
  %1372 = vmatpush.msra.mxu0 %v216
  %1373 = vmatpush.msra.mxu0 %v214
  %1374 = vmatpush.msra.mxu0 %v212
  %1375 = vmatpush.msra.mxu0 %v210
  %1376 = vmatpush.msra.mxu0 %v208
  %1377 = vmatpush.msra.mxu0 %v206
  %1378 = vmatpush.msra.mxu0 %v204
  %1379 = vmatpush.msra.mxu0 %v202
  %1380 = vmatmul.f32.gmra.mxu0 %v1362
  %v1381 = vpop.f32.mrf.mxu0
  %v1382 = vadd.f32 0.0, %v1381
  %1383 = vdwg.mxu0
  %1384 = vmatpush.msra.mxu0 0.0
  %1385 = vmatpush.msra.mxu0 0.0
  %1386 = vmatpush.msra.mxu0 0.0
  %1387 = vmatpush.msra.mxu0 0.0
  %1388 = vmatpush.msra.mxu0 0.0
  %1389 = vmatpush.msra.mxu0 0.0
  %1390 = vmatpush.msra.mxu0 0.0
  %1391 = vmatpush.msra.mxu0 0.0
  %1392 = vmatpush.msra.mxu0 %v217
  %1393 = vmatpush.msra.mxu0 %v215
  %1394 = vmatpush.msra.mxu0 %v213
  %1395 = vmatpush.msra.mxu0 %v211
  %1396 = vmatpush.msra.mxu0 %v209
  %1397 = vmatpush.msra.mxu0 %v207
  %1398 = vmatpush.msra.mxu0 %v205
  %1399 = vmatpush.msra.mxu0 %v203
  %1400 = vmatmul.f32.gmra.mxu0 %v1362
  %v1401 = vpop.f32.mrf.mxu0
  %v1402 = vadd.f32 0.0, %v1401
  %1403 = vdwg.mxu0
  %v1404 = vld [vmem:[%s617] sm:$0xff]
  %v1405 = vadd.f32 %v1404, %v1382
  %v1406 = vld [vmem:[%s612 + $0x8] sm:$0xff]
  %v1407 = vadd.f32 %v1406, %v1402
  %v1408 = vxor.u32 %v1405, 2147483648
  %v1409 = vmul.f32 %v1408, 1.442695
  %v1410 = vpow.pop %v1409
  %v1411 = vadd.f32 %v1410, 1.0
  %v1412 = vrcp.pop %v1411
  %v1413 = vmul.f32 %v1411, %v1412
  %v1414 = vsub.f32 1.0, %v1413
  %v1415 = vmul.f32 %v1412, %v1414
  %v1416 = vadd.f32 %v1412, %v1415
  %vm1417 = vweird.f32 %v1411
  %vm1418 = vweird.f32 %v1412
  %vm1419 = vmor %vm1417, %vm1418
  %v1420 = vsel %vm1419, %v1412, %v1416
  %v1421 = vand.u32 2147483647, %v1411
  %vm1422 = vcmp.eq.f32.partialorder %v1421, 8.507059e+37
  %v1423 = vand.u32 %v1411, 2147483648
  %v1424 = vor.u32 1.1754944e-38, %v1423
  %v1425 = vsel %vm1422, %v1424, %v1420
  %v1426 = vmul.f32 1.0, %v1425
  %v1427 = vxor.u32 %v1407, 2147483648
  %v1428 = vmul.f32 %v1427, 1.442695
  %v1429 = vpow.pop %v1428
  %v1430 = vadd.f32 %v1429, 1.0
  %v1431 = vrcp.pop %v1430
  %v1432 = vmul.f32 %v1430, %v1431
  %v1433 = vsub.f32 1.0, %v1432
  %v1434 = vmul.f32 %v1431, %v1433
  %v1435 = vadd.f32 %v1431, %v1434
  %vm1436 = vweird.f32 %v1430
  %vm1437 = vweird.f32 %v1431
  %vm1438 = vmor %vm1436, %vm1437
  %v1439 = vsel %vm1438, %v1431, %v1435
  %v1440 = vand.u32 2147483647, %v1430
  %vm1441 = vcmp.eq.f32.partialorder %v1440, 8.507059e+37
  %v1442 = vand.u32 %v1430, 2147483648
  %v1443 = vor.u32 1.1754944e-38, %v1442
  %v1444 = vsel %vm1441, %v1443, %v1439
  %v1445 = vmul.f32 1.0, %v1444
  %v1446 = vmul.f32 %v1426, %v1304
  %v1447 = vmul.f32 %v1426, 2.0
  %v1448 = vsub.f32 %v1447, 1.0
  %1450 = vrot.lane.b32.xlu0 %v1448, 64
  %v1451 = vpop.permute.xlu0 %1450
  %v1453 = vmul.f32 %v1426, %v1451
  %1455 = vrot.lane.b32.xlu0 %v1453, 32
  %v1456 = vpop.permute.xlu0 %1455
  %v1458 = vadd.f32 %v1446, %v1456
  %v1459 = vmul.f32 %v1445, %v1317
  %v1460 = vmul.f32 %v1445, 2.0
  %v1461 = vsub.f32 %v1460, 1.0
  %1463 = vrot.lane.b32.xlu0 %v1461, 64
  %v1464 = vpop.permute.xlu0 %1463
  %v1466 = vmul.f32 %v1445, %v1464
  %1468 = vrot.lane.b32.xlu0 %v1466, 32
  %v1469 = vpop.permute.xlu0 %1468
  %v1471 = vadd.f32 %v1459, %v1469
  %v1472 = vtanh.pop %v1458
  %1474 = vrot.lane.b32.xlu0 %v1472, 64
  %v1475 = vpop.permute.xlu0 %1474
  %v1477 = vmul.f32 %v1426, %v1475
  %v1478 = vtanh.pop %v1471
  %1480 = vrot.lane.b32.xlu0 %v1478, 64
  %v1481 = vpop.permute.xlu0 %1480
  %v1483 = vmul.f32 %v1445, %v1481
  %v1484 = vmul.f32 %v1477, %v367
  %1486 = vrot.lane.b32.xlu0 %v1484, 32
  %v1487 = vpop.permute.xlu0 %1486
  %v1489 = vsel %vm374, %v1487, 0.0
  %1490 = vadd.xlane.f32.xlu0 %v1489
  %v1491 = vpop.xlane.xlu0 %1490
  %v1492 = vmul.f32 %v1483, %v379
  %1494 = vrot.lane.b32.xlu0 %v1492, 32
  %v1495 = vpop.permute.xlu0 %1494
  %v1497 = vsel %vm374, %v1495, 0.0
  %1498 = vadd.xlane.f32.xlu0 %v1497
  %v1499 = vpop.xlane.xlu0 %1498
  %v1500 = vld [vmem:[%s716] sm:$0xff]
  %v1501 = vadd.f32 %v1500, %v1491
  %1502 = vst.msk [vmem:[%s716] sm:$0xff] %vm224, %v1501
  %v1503 = vld [vmem:[%s712] sm:$0xff]
  %v1504 = vadd.f32 %v1503, %v1499
  %1505 = vst.msk [vmem:[%s712] sm:$0xff] %vm224, %v1504
  %1507 = vrot.lane.b32.xlu0 %v1477, 32
  %v1508 = vpop.permute.xlu0 %1507
  %1511 = vrot.lane.b32.xlu0 %v1483, 64
  %v1512 = vpop.permute.xlu0 %1511
  %v1514 = vsel %vm374, %v1508, %v1512
  %v1516 = vsel %vm57, %v1514, 0
  %1518 = vmatpush.msra.mxu0 0.0
  %1519 = vmatpush.msra.mxu0 0.0
  %1520 = vmatpush.msra.mxu0 0.0
  %1521 = vmatpush.msra.mxu0 0.0
  %1522 = vmatpush.msra.mxu0 0.0
  %1523 = vmatpush.msra.mxu0 0.0
  %1524 = vmatpush.msra.mxu0 0.0
  %1525 = vmatpush.msra.mxu0 0.0
  %1526 = vmatpush.msra.mxu0 %v216
  %1527 = vmatpush.msra.mxu0 %v214
  %1528 = vmatpush.msra.mxu0 %v212
  %1529 = vmatpush.msra.mxu0 %v210
  %1530 = vmatpush.msra.mxu0 %v208
  %1531 = vmatpush.msra.mxu0 %v206
  %1532 = vmatpush.msra.mxu0 %v204
  %1533 = vmatpush.msra.mxu0 %v202
  %1534 = vmatmul.f32.gmra.mxu0 %v1516
  %v1535 = vpop.f32.mrf.mxu0
  %v1536 = vadd.f32 0.0, %v1535
  %1537 = vdwg.mxu0
  %1538 = vmatpush.msra.mxu0 0.0
  %1539 = vmatpush.msra.mxu0 0.0
  %1540 = vmatpush.msra.mxu0 0.0
  %1541 = vmatpush.msra.mxu0 0.0
  %1542 = vmatpush.msra.mxu0 0.0
  %1543 = vmatpush.msra.mxu0 0.0
  %1544 = vmatpush.msra.mxu0 0.0
  %1545 = vmatpush.msra.mxu0 0.0
  %1546 = vmatpush.msra.mxu0 %v217
  %1547 = vmatpush.msra.mxu0 %v215
  %1548 = vmatpush.msra.mxu0 %v213
  %1549 = vmatpush.msra.mxu0 %v211
  %1550 = vmatpush.msra.mxu0 %v209
  %1551 = vmatpush.msra.mxu0 %v207
  %1552 = vmatpush.msra.mxu0 %v205
  %1553 = vmatpush.msra.mxu0 %v203
  %1554 = vmatmul.f32.gmra.mxu0 %v1516
  %v1555 = vpop.f32.mrf.mxu0
  %v1556 = vadd.f32 0.0, %v1555
  %1557 = vdwg.mxu0
  %v1558 = vld [vmem:[%s455] sm:$0xff]
  %v1559 = vadd.f32 %v1558, %v1536
  %v1560 = vld [vmem:[%s450 + $0x8] sm:$0xff]
  %v1561 = vadd.f32 %v1560, %v1556
  %v1562 = vxor.u32 %v1559, 2147483648
  %v1563 = vmul.f32 %v1562, 1.442695
  %v1564 = vpow.pop %v1563
  %v1565 = vadd.f32 %v1564, 1.0
  %v1566 = vrcp.pop %v1565
  %v1567 = vmul.f32 %v1565, %v1566
  %v1568 = vsub.f32 1.0, %v1567
  %v1569 = vmul.f32 %v1566, %v1568
  %v1570 = vadd.f32 %v1566, %v1569
  %vm1571 = vweird.f32 %v1565
  %vm1572 = vweird.f32 %v1566
  %vm1573 = vmor %vm1571, %vm1572
  %v1574 = vsel %vm1573, %v1566, %v1570
  %v1575 = vand.u32 2147483647, %v1565
  %vm1576 = vcmp.eq.f32.partialorder %v1575, 8.507059e+37
  %v1577 = vand.u32 %v1565, 2147483648
  %v1578 = vor.u32 1.1754944e-38, %v1577
  %v1579 = vsel %vm1576, %v1578, %v1574
  %v1580 = vmul.f32 1.0, %v1579
  %v1581 = vxor.u32 %v1561, 2147483648
  %v1582 = vmul.f32 %v1581, 1.442695
  %v1583 = vpow.pop %v1582
  %v1584 = vadd.f32 %v1583, 1.0
  %v1585 = vrcp.pop %v1584
  %v1586 = vmul.f32 %v1584, %v1585
  %v1587 = vsub.f32 1.0, %v1586
  %v1588 = vmul.f32 %v1585, %v1587
  %v1589 = vadd.f32 %v1585, %v1588
  %vm1590 = vweird.f32 %v1584
  %vm1591 = vweird.f32 %v1585
  %vm1592 = vmor %vm1590, %vm1591
  %v1593 = vsel %vm1592, %v1585, %v1589
  %v1594 = vand.u32 2147483647, %v1584
  %vm1595 = vcmp.eq.f32.partialorder %v1594, 8.507059e+37
  %v1596 = vand.u32 %v1584, 2147483648
  %v1597 = vor.u32 1.1754944e-38, %v1596
  %v1598 = vsel %vm1595, %v1597, %v1593
  %v1599 = vmul.f32 1.0, %v1598
  %v1600 = vmul.f32 %v1580, %v1458
  %v1601 = vmul.f32 %v1580, 2.0
  %v1602 = vsub.f32 %v1601, 1.0
  %1604 = vrot.lane.b32.xlu0 %v1602, 64
  %v1605 = vpop.permute.xlu0 %1604
  %v1607 = vmul.f32 %v1580, %v1605
  %1609 = vrot.lane.b32.xlu0 %v1607, 32
  %v1610 = vpop.permute.xlu0 %1609
  %v1612 = vadd.f32 %v1600, %v1610
  %v1613 = vmul.f32 %v1599, %v1471
  %v1614 = vmul.f32 %v1599, 2.0
  %v1615 = vsub.f32 %v1614, 1.0
  %1617 = vrot.lane.b32.xlu0 %v1615, 64
  %v1618 = vpop.permute.xlu0 %1617
  %v1620 = vmul.f32 %v1599, %v1618
  %1622 = vrot.lane.b32.xlu0 %v1620, 32
  %v1623 = vpop.permute.xlu0 %1622
  %v1625 = vadd.f32 %v1613, %v1623
  %v1626 = vtanh.pop %v1612
  %1628 = vrot.lane.b32.xlu0 %v1626, 64
  %v1629 = vpop.permute.xlu0 %1628
  %v1631 = vmul.f32 %v1580, %v1629
  %v1632 = vtanh.pop %v1625
  %1634 = vrot.lane.b32.xlu0 %v1632, 64
  %v1635 = vpop.permute.xlu0 %1634
  %v1637 = vmul.f32 %v1599, %v1635
  %v1638 = vmul.f32 %v1631, %v367
  %1640 = vrot.lane.b32.xlu0 %v1638, 32
  %v1641 = vpop.permute.xlu0 %1640
  %v1643 = vsel %vm374, %v1641, 0.0
  %1644 = vadd.xlane.f32.xlu0 %v1643
  %v1645 = vpop.xlane.xlu0 %1644
  %v1646 = vmul.f32 %v1637, %v379
  %1648 = vrot.lane.b32.xlu0 %v1646, 32
  %v1649 = vpop.permute.xlu0 %1648
  %v1651 = vsel %vm374, %v1649, 0.0
  %1652 = vadd.xlane.f32.xlu0 %v1651
  %v1653 = vpop.xlane.xlu0 %1652
  %v1654 = vld [vmem:[%s554] sm:$0xff]
  %v1655 = vadd.f32 %v1654, %v1645
  %1656 = vst.msk [vmem:[%s554] sm:$0xff] %vm224, %v1655
  %v1657 = vld [vmem:[%s550] sm:$0xff]
  %v1658 = vadd.f32 %v1657, %v1653
  %1659 = vst.msk [vmem:[%s550] sm:$0xff] %vm224, %v1658
  %1661 = vrot.lane.b32.xlu0 %v1631, 32
  %v1662 = vpop.permute.xlu0 %1661
  %1665 = vrot.lane.b32.xlu0 %v1637, 64
  %v1666 = vpop.permute.xlu0 %1665
  %v1668 = vsel %vm374, %v1662, %v1666
  %v1670 = vsel %vm57, %v1668, 0
  %1672 = vmatpush.msra.mxu0 0.0
  %1673 = vmatpush.msra.mxu0 0.0
  %1674 = vmatpush.msra.mxu0 0.0
  %1675 = vmatpush.msra.mxu0 0.0
  %1676 = vmatpush.msra.mxu0 0.0
  %1677 = vmatpush.msra.mxu0 0.0
  %1678 = vmatpush.msra.mxu0 0.0
  %1679 = vmatpush.msra.mxu0 0.0
  %1680 = vmatpush.msra.mxu0 %v216
  %1681 = vmatpush.msra.mxu0 %v214
  %1682 = vmatpush.msra.mxu0 %v212
  %1683 = vmatpush.msra.mxu0 %v210
  %1684 = vmatpush.msra.mxu0 %v208
  %1685 = vmatpush.msra.mxu0 %v206
  %1686 = vmatpush.msra.mxu0 %v204
  %1687 = vmatpush.msra.mxu0 %v202
  %1688 = vmatmul.f32.gmra.mxu0 %v1670
  %v1689 = vpop.f32.mrf.mxu0
  %v1690 = vadd.f32 0.0, %v1689
  %1691 = vdwg.mxu0
  %1692 = vmatpush.msra.mxu0 0.0
  %1693 = vmatpush.msra.mxu0 0.0
  %1694 = vmatpush.msra.mxu0 0.0
  %1695 = vmatpush.msra.mxu0 0.0
  %1696 = vmatpush.msra.mxu0 0.0
  %1697 = vmatpush.msra.mxu0 0.0
  %1698 = vmatpush.msra.mxu0 0.0
  %1699 = vmatpush.msra.mxu0 0.0
  %1700 = vmatpush.msra.mxu0 %v217
  %1701 = vmatpush.msra.mxu0 %v215
  %1702 = vmatpush.msra.mxu0 %v213
  %1703 = vmatpush.msra.mxu0 %v211
  %1704 = vmatpush.msra.mxu0 %v209
  %1705 = vmatpush.msra.mxu0 %v207
  %1706 = vmatpush.msra.mxu0 %v205
  %1707 = vmatpush.msra.mxu0 %v203
  %1708 = vmatmul.f32.gmra.mxu0 %v1670
  %v1709 = vpop.f32.mrf.mxu0
  %v1710 = vadd.f32 0.0, %v1709
  %1711 = vdwg.mxu0
  %v1712 = vld [vmem:[%s285] sm:$0xff]
  %v1713 = vadd.f32 %v1712, %v1690
  %v1714 = vld [vmem:[%s280 + $0x8] sm:$0xff]
  %v1715 = vadd.f32 %v1714, %v1710
  %v1716 = vxor.u32 %v1713, 2147483648
  %v1717 = vmul.f32 %v1716, 1.442695
  %v1718 = vpow.pop %v1717
  %v1719 = vadd.f32 %v1718, 1.0
  %v1720 = vrcp.pop %v1719
  %v1721 = vmul.f32 %v1719, %v1720
  %v1722 = vsub.f32 1.0, %v1721
  %v1723 = vmul.f32 %v1720, %v1722
  %v1724 = vadd.f32 %v1720, %v1723
  %vm1725 = vweird.f32 %v1719
  %vm1726 = vweird.f32 %v1720
  %vm1727 = vmor %vm1725, %vm1726
  %v1728 = vsel %vm1727, %v1720, %v1724
  %v1729 = vand.u32 2147483647, %v1719
  %vm1730 = vcmp.eq.f32.partialorder %v1729, 8.507059e+37
  %v1731 = vand.u32 %v1719, 2147483648
  %v1732 = vor.u32 1.1754944e-38, %v1731
  %v1733 = vsel %vm1730, %v1732, %v1728
  %v1734 = vmul.f32 1.0, %v1733
  %v1735 = vxor.u32 %v1715, 2147483648
  %v1736 = vmul.f32 %v1735, 1.442695
  %v1737 = vpow.pop %v1736
  %v1738 = vadd.f32 %v1737, 1.0
  %v1739 = vrcp.pop %v1738
  %v1740 = vmul.f32 %v1738, %v1739
  %v1741 = vsub.f32 1.0, %v1740
  %v1742 = vmul.f32 %v1739, %v1741
  %v1743 = vadd.f32 %v1739, %v1742
  %vm1744 = vweird.f32 %v1738
  %vm1745 = vweird.f32 %v1739
  %vm1746 = vmor %vm1744, %vm1745
  %v1747 = vsel %vm1746, %v1739, %v1743
  %v1748 = vand.u32 2147483647, %v1738
  %vm1749 = vcmp.eq.f32.partialorder %v1748, 8.507059e+37
  %v1750 = vand.u32 %v1738, 2147483648
  %v1751 = vor.u32 1.1754944e-38, %v1750
  %v1752 = vsel %vm1749, %v1751, %v1747
  %v1753 = vmul.f32 1.0, %v1752
  %v1754 = vmul.f32 %v1734, %v1612
  %v1755 = vmul.f32 %v1734, 2.0
  %v1756 = vsub.f32 %v1755, 1.0
  %1758 = vrot.lane.b32.xlu0 %v1756, 64
  %v1759 = vpop.permute.xlu0 %1758
  %v1761 = vmul.f32 %v1734, %v1759
  %1763 = vrot.lane.b32.xlu0 %v1761, 32
  %v1764 = vpop.permute.xlu0 %1763
  %v1766 = vadd.f32 %v1754, %v1764
  %v1767 = vmul.f32 %v1753, %v1625
  %v1768 = vmul.f32 %v1753, 2.0
  %v1769 = vsub.f32 %v1768, 1.0
  %1771 = vrot.lane.b32.xlu0 %v1769, 64
  %v1772 = vpop.permute.xlu0 %1771
  %v1774 = vmul.f32 %v1753, %v1772
  %1776 = vrot.lane.b32.xlu0 %v1774, 32
  %v1777 = vpop.permute.xlu0 %1776
  %v1779 = vadd.f32 %v1767, %v1777
  %v1780 = vtanh.pop %v1766
  %1782 = vrot.lane.b32.xlu0 %v1780, 64
  %v1783 = vpop.permute.xlu0 %1782
  %v1785 = vmul.f32 %v1734, %v1783
  %v1786 = vtanh.pop %v1779
  %1788 = vrot.lane.b32.xlu0 %v1786, 64
  %v1789 = vpop.permute.xlu0 %1788
  %v1791 = vmul.f32 %v1753, %v1789
  %v1792 = vmul.f32 %v1785, %v367
  %1794 = vrot.lane.b32.xlu0 %v1792, 32
  %v1795 = vpop.permute.xlu0 %1794
  %v1797 = vsel %vm374, %v1795, 0.0
  %1798 = vadd.xlane.f32.xlu0 %v1797
  %v1799 = vpop.xlane.xlu0 %1798
  %v1800 = vmul.f32 %v1791, %v379
  %1802 = vrot.lane.b32.xlu0 %v1800, 32
  %v1803 = vpop.permute.xlu0 %1802
  %v1805 = vsel %vm374, %v1803, 0.0
  %1806 = vadd.xlane.f32.xlu0 %v1805
  %v1807 = vpop.xlane.xlu0 %1806
  %v1808 = vld [vmem:[%s392] sm:$0xff]
  %v1809 = vadd.f32 %v1808, %v1799
  %1810 = vst.msk [vmem:[%s392] sm:$0xff] %vm224, %v1809
  %v1811 = vld [vmem:[%s6] sm:$0xff]
  %v1812 = vadd.f32 %v1811, %v1807
  %1813 = vst.msk [vmem:[%s6] sm:$0xff] %vm224, %v1812
  // Predicated region
  $region26: #{_lambda_.3} parent=0 // pred_check
    _
  $region27: #{_lambda_.3} parent=0 // pred_check_branch
    %1815 = sbr.rel (0) target = $region29
  $region28: #{_lambda_.3} parent=0 // pred_region
    _
  $region29: #{_lambda_.3} parent=0 // pred_fallthru
    _
  // Predicated region
  $region30: #{_lambda_.3} parent=0 // pred_check
    _
  $region31: #{_lambda_.3} parent=0 // pred_check_branch
    %1817 = sbr.rel (0) target = $region33
  $region32: #{_lambda_.3} parent=0 // pred_region
    _
  $region33: #{_lambda_.3} parent=0 // pred_fallthru
    _

// kernel: _lambda_.2
$region0: #{_lambda_.2}
  #allocation0 [shape = 'u32[]', space=smem, size = 0x4, offset = 0x4, fixed_abs, tag = 'smem constant byte address 0x4 - core index']
  #allocation1 [shape = 'u32[72,128]{1,0:T(1,128)}', space=vmem, size = 0x9000, scoped, tag = 'internal scratch']
  #allocation2 [shape = 'f32[80,256]{1,0:T(8,128)}', space=vmem, size = 0x14000, scoped, tag = 'scratch operand']
  %s0 = inlined_call_operand.vmem [shape: f32[80,32], index: 0, kind: input, shape index: {}]
  %s1 = inlined_call_operand.vmem [shape: f32[32,256], index: 1, kind: input, shape index: {}]
  %s2 = inlined_call_operand.vmem [shape: f32[64,256], index: 2, kind: input, shape index: {}]
  %s3 = inlined_call_operand.vmem [shape: f32[1,256], index: 3, kind: input, shape index: {}]
  %s4 = inlined_call_operand.vmem [shape: f32[80,64], index: 4, kind: output, shape index: {}]
  %s5 = sld [smem:[#allocation0]]
  $region26: #{_lambda_.2} parent=0
    _
  %s7 = ssub.s32 1, %s5
  %s8 = scalar_select 0, %s7, %s5
  // Predicated region
  $region2: #{_lambda_.2} parent=0 // pred_check
    _
  $region3: #{_lambda_.2} parent=0 // pred_check_branch
    %10 = sbr.rel (0) target = $region5
  $region4: #{_lambda_.2} parent=0 // pred_region
    _
  $region5: #{_lambda_.2} parent=0 // pred_fallthru
    _
  // Predicated region
  $region6: #{_lambda_.2} parent=0 // pred_check
    _
  $region7: #{_lambda_.2} parent=0 // pred_check_branch
    %12 = sbr.rel (0) target = $region9
  $region8: #{_lambda_.2} parent=0 // pred_region
    _
  $region9: #{_lambda_.2} parent=0 // pred_fallthru
    _
  // Predicated region
  $region10: #{_lambda_.2} parent=0 // pred_check
    _
  $region11: #{_lambda_.2} parent=0 // pred_check_branch
    %14 = sbr.rel (0) target = $region13
  $region12: #{_lambda_.2} parent=0 // pred_region
    _
  $region13: #{_lambda_.2} parent=0 // pred_fallthru
    _
  // Predicated region
  $region14: #{_lambda_.2} parent=0 // pred_check
    _
  $region15: #{_lambda_.2} parent=0 // pred_check_branch
    %16 = sbr.rel (0) target = $region17
  $region16: #{_lambda_.2} parent=0 // pred_region
    _
  $region17: #{_lambda_.2} parent=0 // pred_fallthru
    _
  %v17 = vld [vmem:[%s0] sm:$0xff]
  %v18 = vld [vmem:[%s0 + $0x8] sm:$0xff]
  %v19 = vld [vmem:[%s0 + $0x10] sm:$0xff]
  %v20 = vld [vmem:[%s0 + $0x18] sm:$0xff]
  %v21 = vld [vmem:[%s0 + $0x20] sm:$0xff]
  %v22 = vld [vmem:[%s0 + $0x28] sm:$0xff]
  %v23 = vld [vmem:[%s0 + $0x30] sm:$0xff]
  %v24 = vld [vmem:[%s0 + $0x38] sm:$0xff]
  %v25 = vld [vmem:[%s0 + $0x40] sm:$0xff]
  %v26 = vld [vmem:[%s0 + $0x48] sm:$0xff]
  %v27 = vld [vmem:[%s1] sm:$0xff]
  %v28 = vld [vmem:[%s1 + $0x8] sm:$0xff]
  %v29 = vld [vmem:[%s1 + $0x10] sm:$0xff]
  %v30 = vld [vmem:[%s1 + $0x18] sm:$0xff]
  %v31 = vld [vmem:[%s1 + $0x20] sm:$0xff]
  %v32 = vld [vmem:[%s1 + $0x28] sm:$0xff]
  %v33 = vld [vmem:[%s1 + $0x30] sm:$0xff]
  %v34 = vld [vmem:[%s1 + $0x38] sm:$0xff]
  %v35 = vld [vmem:[%s3] sm:$0x3]
  %v37 = vperm.slane %v35, 0
  %v38 = vperm.slane %v35, 1
  %vm41 = vcmask 261120
  %v43 = vsel %vm41, %v17, 0
  %v46 = vsel %vm41, %v18, 0
  %v49 = vsel %vm41, %v19, 0
  %v52 = vsel %vm41, %v20, 0
  %v55 = vsel %vm41, %v21, 0
  %v58 = vsel %vm41, %v22, 0
  %v61 = vsel %vm41, %v23, 0
  %v64 = vsel %vm41, %v24, 0
  %v67 = vsel %vm41, %v25, 0
  %v70 = vsel %vm41, %v26, 0
  %72 = vmatpush.msra.mxu0 0.0
  %73 = vmatpush.msra.mxu0 0.0
  %74 = vmatpush.msra.mxu0 0.0
  %75 = vmatpush.msra.mxu0 0.0
  %76 = vmatpush.msra.mxu0 0.0
  %77 = vmatpush.msra.mxu0 0.0
  %78 = vmatpush.msra.mxu0 0.0
  %79 = vmatpush.msra.mxu0 0.0
  %80 = vmatpush.msra.mxu0 0.0
  %81 = vmatpush.msra.mxu0 0.0
  %82 = vmatpush.msra.mxu0 0.0
  %83 = vmatpush.msra.mxu0 0.0
  %84 = vmatpush.msra.mxu0 %v33
  %85 = vmatpush.msra.mxu0 %v31
  %86 = vmatpush.msra.mxu0 %v29
  %87 = vmatpush.msra.mxu0 %v27
  %88 = vmatmul.f32.gmra.mxu0 %v43
  %v89 = vpop.f32.mrf.mxu0
  %v90 = vadd.f32 %v37, %v89
  %91 = vmatmul.f32.gmra.mxu0 %v46
  %v92 = vpop.f32.mrf.mxu0
  %v93 = vadd.f32 %v37, %v92
  %94 = vmatmul.f32.gmra.mxu0 %v49
  %v95 = vpop.f32.mrf.mxu0
  %v96 = vadd.f32 %v37, %v95
  %97 = vmatmul.f32.gmra.mxu0 %v52
  %v98 = vpop.f32.mrf.mxu0
  %v99 = vadd.f32 %v37, %v98
  %100 = vmatmul.f32.gmra.mxu0 %v55
  %v101 = vpop.f32.mrf.mxu0
  %v102 = vadd.f32 %v37, %v101
  %103 = vmatmul.f32.gmra.mxu0 %v58
  %v104 = vpop.f32.mrf.mxu0
  %v105 = vadd.f32 %v37, %v104
  %106 = vmatmul.f32.gmra.mxu0 %v61
  %v107 = vpop.f32.mrf.mxu0
  %v108 = vadd.f32 %v37, %v107
  %109 = vmatmul.f32.gmra.mxu0 %v64
  %v110 = vpop.f32.mrf.mxu0
  %v111 = vadd.f32 %v37, %v110
  %112 = vmatmul.f32.gmra.mxu0 %v67
  %v113 = vpop.f32.mrf.mxu0
  %v114 = vadd.f32 %v37, %v113
  %115 = vmatmul.f32.gmra.mxu0 %v70
  %v116 = vpop.f32.mrf.mxu0
  %v117 = vadd.f32 %v37, %v116
  %118 = vdwg.mxu0
  %119 = vmatpush.msra.mxu0 0.0
  %120 = vmatpush.msra.mxu0 0.0
  %121 = vmatpush.msra.mxu0 0.0
  %122 = vmatpush.msra.mxu0 0.0
  %123 = vmatpush.msra.mxu0 0.0
  %124 = vmatpush.msra.mxu0 0.0
  %125 = vmatpush.msra.mxu0 0.0
  %126 = vmatpush.msra.mxu0 0.0
  %127 = vmatpush.msra.mxu0 0.0
  %128 = vmatpush.msra.mxu0 0.0
  %129 = vmatpush.msra.mxu0 0.0
  %130 = vmatpush.msra.mxu0 0.0
  %131 = vmatpush.msra.mxu0 %v34
  %132 = vmatpush.msra.mxu0 %v32
  %133 = vmatpush.msra.mxu0 %v30
  %134 = vmatpush.msra.mxu0 %v28
  %135 = vmatmul.f32.gmra.mxu0 %v43
  %v136 = vpop.f32.mrf.mxu0
  %v137 = vadd.f32 %v38, %v136
  %138 = vmatmul.f32.gmra.mxu0 %v46
  %v139 = vpop.f32.mrf.mxu0
  %v140 = vadd.f32 %v38, %v139
  %141 = vmatmul.f32.gmra.mxu0 %v49
  %v142 = vpop.f32.mrf.mxu0
  %v143 = vadd.f32 %v38, %v142
  %144 = vmatmul.f32.gmra.mxu0 %v52
  %v145 = vpop.f32.mrf.mxu0
  %v146 = vadd.f32 %v38, %v145
  %147 = vmatmul.f32.gmra.mxu0 %v55
  %v148 = vpop.f32.mrf.mxu0
  %v149 = vadd.f32 %v38, %v148
  %150 = vmatmul.f32.gmra.mxu0 %v58
  %v151 = vpop.f32.mrf.mxu0
  %v152 = vadd.f32 %v38, %v151
  %153 = vmatmul.f32.gmra.mxu0 %v61
  %v154 = vpop.f32.mrf.mxu0
  %v155 = vadd.f32 %v38, %v154
  %156 = vmatmul.f32.gmra.mxu0 %v64
  %v157 = vpop.f32.mrf.mxu0
  %v158 = vadd.f32 %v38, %v157
  %159 = vmatmul.f32.gmra.mxu0 %v67
  %v160 = vpop.f32.mrf.mxu0
  %v161 = vadd.f32 %v38, %v160
  %162 = vmatmul.f32.gmra.mxu0 %v70
  %v163 = vpop.f32.mrf.mxu0
  %v164 = vadd.f32 %v38, %v163
  %165 = vdwg.mxu0
  %166 = vst [vmem:[#allocation2] sm:$0xff] %v90
  %167 = vst [vmem:[#allocation2 + $0x8] sm:$0xff] %v137
  %168 = vst [vmem:[#allocation2 + $0x10] sm:$0xff] %v93
  %169 = vst [vmem:[#allocation2 + $0x18] sm:$0xff] %v140
  %170 = vst [vmem:[#allocation2 + $0x20] sm:$0xff] %v96
  %171 = vst [vmem:[#allocation2 + $0x28] sm:$0xff] %v143
  %172 = vst [vmem:[#allocation2 + $0x30] sm:$0xff] %v99
  %173 = vst [vmem:[#allocation2 + $0x38] sm:$0xff] %v146
  %174 = vst [vmem:[#allocation2 + $0x40] sm:$0xff] %v102
  %175 = vst [vmem:[#allocation2 + $0x48] sm:$0xff] %v149
  %176 = vst [vmem:[#allocation2 + $0x50] sm:$0xff] %v105
  %177 = vst [vmem:[#allocation2 + $0x58] sm:$0xff] %v152
  %178 = vst [vmem:[#allocation2 + $0x60] sm:$0xff] %v108
  %179 = vst [vmem:[#allocation2 + $0x68] sm:$0xff] %v155
  %180 = vst [vmem:[#allocation2 + $0x70] sm:$0xff] %v111
  %181 = vst [vmem:[#allocation2 + $0x78] sm:$0xff] %v158
  %182 = vst [vmem:[#allocation2 + $0x80] sm:$0xff] %v114
  %183 = vst [vmem:[#allocation2 + $0x88] sm:$0xff] %v161
  %184 = vst [vmem:[#allocation2 + $0x90] sm:$0xff] %v117
  %185 = vst [vmem:[#allocation2 + $0x98] sm:$0xff] %v164
  %v186 = vld [vmem:[%s2] sm:$0xff]
  %v187 = vld [vmem:[%s2 + $0x8] sm:$0xff]
  %v188 = vld [vmem:[%s2 + $0x10] sm:$0xff]
  %v189 = vld [vmem:[%s2 + $0x18] sm:$0xff]
  %v190 = vld [vmem:[%s2 + $0x20] sm:$0xff]
  %v191 = vld [vmem:[%s2 + $0x28] sm:$0xff]
  %v192 = vld [vmem:[%s2 + $0x30] sm:$0xff]
  %v193 = vld [vmem:[%s2 + $0x38] sm:$0xff]
  %v194 = vld [vmem:[%s2 + $0x40] sm:$0xff]
  %v195 = vld [vmem:[%s2 + $0x48] sm:$0xff]
  %v196 = vld [vmem:[%s2 + $0x50] sm:$0xff]
  %v197 = vld [vmem:[%s2 + $0x58] sm:$0xff]
  %v198 = vld [vmem:[%s2 + $0x60] sm:$0xff]
  %v199 = vld [vmem:[%s2 + $0x68] sm:$0xff]
  %v200 = vld [vmem:[%s2 + $0x70] sm:$0xff]
  %v201 = vld [vmem:[%s2 + $0x78] sm:$0xff]
  %vm202 = vcmask 523264
  %v204 = vsel %vm202, 0.0, 0
  %206 = vmatpush.msra.mxu0 0.0
  %207 = vmatpush.msra.mxu0 0.0
  %208 = vmatpush.msra.mxu0 0.0
  %209 = vmatpush.msra.mxu0 0.0
  %210 = vmatpush.msra.mxu0 0.0
  %211 = vmatpush.msra.mxu0 0.0
  %212 = vmatpush.msra.mxu0 0.0
  %213 = vmatpush.msra.mxu0 0.0
  %214 = vmatpush.msra.mxu0 %v200
  %215 = vmatpush.msra.mxu0 %v198
  %216 = vmatpush.msra.mxu0 %v196
  %217 = vmatpush.msra.mxu0 %v194
  %218 = vmatpush.msra.mxu0 %v192
  %219 = vmatpush.msra.mxu0 %v190
  %220 = vmatpush.msra.mxu0 %v188
  %221 = vmatpush.msra.mxu0 %v186
  %222 = vmatmul.f32.gmra.mxu0 %v204
  %v223 = vpop.f32.mrf.mxu0
  %v224 = vadd.f32 0.0, %v223
  %225 = vdwg.mxu0
  %226 = vmatpush.msra.mxu0 0.0
  %227 = vmatpush.msra.mxu0 0.0
  %228 = vmatpush.msra.mxu0 0.0
  %229 = vmatpush.msra.mxu0 0.0
  %230 = vmatpush.msra.mxu0 0.0
  %231 = vmatpush.msra.mxu0 0.0
  %232 = vmatpush.msra.mxu0 0.0
  %233 = vmatpush.msra.mxu0 0.0
  %234 = vmatpush.msra.mxu0 %v201
  %235 = vmatpush.msra.mxu0 %v199
  %236 = vmatpush.msra.mxu0 %v197
  %237 = vmatpush.msra.mxu0 %v195
  %238 = vmatpush.msra.mxu0 %v193
  %239 = vmatpush.msra.mxu0 %v191
  %240 = vmatpush.msra.mxu0 %v189
  %241 = vmatpush.msra.mxu0 %v187
  %242 = vmatmul.f32.gmra.mxu0 %v204
  %v243 = vpop.f32.mrf.mxu0
  %v244 = vadd.f32 0.0, %v243
  %245 = vdwg.mxu0
  %s246 = smul.u32 0, 2
  %s247 = smul.addr %s246, 8
  %s248 = scalar_lea.vmem [#allocation2], %s247
  %v249 = vld [vmem:[%s248] sm:$0xff]
  %v250 = vadd.f32 %v249, %v224
  %s251 = smul.u32 9, 2
  %s252 = smul.addr %s251, 8
  %s253 = scalar_lea.vmem [#allocation2], %s252
  %v254 = vld [vmem:[%s253 + $0x8] sm:$0xff]
  %v255 = vadd.f32 %v254, %v244
  %v256 = vxor.u32 %v250, 2147483648
  %v257 = vmul.f32 %v256, 1.442695
  %v258 = vpow.pop %v257
  %v259 = vadd.f32 %v258, 1.0
  %v260 = vrcp.pop %v259
  %v261 = vmul.f32 %v259, %v260
  %v262 = vsub.f32 1.0, %v261
  %v263 = vmul.f32 %v260, %v262
  %v264 = vadd.f32 %v260, %v263
  %vm265 = vweird.f32 %v259
  %vm266 = vweird.f32 %v260
  %vm267 = vmor %vm265, %vm266
  %v268 = vsel %vm267, %v260, %v264
  %v269 = vand.u32 2147483647, %v259
  %vm270 = vcmp.eq.f32.partialorder %v269, 8.507059e+37
  %v271 = vand.u32 %v259, 2147483648
  %v272 = vor.u32 1.1754944e-38, %v271
  %v273 = vsel %vm270, %v272, %v268
  %v274 = vmul.f32 1.0, %v273
  %v275 = vxor.u32 %v255, 2147483648
  %v276 = vmul.f32 %v275, 1.442695
  %v277 = vpow.pop %v276
  %v278 = vadd.f32 %v277, 1.0
  %v279 = vrcp.pop %v278
  %v280 = vmul.f32 %v278, %v279
  %v281 = vsub.f32 1.0, %v280
  %v282 = vmul.f32 %v279, %v281
  %v283 = vadd.f32 %v279, %v282
  %vm284 = vweird.f32 %v278
  %vm285 = vweird.f32 %v279
  %vm286 = vmor %vm284, %vm285
  %v287 = vsel %vm286, %v279, %v283
  %v288 = vand.u32 2147483647, %v278
  %vm289 = vcmp.eq.f32.partialorder %v288, 8.507059e+37
  %v290 = vand.u32 %v278, 2147483648
  %v291 = vor.u32 1.1754944e-38, %v290
  %v292 = vsel %vm289, %v291, %v287
  %v293 = vmul.f32 1.0, %v292
  %v294 = vmul.f32 %v274, 0.0
  %v295 = vmul.f32 %v274, 2.0
  %v296 = vsub.f32 %v295, 1.0
  %298 = vrot.lane.b32.xlu0 %v296, 64
  %v299 = vpop.permute.xlu0 %298
  %v301 = vmul.f32 %v274, %v299
  %303 = vrot.lane.b32.xlu0 %v301, 32
  %v304 = vpop.permute.xlu0 %303
  %v306 = vadd.f32 %v294, %v304
  %v307 = vmul.f32 %v293, 0.0
  %v308 = vmul.f32 %v293, 2.0
  %v309 = vsub.f32 %v308, 1.0
  %311 = vrot.lane.b32.xlu0 %v309, 64
  %v312 = vpop.permute.xlu0 %311
  %v314 = vmul.f32 %v293, %v312
  %316 = vrot.lane.b32.xlu0 %v314, 32
  %v317 = vpop.permute.xlu0 %316
  %v319 = vadd.f32 %v307, %v317
  %v320 = vtanh.pop %v306
  %322 = vrot.lane.b32.xlu0 %v320, 64
  %v323 = vpop.permute.xlu0 %322
  %v325 = vmul.f32 %v274, %v323
  %v326 = vtanh.pop %v319
  %328 = vrot.lane.b32.xlu0 %v326, 64
  %v329 = vpop.permute.xlu0 %328
  %v331 = vmul.f32 %v293, %v329
  %333 = vrot.lane.b32.xlu0 %v325, 32
  %v334 = vpop.permute.xlu0 %333
  %336 = vst.msk [vmem:[%s4] sm:$0xff] %vm41, %v334
  %338 = vrot.lane.b32.xlu0 %v331, 64
  %v339 = vpop.permute.xlu0 %338
  %s341 = scalar_lea.vmem %s4, 72
  %vm342 = vcmask 523520
  %343 = vst.msk [vmem:[%s341] sm:$0xff] %vm342, %v339
  %v344 = vsel %vm41, %v334, %v339
  %v346 = vsel %vm202, %v344, 0
  %348 = vmatpush.msra.mxu0 0.0
  %349 = vmatpush.msra.mxu0 0.0
  %350 = vmatpush.msra.mxu0 0.0
  %351 = vmatpush.msra.mxu0 0.0
  %352 = vmatpush.msra.mxu0 0.0
  %353 = vmatpush.msra.mxu0 0.0
  %354 = vmatpush.msra.mxu0 0.0
  %355 = vmatpush.msra.mxu0 0.0
  %356 = vmatpush.msra.mxu0 %v200
  %357 = vmatpush.msra.mxu0 %v198
  %358 = vmatpush.msra.mxu0 %v196
  %359 = vmatpush.msra.mxu0 %v194
  %360 = vmatpush.msra.mxu0 %v192
  %361 = vmatpush.msra.mxu0 %v190
  %362 = vmatpush.msra.mxu0 %v188
  %363 = vmatpush.msra.mxu0 %v186
  %364 = vmatmul.f32.gmra.mxu0 %v346
  %v365 = vpop.f32.mrf.mxu0
  %v366 = vadd.f32 0.0, %v365
  %367 = vdwg.mxu0
  %368 = vmatpush.msra.mxu0 0.0
  %369 = vmatpush.msra.mxu0 0.0
  %370 = vmatpush.msra.mxu0 0.0
  %371 = vmatpush.msra.mxu0 0.0
  %372 = vmatpush.msra.mxu0 0.0
  %373 = vmatpush.msra.mxu0 0.0
  %374 = vmatpush.msra.mxu0 0.0
  %375 = vmatpush.msra.mxu0 0.0
  %376 = vmatpush.msra.mxu0 %v201
  %377 = vmatpush.msra.mxu0 %v199
  %378 = vmatpush.msra.mxu0 %v197
  %379 = vmatpush.msra.mxu0 %v195
  %380 = vmatpush.msra.mxu0 %v193
  %381 = vmatpush.msra.mxu0 %v191
  %382 = vmatpush.msra.mxu0 %v189
  %383 = vmatpush.msra.mxu0 %v187
  %384 = vmatmul.f32.gmra.mxu0 %v346
  %v385 = vpop.f32.mrf.mxu0
  %v386 = vadd.f32 0.0, %v385
  %387 = vdwg.mxu0
  %s388 = smul.u32 1, 2
  %s389 = smul.addr %s388, 8
  %s390 = scalar_lea.vmem [#allocation2], %s389
  %v391 = vld [vmem:[%s390] sm:$0xff]
  %v392 = vadd.f32 %v391, %v366
  %s393 = smul.u32 8, 2
  %s394 = smul.addr %s393, 8
  %s395 = scalar_lea.vmem [#allocation2], %s394
  %v396 = vld [vmem:[%s395 + $0x8] sm:$0xff]
  %v397 = vadd.f32 %v396, %v386
  %v398 = vxor.u32 %v392, 2147483648
  %v399 = vmul.f32 %v398, 1.442695
  %v400 = vpow.pop %v399
  %v401 = vadd.f32 %v400, 1.0
  %v402 = vrcp.pop %v401
  %v403 = vmul.f32 %v401, %v402
  %v404 = vsub.f32 1.0, %v403
  %v405 = vmul.f32 %v402, %v404
  %v406 = vadd.f32 %v402, %v405
  %vm407 = vweird.f32 %v401
  %vm408 = vweird.f32 %v402
  %vm409 = vmor %vm407, %vm408
  %v410 = vsel %vm409, %v402, %v406
  %v411 = vand.u32 2147483647, %v401
  %vm412 = vcmp.eq.f32.partialorder %v411, 8.507059e+37
  %v413 = vand.u32 %v401, 2147483648
  %v414 = vor.u32 1.1754944e-38, %v413
  %v415 = vsel %vm412, %v414, %v410
  %v416 = vmul.f32 1.0, %v415
  %v417 = vxor.u32 %v397, 2147483648
  %v418 = vmul.f32 %v417, 1.442695
  %v419 = vpow.pop %v418
  %v420 = vadd.f32 %v419, 1.0
  %v421 = vrcp.pop %v420
  %v422 = vmul.f32 %v420, %v421
  %v423 = vsub.f32 1.0, %v422
  %v424 = vmul.f32 %v421, %v423
  %v425 = vadd.f32 %v421, %v424
  %vm426 = vweird.f32 %v420
  %vm427 = vweird.f32 %v421
  %vm428 = vmor %vm426, %vm427
  %v429 = vsel %vm428, %v421, %v425
  %v430 = vand.u32 2147483647, %v420
  %vm431 = vcmp.eq.f32.partialorder %v430, 8.507059e+37
  %v432 = vand.u32 %v420, 2147483648
  %v433 = vor.u32 1.1754944e-38, %v432
  %v434 = vsel %vm431, %v433, %v429
  %v435 = vmul.f32 1.0, %v434
  %v436 = vmul.f32 %v416, %v306
  %v437 = vmul.f32 %v416, 2.0
  %v438 = vsub.f32 %v437, 1.0
  %440 = vrot.lane.b32.xlu0 %v438, 64
  %v441 = vpop.permute.xlu0 %440
  %v443 = vmul.f32 %v416, %v441
  %445 = vrot.lane.b32.xlu0 %v443, 32
  %v446 = vpop.permute.xlu0 %445
  %v448 = vadd.f32 %v436, %v446
  %v449 = vmul.f32 %v435, %v319
  %v450 = vmul.f32 %v435, 2.0
  %v451 = vsub.f32 %v450, 1.0
  %453 = vrot.lane.b32.xlu0 %v451, 64
  %v454 = vpop.permute.xlu0 %453
  %v456 = vmul.f32 %v435, %v454
  %458 = vrot.lane.b32.xlu0 %v456, 32
  %v459 = vpop.permute.xlu0 %458
  %v461 = vadd.f32 %v449, %v459
  %v462 = vtanh.pop %v448
  %464 = vrot.lane.b32.xlu0 %v462, 64
  %v465 = vpop.permute.xlu0 %464
  %v467 = vmul.f32 %v416, %v465
  %v468 = vtanh.pop %v461
  %470 = vrot.lane.b32.xlu0 %v468, 64
  %v471 = vpop.permute.xlu0 %470
  %v473 = vmul.f32 %v435, %v471
  %475 = vrot.lane.b32.xlu0 %v467, 32
  %v476 = vpop.permute.xlu0 %475
  %s478 = scalar_lea.vmem %s4, 8
  %479 = vst.msk [vmem:[%s478] sm:$0xff] %vm41, %v476
  %481 = vrot.lane.b32.xlu0 %v473, 64
  %v482 = vpop.permute.xlu0 %481
  %s484 = scalar_lea.vmem %s4, 64
  %485 = vst.msk [vmem:[%s484] sm:$0xff] %vm342, %v482
  %v486 = vsel %vm41, %v476, %v482
  %v488 = vsel %vm202, %v486, 0
  %490 = vmatpush.msra.mxu0 0.0
  %491 = vmatpush.msra.mxu0 0.0
  %492 = vmatpush.msra.mxu0 0.0
  %493 = vmatpush.msra.mxu0 0.0
  %494 = vmatpush.msra.mxu0 0.0
  %495 = vmatpush.msra.mxu0 0.0
  %496 = vmatpush.msra.mxu0 0.0
  %497 = vmatpush.msra.mxu0 0.0
  %498 = vmatpush.msra.mxu0 %v200
  %499 = vmatpush.msra.mxu0 %v198
  %500 = vmatpush.msra.mxu0 %v196
  %501 = vmatpush.msra.mxu0 %v194
  %502 = vmatpush.msra.mxu0 %v192
  %503 = vmatpush.msra.mxu0 %v190
  %504 = vmatpush.msra.mxu0 %v188
  %505 = vmatpush.msra.mxu0 %v186
  %506 = vmatmul.f32.gmra.mxu0 %v488
  %v507 = vpop.f32.mrf.mxu0
  %v508 = vadd.f32 0.0, %v507
  %509 = vdwg.mxu0
  %510 = vmatpush.msra.mxu0 0.0
  %511 = vmatpush.msra.mxu0 0.0
  %512 = vmatpush.msra.mxu0 0.0
  %513 = vmatpush.msra.mxu0 0.0
  %514 = vmatpush.msra.mxu0 0.0
  %515 = vmatpush.msra.mxu0 0.0
  %516 = vmatpush.msra.mxu0 0.0
  %517 = vmatpush.msra.mxu0 0.0
  %518 = vmatpush.msra.mxu0 %v201
  %519 = vmatpush.msra.mxu0 %v199
  %520 = vmatpush.msra.mxu0 %v197
  %521 = vmatpush.msra.mxu0 %v195
  %522 = vmatpush.msra.mxu0 %v193
  %523 = vmatpush.msra.mxu0 %v191
  %524 = vmatpush.msra.mxu0 %v189
  %525 = vmatpush.msra.mxu0 %v187
  %526 = vmatmul.f32.gmra.mxu0 %v488
  %v527 = vpop.f32.mrf.mxu0
  %v528 = vadd.f32 0.0, %v527
  %529 = vdwg.mxu0
  %s530 = smul.u32 2, 2
  %s531 = smul.addr %s530, 8
  %s532 = scalar_lea.vmem [#allocation2], %s531
  %v533 = vld [vmem:[%s532] sm:$0xff]
  %v534 = vadd.f32 %v533, %v508
  %s535 = smul.u32 7, 2
  %s536 = smul.addr %s535, 8
  %s537 = scalar_lea.vmem [#allocation2], %s536
  %v538 = vld [vmem:[%s537 + $0x8] sm:$0xff]
  %v539 = vadd.f32 %v538, %v528
  %v540 = vxor.u32 %v534, 2147483648
  %v541 = vmul.f32 %v540, 1.442695
  %v542 = vpow.pop %v541
  %v543 = vadd.f32 %v542, 1.0
  %v544 = vrcp.pop %v543
  %v545 = vmul.f32 %v543, %v544
  %v546 = vsub.f32 1.0, %v545
  %v547 = vmul.f32 %v544, %v546
  %v548 = vadd.f32 %v544, %v547
  %vm549 = vweird.f32 %v543
  %vm550 = vweird.f32 %v544
  %vm551 = vmor %vm549, %vm550
  %v552 = vsel %vm551, %v544, %v548
  %v553 = vand.u32 2147483647, %v543
  %vm554 = vcmp.eq.f32.partialorder %v553, 8.507059e+37
  %v555 = vand.u32 %v543, 2147483648
  %v556 = vor.u32 1.1754944e-38, %v555
  %v557 = vsel %vm554, %v556, %v552
  %v558 = vmul.f32 1.0, %v557
  %v559 = vxor.u32 %v539, 2147483648
  %v560 = vmul.f32 %v559, 1.442695
  %v561 = vpow.pop %v560
  %v562 = vadd.f32 %v561, 1.0
  %v563 = vrcp.pop %v562
  %v564 = vmul.f32 %v562, %v563
  %v565 = vsub.f32 1.0, %v564
  %v566 = vmul.f32 %v563, %v565
  %v567 = vadd.f32 %v563, %v566
  %vm568 = vweird.f32 %v562
  %vm569 = vweird.f32 %v563
  %vm570 = vmor %vm568, %vm569
  %v571 = vsel %vm570, %v563, %v567
  %v572 = vand.u32 2147483647, %v562
  %vm573 = vcmp.eq.f32.partialorder %v572, 8.507059e+37
  %v574 = vand.u32 %v562, 2147483648
  %v575 = vor.u32 1.1754944e-38, %v574
  %v576 = vsel %vm573, %v575, %v571
  %v577 = vmul.f32 1.0, %v576
  %v578 = vmul.f32 %v558, %v448
  %v579 = vmul.f32 %v558, 2.0
  %v580 = vsub.f32 %v579, 1.0
  %582 = vrot.lane.b32.xlu0 %v580, 64
  %v583 = vpop.permute.xlu0 %582
  %v585 = vmul.f32 %v558, %v583
  %587 = vrot.lane.b32.xlu0 %v585, 32
  %v588 = vpop.permute.xlu0 %587
  %v590 = vadd.f32 %v578, %v588
  %v591 = vmul.f32 %v577, %v461
  %v592 = vmul.f32 %v577, 2.0
  %v593 = vsub.f32 %v592, 1.0
  %595 = vrot.lane.b32.xlu0 %v593, 64
  %v596 = vpop.permute.xlu0 %595
  %v598 = vmul.f32 %v577, %v596
  %600 = vrot.lane.b32.xlu0 %v598, 32
  %v601 = vpop.permute.xlu0 %600
  %v603 = vadd.f32 %v591, %v601
  %v604 = vtanh.pop %v590
  %606 = vrot.lane.b32.xlu0 %v604, 64
  %v607 = vpop.permute.xlu0 %606
  %v609 = vmul.f32 %v558, %v607
  %v610 = vtanh.pop %v603
  %612 = vrot.lane.b32.xlu0 %v610, 64
  %v613 = vpop.permute.xlu0 %612
  %v615 = vmul.f32 %v577, %v613
  %617 = vrot.lane.b32.xlu0 %v609, 32
  %v618 = vpop.permute.xlu0 %617
  %s620 = scalar_lea.vmem %s4, 16
  %621 = vst.msk [vmem:[%s620] sm:$0xff] %vm41, %v618
  %623 = vrot.lane.b32.xlu0 %v615, 64
  %v624 = vpop.permute.xlu0 %623
  %s626 = scalar_lea.vmem %s4, 56
  %627 = vst.msk [vmem:[%s626] sm:$0xff] %vm342, %v624
  %v628 = vsel %vm41, %v618, %v624
  %v630 = vsel %vm202, %v628, 0
  %632 = vmatpush.msra.mxu0 0.0
  %633 = vmatpush.msra.mxu0 0.0
  %634 = vmatpush.msra.mxu0 0.0
  %635 = vmatpush.msra.mxu0 0.0
  %636 = vmatpush.msra.mxu0 0.0
  %637 = vmatpush.msra.mxu0 0.0
  %638 = vmatpush.msra.mxu0 0.0
  %639 = vmatpush.msra.mxu0 0.0
  %640 = vmatpush.msra.mxu0 %v200
  %641 = vmatpush.msra.mxu0 %v198
  %642 = vmatpush.msra.mxu0 %v196
  %643 = vmatpush.msra.mxu0 %v194
  %644 = vmatpush.msra.mxu0 %v192
  %645 = vmatpush.msra.mxu0 %v190
  %646 = vmatpush.msra.mxu0 %v188
  %647 = vmatpush.msra.mxu0 %v186
  %648 = vmatmul.f32.gmra.mxu0 %v630
  %v649 = vpop.f32.mrf.mxu0
  %v650 = vadd.f32 0.0, %v649
  %651 = vdwg.mxu0
  %652 = vmatpush.msra.mxu0 0.0
  %653 = vmatpush.msra.mxu0 0.0
  %654 = vmatpush.msra.mxu0 0.0
  %655 = vmatpush.msra.mxu0 0.0
  %656 = vmatpush.msra.mxu0 0.0
  %657 = vmatpush.msra.mxu0 0.0
  %658 = vmatpush.msra.mxu0 0.0
  %659 = vmatpush.msra.mxu0 0.0
  %660 = vmatpush.msra.mxu0 %v201
  %661 = vmatpush.msra.mxu0 %v199
  %662 = vmatpush.msra.mxu0 %v197
  %663 = vmatpush.msra.mxu0 %v195
  %664 = vmatpush.msra.mxu0 %v193
  %665 = vmatpush.msra.mxu0 %v191
  %666 = vmatpush.msra.mxu0 %v189
  %667 = vmatpush.msra.mxu0 %v187
  %668 = vmatmul.f32.gmra.mxu0 %v630
  %v669 = vpop.f32.mrf.mxu0
  %v670 = vadd.f32 0.0, %v669
  %671 = vdwg.mxu0
  %s672 = smul.u32 3, 2
  %s673 = smul.addr %s672, 8
  %s674 = scalar_lea.vmem [#allocation2], %s673
  %v675 = vld [vmem:[%s674] sm:$0xff]
  %v676 = vadd.f32 %v675, %v650
  %s677 = smul.u32 6, 2
  %s678 = smul.addr %s677, 8
  %s679 = scalar_lea.vmem [#allocation2], %s678
  %v680 = vld [vmem:[%s679 + $0x8] sm:$0xff]
  %v681 = vadd.f32 %v680, %v670
  %v682 = vxor.u32 %v676, 2147483648
  %v683 = vmul.f32 %v682, 1.442695
  %v684 = vpow.pop %v683
  %v685 = vadd.f32 %v684, 1.0
  %v686 = vrcp.pop %v685
  %v687 = vmul.f32 %v685, %v686
  %v688 = vsub.f32 1.0, %v687
  %v689 = vmul.f32 %v686, %v688
  %v690 = vadd.f32 %v686, %v689
  %vm691 = vweird.f32 %v685
  %vm692 = vweird.f32 %v686
  %vm693 = vmor %vm691, %vm692
  %v694 = vsel %vm693, %v686, %v690
  %v695 = vand.u32 2147483647, %v685
  %vm696 = vcmp.eq.f32.partialorder %v695, 8.507059e+37
  %v697 = vand.u32 %v685, 2147483648
  %v698 = vor.u32 1.1754944e-38, %v697
  %v699 = vsel %vm696, %v698, %v694
  %v700 = vmul.f32 1.0, %v699
  %v701 = vxor.u32 %v681, 2147483648
  %v702 = vmul.f32 %v701, 1.442695
  %v703 = vpow.pop %v702
  %v704 = vadd.f32 %v703, 1.0
  %v705 = vrcp.pop %v704
  %v706 = vmul.f32 %v704, %v705
  %v707 = vsub.f32 1.0, %v706
  %v708 = vmul.f32 %v705, %v707
  %v709 = vadd.f32 %v705, %v708
  %vm710 = vweird.f32 %v704
  %vm711 = vweird.f32 %v705
  %vm712 = vmor %vm710, %vm711
  %v713 = vsel %vm712, %v705, %v709
  %v714 = vand.u32 2147483647, %v704
  %vm715 = vcmp.eq.f32.partialorder %v714, 8.507059e+37
  %v716 = vand.u32 %v704, 2147483648
  %v717 = vor.u32 1.1754944e-38, %v716
  %v718 = vsel %vm715, %v717, %v713
  %v719 = vmul.f32 1.0, %v718
  %v720 = vmul.f32 %v700, %v590
  %v721 = vmul.f32 %v700, 2.0
  %v722 = vsub.f32 %v721, 1.0
  %724 = vrot.lane.b32.xlu0 %v722, 64
  %v725 = vpop.permute.xlu0 %724
  %v727 = vmul.f32 %v700, %v725
  %729 = vrot.lane.b32.xlu0 %v727, 32
  %v730 = vpop.permute.xlu0 %729
  %v732 = vadd.f32 %v720, %v730
  %v733 = vmul.f32 %v719, %v603
  %v734 = vmul.f32 %v719, 2.0
  %v735 = vsub.f32 %v734, 1.0
  %737 = vrot.lane.b32.xlu0 %v735, 64
  %v738 = vpop.permute.xlu0 %737
  %v740 = vmul.f32 %v719, %v738
  %742 = vrot.lane.b32.xlu0 %v740, 32
  %v743 = vpop.permute.xlu0 %742
  %v745 = vadd.f32 %v733, %v743
  %v746 = vtanh.pop %v732
  %748 = vrot.lane.b32.xlu0 %v746, 64
  %v749 = vpop.permute.xlu0 %748
  %v751 = vmul.f32 %v700, %v749
  %v752 = vtanh.pop %v745
  %754 = vrot.lane.b32.xlu0 %v752, 64
  %v755 = vpop.permute.xlu0 %754
  %v757 = vmul.f32 %v719, %v755
  %759 = vrot.lane.b32.xlu0 %v751, 32
  %v760 = vpop.permute.xlu0 %759
  %s762 = scalar_lea.vmem %s4, 24
  %763 = vst.msk [vmem:[%s762] sm:$0xff] %vm41, %v760
  %765 = vrot.lane.b32.xlu0 %v757, 64
  %v766 = vpop.permute.xlu0 %765
  %s768 = scalar_lea.vmem %s4, 48
  %769 = vst.msk [vmem:[%s768] sm:$0xff] %vm342, %v766
  %v770 = vsel %vm41, %v760, %v766
  %v772 = vsel %vm202, %v770, 0
  %774 = vmatpush.msra.mxu0 0.0
  %775 = vmatpush.msra.mxu0 0.0
  %776 = vmatpush.msra.mxu0 0.0
  %777 = vmatpush.msra.mxu0 0.0
  %778 = vmatpush.msra.mxu0 0.0
  %779 = vmatpush.msra.mxu0 0.0
  %780 = vmatpush.msra.mxu0 0.0
  %781 = vmatpush.msra.mxu0 0.0
  %782 = vmatpush.msra.mxu0 %v200
  %783 = vmatpush.msra.mxu0 %v198
  %784 = vmatpush.msra.mxu0 %v196
  %785 = vmatpush.msra.mxu0 %v194
  %786 = vmatpush.msra.mxu0 %v192
  %787 = vmatpush.msra.mxu0 %v190
  %788 = vmatpush.msra.mxu0 %v188
  %789 = vmatpush.msra.mxu0 %v186
  %790 = vmatmul.f32.gmra.mxu0 %v772
  %v791 = vpop.f32.mrf.mxu0
  %v792 = vadd.f32 0.0, %v791
  %793 = vdwg.mxu0
  %794 = vmatpush.msra.mxu0 0.0
  %795 = vmatpush.msra.mxu0 0.0
  %796 = vmatpush.msra.mxu0 0.0
  %797 = vmatpush.msra.mxu0 0.0
  %798 = vmatpush.msra.mxu0 0.0
  %799 = vmatpush.msra.mxu0 0.0
  %800 = vmatpush.msra.mxu0 0.0
  %801 = vmatpush.msra.mxu0 0.0
  %802 = vmatpush.msra.mxu0 %v201
  %803 = vmatpush.msra.mxu0 %v199
  %804 = vmatpush.msra.mxu0 %v197
  %805 = vmatpush.msra.mxu0 %v195
  %806 = vmatpush.msra.mxu0 %v193
  %807 = vmatpush.msra.mxu0 %v191
  %808 = vmatpush.msra.mxu0 %v189
  %809 = vmatpush.msra.mxu0 %v187
  %810 = vmatmul.f32.gmra.mxu0 %v772
  %v811 = vpop.f32.mrf.mxu0
  %v812 = vadd.f32 0.0, %v811
  %813 = vdwg.mxu0
  %s814 = smul.u32 4, 2
  %s815 = smul.addr %s814, 8
  %s816 = scalar_lea.vmem [#allocation2], %s815
  %v817 = vld [vmem:[%s816] sm:$0xff]
  %v818 = vadd.f32 %v817, %v792
  %s819 = smul.u32 5, 2
  %s820 = smul.addr %s819, 8
  %s821 = scalar_lea.vmem [#allocation2], %s820
  %v822 = vld [vmem:[%s821 + $0x8] sm:$0xff]
  %v823 = vadd.f32 %v822, %v812
  %v824 = vxor.u32 %v818, 2147483648
  %v825 = vmul.f32 %v824, 1.442695
  %v826 = vpow.pop %v825
  %v827 = vadd.f32 %v826, 1.0
  %v828 = vrcp.pop %v827
  %v829 = vmul.f32 %v827, %v828
  %v830 = vsub.f32 1.0, %v829
  %v831 = vmul.f32 %v828, %v830
  %v832 = vadd.f32 %v828, %v831
  %vm833 = vweird.f32 %v827
  %vm834 = vweird.f32 %v828
  %vm835 = vmor %vm833, %vm834
  %v836 = vsel %vm835, %v828, %v832
  %v837 = vand.u32 2147483647, %v827
  %vm838 = vcmp.eq.f32.partialorder %v837, 8.507059e+37
  %v839 = vand.u32 %v827, 2147483648
  %v840 = vor.u32 1.1754944e-38, %v839
  %v841 = vsel %vm838, %v840, %v836
  %v842 = vmul.f32 1.0, %v841
  %v843 = vxor.u32 %v823, 2147483648
  %v844 = vmul.f32 %v843, 1.442695
  %v845 = vpow.pop %v844
  %v846 = vadd.f32 %v845, 1.0
  %v847 = vrcp.pop %v846
  %v848 = vmul.f32 %v846, %v847
  %v849 = vsub.f32 1.0, %v848
  %v850 = vmul.f32 %v847, %v849
  %v851 = vadd.f32 %v847, %v850
  %vm852 = vweird.f32 %v846
  %vm853 = vweird.f32 %v847
  %vm854 = vmor %vm852, %vm853
  %v855 = vsel %vm854, %v847, %v851
  %v856 = vand.u32 2147483647, %v846
  %vm857 = vcmp.eq.f32.partialorder %v856, 8.507059e+37
  %v858 = vand.u32 %v846, 2147483648
  %v859 = vor.u32 1.1754944e-38, %v858
  %v860 = vsel %vm857, %v859, %v855
  %v861 = vmul.f32 1.0, %v860
  %v862 = vmul.f32 %v842, %v732
  %v863 = vmul.f32 %v842, 2.0
  %v864 = vsub.f32 %v863, 1.0
  %866 = vrot.lane.b32.xlu0 %v864, 64
  %v867 = vpop.permute.xlu0 %866
  %v869 = vmul.f32 %v842, %v867
  %871 = vrot.lane.b32.xlu0 %v869, 32
  %v872 = vpop.permute.xlu0 %871
  %v874 = vadd.f32 %v862, %v872
  %v875 = vmul.f32 %v861, %v745
  %v876 = vmul.f32 %v861, 2.0
  %v877 = vsub.f32 %v876, 1.0
  %879 = vrot.lane.b32.xlu0 %v877, 64
  %v880 = vpop.permute.xlu0 %879
  %v882 = vmul.f32 %v861, %v880
  %884 = vrot.lane.b32.xlu0 %v882, 32
  %v885 = vpop.permute.xlu0 %884
  %v887 = vadd.f32 %v875, %v885
  %v888 = vtanh.pop %v874
  %890 = vrot.lane.b32.xlu0 %v888, 64
  %v891 = vpop.permute.xlu0 %890
  %v893 = vmul.f32 %v842, %v891
  %v894 = vtanh.pop %v887
  %896 = vrot.lane.b32.xlu0 %v894, 64
  %v897 = vpop.permute.xlu0 %896
  %v899 = vmul.f32 %v861, %v897
  %901 = vrot.lane.b32.xlu0 %v893, 32
  %v902 = vpop.permute.xlu0 %901
  %s904 = scalar_lea.vmem %s4, 32
  %905 = vst.msk [vmem:[%s904] sm:$0xff] %vm41, %v902
  %907 = vrot.lane.b32.xlu0 %v899, 64
  %v908 = vpop.permute.xlu0 %907
  %s910 = scalar_lea.vmem %s4, 40
  %911 = vst.msk [vmem:[%s910] sm:$0xff] %vm342, %v908
  %v912 = vsel %vm41, %v902, %v908
  %v914 = vsel %vm202, %v912, 0
  %916 = vmatpush.msra.mxu0 0.0
  %917 = vmatpush.msra.mxu0 0.0
  %918 = vmatpush.msra.mxu0 0.0
  %919 = vmatpush.msra.mxu0 0.0
  %920 = vmatpush.msra.mxu0 0.0
  %921 = vmatpush.msra.mxu0 0.0
  %922 = vmatpush.msra.mxu0 0.0
  %923 = vmatpush.msra.mxu0 0.0
  %924 = vmatpush.msra.mxu0 %v200
  %925 = vmatpush.msra.mxu0 %v198
  %926 = vmatpush.msra.mxu0 %v196
  %927 = vmatpush.msra.mxu0 %v194
  %928 = vmatpush.msra.mxu0 %v192
  %929 = vmatpush.msra.mxu0 %v190
  %930 = vmatpush.msra.mxu0 %v188
  %931 = vmatpush.msra.mxu0 %v186
  %932 = vmatmul.f32.gmra.mxu0 %v914
  %v933 = vpop.f32.mrf.mxu0
  %v934 = vadd.f32 0.0, %v933
  %935 = vdwg.mxu0
  %936 = vmatpush.msra.mxu0 0.0
  %937 = vmatpush.msra.mxu0 0.0
  %938 = vmatpush.msra.mxu0 0.0
  %939 = vmatpush.msra.mxu0 0.0
  %940 = vmatpush.msra.mxu0 0.0
  %941 = vmatpush.msra.mxu0 0.0
  %942 = vmatpush.msra.mxu0 0.0
  %943 = vmatpush.msra.mxu0 0.0
  %944 = vmatpush.msra.mxu0 %v201
  %945 = vmatpush.msra.mxu0 %v199
  %946 = vmatpush.msra.mxu0 %v197
  %947 = vmatpush.msra.mxu0 %v195
  %948 = vmatpush.msra.mxu0 %v193
  %949 = vmatpush.msra.mxu0 %v191
  %950 = vmatpush.msra.mxu0 %v189
  %951 = vmatpush.msra.mxu0 %v187
  %952 = vmatmul.f32.gmra.mxu0 %v914
  %v953 = vpop.f32.mrf.mxu0
  %v954 = vadd.f32 0.0, %v953
  %955 = vdwg.mxu0
  %v956 = vld [vmem:[%s821] sm:$0xff]
  %v957 = vadd.f32 %v956, %v934
  %v958 = vld [vmem:[%s816 + $0x8] sm:$0xff]
  %v959 = vadd.f32 %v958, %v954
  %v960 = vxor.u32 %v957, 2147483648
  %v961 = vmul.f32 %v960, 1.442695
  %v962 = vpow.pop %v961
  %v963 = vadd.f32 %v962, 1.0
  %v964 = vrcp.pop %v963
  %v965 = vmul.f32 %v963, %v964
  %v966 = vsub.f32 1.0, %v965
  %v967 = vmul.f32 %v964, %v966
  %v968 = vadd.f32 %v964, %v967
  %vm969 = vweird.f32 %v963
  %vm970 = vweird.f32 %v964
  %vm971 = vmor %vm969, %vm970
  %v972 = vsel %vm971, %v964, %v968
  %v973 = vand.u32 2147483647, %v963
  %vm974 = vcmp.eq.f32.partialorder %v973, 8.507059e+37
  %v975 = vand.u32 %v963, 2147483648
  %v976 = vor.u32 1.1754944e-38, %v975
  %v977 = vsel %vm974, %v976, %v972
  %v978 = vmul.f32 1.0, %v977
  %v979 = vxor.u32 %v959, 2147483648
  %v980 = vmul.f32 %v979, 1.442695
  %v981 = vpow.pop %v980
  %v982 = vadd.f32 %v981, 1.0
  %v983 = vrcp.pop %v982
  %v984 = vmul.f32 %v982, %v983
  %v985 = vsub.f32 1.0, %v984
  %v986 = vmul.f32 %v983, %v985
  %v987 = vadd.f32 %v983, %v986
  %vm988 = vweird.f32 %v982
  %vm989 = vweird.f32 %v983
  %vm990 = vmor %vm988, %vm989
  %v991 = vsel %vm990, %v983, %v987
  %v992 = vand.u32 2147483647, %v982
  %vm993 = vcmp.eq.f32.partialorder %v992, 8.507059e+37
  %v994 = vand.u32 %v982, 2147483648
  %v995 = vor.u32 1.1754944e-38, %v994
  %v996 = vsel %vm993, %v995, %v991
  %v997 = vmul.f32 1.0, %v996
  %v998 = vmul.f32 %v978, %v874
  %v999 = vmul.f32 %v978, 2.0
  %v1000 = vsub.f32 %v999, 1.0
  %1002 = vrot.lane.b32.xlu0 %v1000, 64
  %v1003 = vpop.permute.xlu0 %1002
  %v1005 = vmul.f32 %v978, %v1003
  %1007 = vrot.lane.b32.xlu0 %v1005, 32
  %v1008 = vpop.permute.xlu0 %1007
  %v1010 = vadd.f32 %v998, %v1008
  %v1011 = vmul.f32 %v997, %v887
  %v1012 = vmul.f32 %v997, 2.0
  %v1013 = vsub.f32 %v1012, 1.0
  %1015 = vrot.lane.b32.xlu0 %v1013, 64
  %v1016 = vpop.permute.xlu0 %1015
  %v1018 = vmul.f32 %v997, %v1016
  %1020 = vrot.lane.b32.xlu0 %v1018, 32
  %v1021 = vpop.permute.xlu0 %1020
  %v1023 = vadd.f32 %v1011, %v1021
  %v1024 = vtanh.pop %v1010
  %1026 = vrot.lane.b32.xlu0 %v1024, 64
  %v1027 = vpop.permute.xlu0 %1026
  %v1029 = vmul.f32 %v978, %v1027
  %v1030 = vtanh.pop %v1023
  %1032 = vrot.lane.b32.xlu0 %v1030, 64
  %v1033 = vpop.permute.xlu0 %1032
  %v1035 = vmul.f32 %v997, %v1033
  %1037 = vrot.lane.b32.xlu0 %v1029, 32
  %v1038 = vpop.permute.xlu0 %1037
  %1040 = vst.msk [vmem:[%s910] sm:$0xff] %vm41, %v1038
  %1042 = vrot.lane.b32.xlu0 %v1035, 64
  %v1043 = vpop.permute.xlu0 %1042
  %1045 = vst.msk [vmem:[%s904] sm:$0xff] %vm342, %v1043
  %v1046 = vsel %vm41, %v1038, %v1043
  %v1048 = vsel %vm202, %v1046, 0
  %1050 = vmatpush.msra.mxu0 0.0
  %1051 = vmatpush.msra.mxu0 0.0
  %1052 = vmatpush.msra.mxu0 0.0
  %1053 = vmatpush.msra.mxu0 0.0
  %1054 = vmatpush.msra.mxu0 0.0
  %1055 = vmatpush.msra.mxu0 0.0
  %1056 = vmatpush.msra.mxu0 0.0
  %1057 = vmatpush.msra.mxu0 0.0
  %1058 = vmatpush.msra.mxu0 %v200
  %1059 = vmatpush.msra.mxu0 %v198
  %1060 = vmatpush.msra.mxu0 %v196
  %1061 = vmatpush.msra.mxu0 %v194
  %1062 = vmatpush.msra.mxu0 %v192
  %1063 = vmatpush.msra.mxu0 %v190
  %1064 = vmatpush.msra.mxu0 %v188
  %1065 = vmatpush.msra.mxu0 %v186
  %1066 = vmatmul.f32.gmra.mxu0 %v1048
  %v1067 = vpop.f32.mrf.mxu0
  %v1068 = vadd.f32 0.0, %v1067
  %1069 = vdwg.mxu0
  %1070 = vmatpush.msra.mxu0 0.0
  %1071 = vmatpush.msra.mxu0 0.0
  %1072 = vmatpush.msra.mxu0 0.0
  %1073 = vmatpush.msra.mxu0 0.0
  %1074 = vmatpush.msra.mxu0 0.0
  %1075 = vmatpush.msra.mxu0 0.0
  %1076 = vmatpush.msra.mxu0 0.0
  %1077 = vmatpush.msra.mxu0 0.0
  %1078 = vmatpush.msra.mxu0 %v201
  %1079 = vmatpush.msra.mxu0 %v199
  %1080 = vmatpush.msra.mxu0 %v197
  %1081 = vmatpush.msra.mxu0 %v195
  %1082 = vmatpush.msra.mxu0 %v193
  %1083 = vmatpush.msra.mxu0 %v191
  %1084 = vmatpush.msra.mxu0 %v189
  %1085 = vmatpush.msra.mxu0 %v187
  %1086 = vmatmul.f32.gmra.mxu0 %v1048
  %v1087 = vpop.f32.mrf.mxu0
  %v1088 = vadd.f32 0.0, %v1087
  %1089 = vdwg.mxu0
  %v1090 = vld [vmem:[%s679] sm:$0xff]
  %v1091 = vadd.f32 %v1090, %v1068
  %v1092 = vld [vmem:[%s674 + $0x8] sm:$0xff]
  %v1093 = vadd.f32 %v1092, %v1088
  %v1094 = vxor.u32 %v1091, 2147483648
  %v1095 = vmul.f32 %v1094, 1.442695
  %v1096 = vpow.pop %v1095
  %v1097 = vadd.f32 %v1096, 1.0
  %v1098 = vrcp.pop %v1097
  %v1099 = vmul.f32 %v1097, %v1098
  %v1100 = vsub.f32 1.0, %v1099
  %v1101 = vmul.f32 %v1098, %v1100
  %v1102 = vadd.f32 %v1098, %v1101
  %vm1103 = vweird.f32 %v1097
  %vm1104 = vweird.f32 %v1098
  %vm1105 = vmor %vm1103, %vm1104
  %v1106 = vsel %vm1105, %v1098, %v1102
  %v1107 = vand.u32 2147483647, %v1097
  %vm1108 = vcmp.eq.f32.partialorder %v1107, 8.507059e+37
  %v1109 = vand.u32 %v1097, 2147483648
  %v1110 = vor.u32 1.1754944e-38, %v1109
  %v1111 = vsel %vm1108, %v1110, %v1106
  %v1112 = vmul.f32 1.0, %v1111
  %v1113 = vxor.u32 %v1093, 2147483648
  %v1114 = vmul.f32 %v1113, 1.442695
  %v1115 = vpow.pop %v1114
  %v1116 = vadd.f32 %v1115, 1.0
  %v1117 = vrcp.pop %v1116
  %v1118 = vmul.f32 %v1116, %v1117
  %v1119 = vsub.f32 1.0, %v1118
  %v1120 = vmul.f32 %v1117, %v1119
  %v1121 = vadd.f32 %v1117, %v1120
  %vm1122 = vweird.f32 %v1116
  %vm1123 = vweird.f32 %v1117
  %vm1124 = vmor %vm1122, %vm1123
  %v1125 = vsel %vm1124, %v1117, %v1121
  %v1126 = vand.u32 2147483647, %v1116
  %vm1127 = vcmp.eq.f32.partialorder %v1126, 8.507059e+37
  %v1128 = vand.u32 %v1116, 2147483648
  %v1129 = vor.u32 1.1754944e-38, %v1128
  %v1130 = vsel %vm1127, %v1129, %v1125
  %v1131 = vmul.f32 1.0, %v1130
  %v1132 = vmul.f32 %v1112, %v1010
  %v1133 = vmul.f32 %v1112, 2.0
  %v1134 = vsub.f32 %v1133, 1.0
  %1136 = vrot.lane.b32.xlu0 %v1134, 64
  %v1137 = vpop.permute.xlu0 %1136
  %v1139 = vmul.f32 %v1112, %v1137
  %1141 = vrot.lane.b32.xlu0 %v1139, 32
  %v1142 = vpop.permute.xlu0 %1141
  %v1144 = vadd.f32 %v1132, %v1142
  %v1145 = vmul.f32 %v1131, %v1023
  %v1146 = vmul.f32 %v1131, 2.0
  %v1147 = vsub.f32 %v1146, 1.0
  %1149 = vrot.lane.b32.xlu0 %v1147, 64
  %v1150 = vpop.permute.xlu0 %1149
  %v1152 = vmul.f32 %v1131, %v1150
  %1154 = vrot.lane.b32.xlu0 %v1152, 32
  %v1155 = vpop.permute.xlu0 %1154
  %v1157 = vadd.f32 %v1145, %v1155
  %v1158 = vtanh.pop %v1144
  %1160 = vrot.lane.b32.xlu0 %v1158, 64
  %v1161 = vpop.permute.xlu0 %1160
  %v1163 = vmul.f32 %v1112, %v1161
  %v1164 = vtanh.pop %v1157
  %1166 = vrot.lane.b32.xlu0 %v1164, 64
  %v1167 = vpop.permute.xlu0 %1166
  %v1169 = vmul.f32 %v1131, %v1167
  %1171 = vrot.lane.b32.xlu0 %v1163, 32
  %v1172 = vpop.permute.xlu0 %1171
  %1174 = vst.msk [vmem:[%s768] sm:$0xff] %vm41, %v1172
  %1176 = vrot.lane.b32.xlu0 %v1169, 64
  %v1177 = vpop.permute.xlu0 %1176
  %1179 = vst.msk [vmem:[%s762] sm:$0xff] %vm342, %v1177
  %v1180 = vsel %vm41, %v1172, %v1177
  %v1182 = vsel %vm202, %v1180, 0
  %1184 = vmatpush.msra.mxu0 0.0
  %1185 = vmatpush.msra.mxu0 0.0
  %1186 = vmatpush.msra.mxu0 0.0
  %1187 = vmatpush.msra.mxu0 0.0
  %1188 = vmatpush.msra.mxu0 0.0
  %1189 = vmatpush.msra.mxu0 0.0
  %1190 = vmatpush.msra.mxu0 0.0
  %1191 = vmatpush.msra.mxu0 0.0
  %1192 = vmatpush.msra.mxu0 %v200
  %1193 = vmatpush.msra.mxu0 %v198
  %1194 = vmatpush.msra.mxu0 %v196
  %1195 = vmatpush.msra.mxu0 %v194
  %1196 = vmatpush.msra.mxu0 %v192
  %1197 = vmatpush.msra.mxu0 %v190
  %1198 = vmatpush.msra.mxu0 %v188
  %1199 = vmatpush.msra.mxu0 %v186
  %1200 = vmatmul.f32.gmra.mxu0 %v1182
  %v1201 = vpop.f32.mrf.mxu0
  %v1202 = vadd.f32 0.0, %v1201
  %1203 = vdwg.mxu0
  %1204 = vmatpush.msra.mxu0 0.0
  %1205 = vmatpush.msra.mxu0 0.0
  %1206 = vmatpush.msra.mxu0 0.0
  %1207 = vmatpush.msra.mxu0 0.0
  %1208 = vmatpush.msra.mxu0 0.0
  %1209 = vmatpush.msra.mxu0 0.0
  %1210 = vmatpush.msra.mxu0 0.0
  %1211 = vmatpush.msra.mxu0 0.0
  %1212 = vmatpush.msra.mxu0 %v201
  %1213 = vmatpush.msra.mxu0 %v199
  %1214 = vmatpush.msra.mxu0 %v197
  %1215 = vmatpush.msra.mxu0 %v195
  %1216 = vmatpush.msra.mxu0 %v193
  %1217 = vmatpush.msra.mxu0 %v191
  %1218 = vmatpush.msra.mxu0 %v189
  %1219 = vmatpush.msra.mxu0 %v187
  %1220 = vmatmul.f32.gmra.mxu0 %v1182
  %v1221 = vpop.f32.mrf.mxu0
  %v1222 = vadd.f32 0.0, %v1221
  %1223 = vdwg.mxu0
  %v1224 = vld [vmem:[%s537] sm:$0xff]
  %v1225 = vadd.f32 %v1224, %v1202
  %v1226 = vld [vmem:[%s532 + $0x8] sm:$0xff]
  %v1227 = vadd.f32 %v1226, %v1222
  %v1228 = vxor.u32 %v1225, 2147483648
  %v1229 = vmul.f32 %v1228, 1.442695
  %v1230 = vpow.pop %v1229
  %v1231 = vadd.f32 %v1230, 1.0
  %v1232 = vrcp.pop %v1231
  %v1233 = vmul.f32 %v1231, %v1232
  %v1234 = vsub.f32 1.0, %v1233
  %v1235 = vmul.f32 %v1232, %v1234
  %v1236 = vadd.f32 %v1232, %v1235
  %vm1237 = vweird.f32 %v1231
  %vm1238 = vweird.f32 %v1232
  %vm1239 = vmor %vm1237, %vm1238
  %v1240 = vsel %vm1239, %v1232, %v1236
  %v1241 = vand.u32 2147483647, %v1231
  %vm1242 = vcmp.eq.f32.partialorder %v1241, 8.507059e+37
  %v1243 = vand.u32 %v1231, 2147483648
  %v1244 = vor.u32 1.1754944e-38, %v1243
  %v1245 = vsel %vm1242, %v1244, %v1240
  %v1246 = vmul.f32 1.0, %v1245
  %v1247 = vxor.u32 %v1227, 2147483648
  %v1248 = vmul.f32 %v1247, 1.442695
  %v1249 = vpow.pop %v1248
  %v1250 = vadd.f32 %v1249, 1.0
  %v1251 = vrcp.pop %v1250
  %v1252 = vmul.f32 %v1250, %v1251
  %v1253 = vsub.f32 1.0, %v1252
  %v1254 = vmul.f32 %v1251, %v1253
  %v1255 = vadd.f32 %v1251, %v1254
  %vm1256 = vweird.f32 %v1250
  %vm1257 = vweird.f32 %v1251
  %vm1258 = vmor %vm1256, %vm1257
  %v1259 = vsel %vm1258, %v1251, %v1255
  %v1260 = vand.u32 2147483647, %v1250
  %vm1261 = vcmp.eq.f32.partialorder %v1260, 8.507059e+37
  %v1262 = vand.u32 %v1250, 2147483648
  %v1263 = vor.u32 1.1754944e-38, %v1262
  %v1264 = vsel %vm1261, %v1263, %v1259
  %v1265 = vmul.f32 1.0, %v1264
  %v1266 = vmul.f32 %v1246, %v1144
  %v1267 = vmul.f32 %v1246, 2.0
  %v1268 = vsub.f32 %v1267, 1.0
  %1270 = vrot.lane.b32.xlu0 %v1268, 64
  %v1271 = vpop.permute.xlu0 %1270
  %v1273 = vmul.f32 %v1246, %v1271
  %1275 = vrot.lane.b32.xlu0 %v1273, 32
  %v1276 = vpop.permute.xlu0 %1275
  %v1278 = vadd.f32 %v1266, %v1276
  %v1279 = vmul.f32 %v1265, %v1157
  %v1280 = vmul.f32 %v1265, 2.0
  %v1281 = vsub.f32 %v1280, 1.0
  %1283 = vrot.lane.b32.xlu0 %v1281, 64
  %v1284 = vpop.permute.xlu0 %1283
  %v1286 = vmul.f32 %v1265, %v1284
  %1288 = vrot.lane.b32.xlu0 %v1286, 32
  %v1289 = vpop.permute.xlu0 %1288
  %v1291 = vadd.f32 %v1279, %v1289
  %v1292 = vtanh.pop %v1278
  %1294 = vrot.lane.b32.xlu0 %v1292, 64
  %v1295 = vpop.permute.xlu0 %1294
  %v1297 = vmul.f32 %v1246, %v1295
  %v1298 = vtanh.pop %v1291
  %1300 = vrot.lane.b32.xlu0 %v1298, 64
  %v1301 = vpop.permute.xlu0 %1300
  %v1303 = vmul.f32 %v1265, %v1301
  %1305 = vrot.lane.b32.xlu0 %v1297, 32
  %v1306 = vpop.permute.xlu0 %1305
  %1308 = vst.msk [vmem:[%s626] sm:$0xff] %vm41, %v1306
  %1310 = vrot.lane.b32.xlu0 %v1303, 64
  %v1311 = vpop.permute.xlu0 %1310
  %1313 = vst.msk [vmem:[%s620] sm:$0xff] %vm342, %v1311
  %v1314 = vsel %vm41, %v1306, %v1311
  %v1316 = vsel %vm202, %v1314, 0
  %1318 = vmatpush.msra.mxu0 0.0
  %1319 = vmatpush.msra.mxu0 0.0
  %1320 = vmatpush.msra.mxu0 0.0
  %1321 = vmatpush.msra.mxu0 0.0
  %1322 = vmatpush.msra.mxu0 0.0
  %1323 = vmatpush.msra.mxu0 0.0
  %1324 = vmatpush.msra.mxu0 0.0
  %1325 = vmatpush.msra.mxu0 0.0
  %1326 = vmatpush.msra.mxu0 %v200
  %1327 = vmatpush.msra.mxu0 %v198
  %1328 = vmatpush.msra.mxu0 %v196
  %1329 = vmatpush.msra.mxu0 %v194
  %1330 = vmatpush.msra.mxu0 %v192
  %1331 = vmatpush.msra.mxu0 %v190
  %1332 = vmatpush.msra.mxu0 %v188
  %1333 = vmatpush.msra.mxu0 %v186
  %1334 = vmatmul.f32.gmra.mxu0 %v1316
  %v1335 = vpop.f32.mrf.mxu0
  %v1336 = vadd.f32 0.0, %v1335
  %1337 = vdwg.mxu0
  %1338 = vmatpush.msra.mxu0 0.0
  %1339 = vmatpush.msra.mxu0 0.0
  %1340 = vmatpush.msra.mxu0 0.0
  %1341 = vmatpush.msra.mxu0 0.0
  %1342 = vmatpush.msra.mxu0 0.0
  %1343 = vmatpush.msra.mxu0 0.0
  %1344 = vmatpush.msra.mxu0 0.0
  %1345 = vmatpush.msra.mxu0 0.0
  %1346 = vmatpush.msra.mxu0 %v201
  %1347 = vmatpush.msra.mxu0 %v199
  %1348 = vmatpush.msra.mxu0 %v197
  %1349 = vmatpush.msra.mxu0 %v195
  %1350 = vmatpush.msra.mxu0 %v193
  %1351 = vmatpush.msra.mxu0 %v191
  %1352 = vmatpush.msra.mxu0 %v189
  %1353 = vmatpush.msra.mxu0 %v187
  %1354 = vmatmul.f32.gmra.mxu0 %v1316
  %v1355 = vpop.f32.mrf.mxu0
  %v1356 = vadd.f32 0.0, %v1355
  %1357 = vdwg.mxu0
  %v1358 = vld [vmem:[%s395] sm:$0xff]
  %v1359 = vadd.f32 %v1358, %v1336
  %v1360 = vld [vmem:[%s390 + $0x8] sm:$0xff]
  %v1361 = vadd.f32 %v1360, %v1356
  %v1362 = vxor.u32 %v1359, 2147483648
  %v1363 = vmul.f32 %v1362, 1.442695
  %v1364 = vpow.pop %v1363
  %v1365 = vadd.f32 %v1364, 1.0
  %v1366 = vrcp.pop %v1365
  %v1367 = vmul.f32 %v1365, %v1366
  %v1368 = vsub.f32 1.0, %v1367
  %v1369 = vmul.f32 %v1366, %v1368
  %v1370 = vadd.f32 %v1366, %v1369
  %vm1371 = vweird.f32 %v1365
  %vm1372 = vweird.f32 %v1366
  %vm1373 = vmor %vm1371, %vm1372
  %v1374 = vsel %vm1373, %v1366, %v1370
  %v1375 = vand.u32 2147483647, %v1365
  %vm1376 = vcmp.eq.f32.partialorder %v1375, 8.507059e+37
  %v1377 = vand.u32 %v1365, 2147483648
  %v1378 = vor.u32 1.1754944e-38, %v1377
  %v1379 = vsel %vm1376, %v1378, %v1374
  %v1380 = vmul.f32 1.0, %v1379
  %v1381 = vxor.u32 %v1361, 2147483648
  %v1382 = vmul.f32 %v1381, 1.442695
  %v1383 = vpow.pop %v1382
  %v1384 = vadd.f32 %v1383, 1.0
  %v1385 = vrcp.pop %v1384
  %v1386 = vmul.f32 %v1384, %v1385
  %v1387 = vsub.f32 1.0, %v1386
  %v1388 = vmul.f32 %v1385, %v1387
  %v1389 = vadd.f32 %v1385, %v1388
  %vm1390 = vweird.f32 %v1384
  %vm1391 = vweird.f32 %v1385
  %vm1392 = vmor %vm1390, %vm1391
  %v1393 = vsel %vm1392, %v1385, %v1389
  %v1394 = vand.u32 2147483647, %v1384
  %vm1395 = vcmp.eq.f32.partialorder %v1394, 8.507059e+37
  %v1396 = vand.u32 %v1384, 2147483648
  %v1397 = vor.u32 1.1754944e-38, %v1396
  %v1398 = vsel %vm1395, %v1397, %v1393
  %v1399 = vmul.f32 1.0, %v1398
  %v1400 = vmul.f32 %v1380, %v1278
  %v1401 = vmul.f32 %v1380, 2.0
  %v1402 = vsub.f32 %v1401, 1.0
  %1404 = vrot.lane.b32.xlu0 %v1402, 64
  %v1405 = vpop.permute.xlu0 %1404
  %v1407 = vmul.f32 %v1380, %v1405
  %1409 = vrot.lane.b32.xlu0 %v1407, 32
  %v1410 = vpop.permute.xlu0 %1409
  %v1412 = vadd.f32 %v1400, %v1410
  %v1413 = vmul.f32 %v1399, %v1291
  %v1414 = vmul.f32 %v1399, 2.0
  %v1415 = vsub.f32 %v1414, 1.0
  %1417 = vrot.lane.b32.xlu0 %v1415, 64
  %v1418 = vpop.permute.xlu0 %1417
  %v1420 = vmul.f32 %v1399, %v1418
  %1422 = vrot.lane.b32.xlu0 %v1420, 32
  %v1423 = vpop.permute.xlu0 %1422
  %v1425 = vadd.f32 %v1413, %v1423
  %v1426 = vtanh.pop %v1412
  %1428 = vrot.lane.b32.xlu0 %v1426, 64
  %v1429 = vpop.permute.xlu0 %1428
  %v1431 = vmul.f32 %v1380, %v1429
  %v1432 = vtanh.pop %v1425
  %1434 = vrot.lane.b32.xlu0 %v1432, 64
  %v1435 = vpop.permute.xlu0 %1434
  %v1437 = vmul.f32 %v1399, %v1435
  %1439 = vrot.lane.b32.xlu0 %v1431, 32
  %v1440 = vpop.permute.xlu0 %1439
  %1442 = vst.msk [vmem:[%s484] sm:$0xff] %vm41, %v1440
  %1444 = vrot.lane.b32.xlu0 %v1437, 64
  %v1445 = vpop.permute.xlu0 %1444
  %1447 = vst.msk [vmem:[%s478] sm:$0xff] %vm342, %v1445
  %v1448 = vsel %vm41, %v1440, %v1445
  %v1450 = vsel %vm202, %v1448, 0
  %1452 = vmatpush.msra.mxu0 0.0
  %1453 = vmatpush.msra.mxu0 0.0
  %1454 = vmatpush.msra.mxu0 0.0
  %1455 = vmatpush.msra.mxu0 0.0
  %1456 = vmatpush.msra.mxu0 0.0
  %1457 = vmatpush.msra.mxu0 0.0
  %1458 = vmatpush.msra.mxu0 0.0
  %1459 = vmatpush.msra.mxu0 0.0
  %1460 = vmatpush.msra.mxu0 %v200
  %1461 = vmatpush.msra.mxu0 %v198
  %1462 = vmatpush.msra.mxu0 %v196
  %1463 = vmatpush.msra.mxu0 %v194
  %1464 = vmatpush.msra.mxu0 %v192
  %1465 = vmatpush.msra.mxu0 %v190
  %1466 = vmatpush.msra.mxu0 %v188
  %1467 = vmatpush.msra.mxu0 %v186
  %1468 = vmatmul.f32.gmra.mxu0 %v1450
  %v1469 = vpop.f32.mrf.mxu0
  %v1470 = vadd.f32 0.0, %v1469
  %1471 = vdwg.mxu0
  %1472 = vmatpush.msra.mxu0 0.0
  %1473 = vmatpush.msra.mxu0 0.0
  %1474 = vmatpush.msra.mxu0 0.0
  %1475 = vmatpush.msra.mxu0 0.0
  %1476 = vmatpush.msra.mxu0 0.0
  %1477 = vmatpush.msra.mxu0 0.0
  %1478 = vmatpush.msra.mxu0 0.0
  %1479 = vmatpush.msra.mxu0 0.0
  %1480 = vmatpush.msra.mxu0 %v201
  %1481 = vmatpush.msra.mxu0 %v199
  %1482 = vmatpush.msra.mxu0 %v197
  %1483 = vmatpush.msra.mxu0 %v195
  %1484 = vmatpush.msra.mxu0 %v193
  %1485 = vmatpush.msra.mxu0 %v191
  %1486 = vmatpush.msra.mxu0 %v189
  %1487 = vmatpush.msra.mxu0 %v187
  %1488 = vmatmul.f32.gmra.mxu0 %v1450
  %v1489 = vpop.f32.mrf.mxu0
  %v1490 = vadd.f32 0.0, %v1489
  %1491 = vdwg.mxu0
  %v1492 = vld [vmem:[%s253] sm:$0xff]
  %v1493 = vadd.f32 %v1492, %v1470
  %v1494 = vld [vmem:[%s248 + $0x8] sm:$0xff]
  %v1495 = vadd.f32 %v1494, %v1490
  %v1496 = vxor.u32 %v1493, 2147483648
  %v1497 = vmul.f32 %v1496, 1.442695
  %v1498 = vpow.pop %v1497
  %v1499 = vadd.f32 %v1498, 1.0
  %v1500 = vrcp.pop %v1499
  %v1501 = vmul.f32 %v1499, %v1500
  %v1502 = vsub.f32 1.0, %v1501
  %v1503 = vmul.f32 %v1500, %v1502
  %v1504 = vadd.f32 %v1500, %v1503
  %vm1505 = vweird.f32 %v1499
  %vm1506 = vweird.f32 %v1500
  %vm1507 = vmor %vm1505, %vm1506
  %v1508 = vsel %vm1507, %v1500, %v1504
  %v1509 = vand.u32 2147483647, %v1499
  %vm1510 = vcmp.eq.f32.partialorder %v1509, 8.507059e+37
  %v1511 = vand.u32 %v1499, 2147483648
  %v1512 = vor.u32 1.1754944e-38, %v1511
  %v1513 = vsel %vm1510, %v1512, %v1508
  %v1514 = vmul.f32 1.0, %v1513
  %v1515 = vxor.u32 %v1495, 2147483648
  %v1516 = vmul.f32 %v1515, 1.442695
  %v1517 = vpow.pop %v1516
  %v1518 = vadd.f32 %v1517, 1.0
  %v1519 = vrcp.pop %v1518
  %v1520 = vmul.f32 %v1518, %v1519
  %v1521 = vsub.f32 1.0, %v1520
  %v1522 = vmul.f32 %v1519, %v1521
  %v1523 = vadd.f32 %v1519, %v1522
  %vm1524 = vweird.f32 %v1518
  %vm1525 = vweird.f32 %v1519
  %vm1526 = vmor %vm1524, %vm1525
  %v1527 = vsel %vm1526, %v1519, %v1523
  %v1528 = vand.u32 2147483647, %v1518
  %vm1529 = vcmp.eq.f32.partialorder %v1528, 8.507059e+37
  %v1530 = vand.u32 %v1518, 2147483648
  %v1531 = vor.u32 1.1754944e-38, %v1530
  %v1532 = vsel %vm1529, %v1531, %v1527
  %v1533 = vmul.f32 1.0, %v1532
  %v1534 = vmul.f32 %v1514, %v1412
  %v1535 = vmul.f32 %v1514, 2.0
  %v1536 = vsub.f32 %v1535, 1.0
  %1538 = vrot.lane.b32.xlu0 %v1536, 64
  %v1539 = vpop.permute.xlu0 %1538
  %v1541 = vmul.f32 %v1514, %v1539
  %1543 = vrot.lane.b32.xlu0 %v1541, 32
  %v1544 = vpop.permute.xlu0 %1543
  %v1546 = vadd.f32 %v1534, %v1544
  %v1547 = vmul.f32 %v1533, %v1425
  %v1548 = vmul.f32 %v1533, 2.0
  %v1549 = vsub.f32 %v1548, 1.0
  %1551 = vrot.lane.b32.xlu0 %v1549, 64
  %v1552 = vpop.permute.xlu0 %1551
  %v1554 = vmul.f32 %v1533, %v1552
  %1556 = vrot.lane.b32.xlu0 %v1554, 32
  %v1557 = vpop.permute.xlu0 %1556
  %v1559 = vadd.f32 %v1547, %v1557
  %v1560 = vtanh.pop %v1546
  %1562 = vrot.lane.b32.xlu0 %v1560, 64
  %v1563 = vpop.permute.xlu0 %1562
  %v1565 = vmul.f32 %v1514, %v1563
  %v1566 = vtanh.pop %v1559
  %1568 = vrot.lane.b32.xlu0 %v1566, 64
  %v1569 = vpop.permute.xlu0 %1568
  %v1571 = vmul.f32 %v1533, %v1569
  %1573 = vrot.lane.b32.xlu0 %v1565, 32
  %v1574 = vpop.permute.xlu0 %1573
  %1576 = vst.msk [vmem:[%s341] sm:$0xff] %vm41, %v1574
  %1578 = vrot.lane.b32.xlu0 %v1571, 64
  %v1579 = vpop.permute.xlu0 %1578
  %1581 = vst.msk [vmem:[%s4] sm:$0xff] %vm342, %v1579
  // Predicated region
  $region18: #{_lambda_.2} parent=0 // pred_check
    _
  $region19: #{_lambda_.2} parent=0 // pred_check_branch
    %1583 = sbr.rel (0) target = $region21
  $region20: #{_lambda_.2} parent=0 // pred_region
    _
  $region21: #{_lambda_.2} parent=0 // pred_fallthru
    _
  // Predicated region
  $region22: #{_lambda_.2} parent=0 // pred_check
    _
  $region23: #{_lambda_.2} parent=0 // pred_check_branch
    %1585 = sbr.rel (0) target = $region25
  $region24: #{_lambda_.2} parent=0 // pred_region
    _
  $region25: #{_lambda_.2} parent=0 // pred_fallthru
    _

</llo_original>
